<compile_context>
chip_gen: v7x
topology: tpu7x:2x2x1
jax: 0.10.0
libtpu: 0.0.40
codegen_flags: <defaults>
</compile_context>

<pallas_src>
import functools
import numpy as np
import jax
import jax.numpy as jnp
from jax import lax
from jax.experimental import pallas as pl
from jax.experimental.pallas import tpu as pltpu

_LANES = 128


def _round_up(n, m):
    return ((n + m - 1) // m) * m


def _make_mlp_kernel(num_linear, mxu_dtype=None):
    """Kernel refs: (x, W0, b0, ..., W_{L-1}, b_{L-1}, out); all 2-D, N on lanes."""

    def kernel(*refs):
        x_ref = refs[0]
        o_ref = refs[-1]
        params = refs[1:-1]
        assert len(params) == 2 * num_linear

        # No layer-0 cast round trip: x already arrives in the MXU operand dtype
        # (bf16 when mxu_dtype is set, f32 otherwise).
        h = x_ref[...]                                    # (d*in_dim, tile_n)
        for i in range(num_linear):
            w = params[2 * i][...]                        # (d*f_out, d*f_in) block-diag^T
            b = params[2 * i + 1][...]                    # (d*f_out, 1), f32
            if mxu_dtype is None:
                # Match the f32 reference einsum (PyTorch semantics).
                h = jnp.dot(w, h, preferred_element_type=jnp.float32,
                            precision=lax.Precision.HIGHEST)
            else:
                h = jnp.dot(w, h, preferred_element_type=jnp.float32)
            h = h + b                                     # lane-broadcast bias (f32)
            if i < num_linear - 1:                        # ReLU between linears only
                h = jnp.maximum(h, 0.0)
                if mxu_dtype is not None:
                    h = h.astype(mxu_dtype)               # bf16 operand for next matmul
        o_ref[...] = h.astype(o_ref.dtype)                # lane-dense store (tile_n lanes)

    return kernel


def _block_diag_T(w):
    """(n_dim, f_in, f_out) -> (n_dim*f_out, n_dim*f_in) block-diag of per-dim W^T."""
    d, fi, fo = w.shape
    eye = jnp.eye(d, dtype=w.dtype)
    # out[(d,o), (e,i)] = w[d,i,o] if d == e else 0
    return jnp.einsum("dio,de->doei", w, eye).reshape(d * fo, d * fi)


def pack_params(weights, biases, mxu_dtype=None):
    """Pack per-dim weights/biases into the transposed block-diagonal layout."""
    packed_ws, packed_bs = [], []
    for w, b in zip(weights, biases):
        wt = _block_diag_T(w)
        if mxu_dtype is not None:
            wt = wt.astype(mxu_dtype)
        packed_ws.append(wt)
        packed_bs.append(b.reshape(-1, 1).astype(jnp.float32))   # (n_dim*f_out, 1)
    return packed_ws, packed_bs


def translation_net_apply_packed(x_packed, packed_ws, packed_bs, *,
                                 out_dtype=None, tile_n=1024, mxu_dtype=None):
    """Packed-layout entry point (no wrapper repacks).

    x_packed: (n_dim*in_dim, N) with x_packed[d*in_dim + i, n] == x[d, n, i].
    Returns:  (n_dim*out_dim, N) with out_packed[d*out_dim + o, n] == y[d, n, o].
    """
    K, N = x_packed.shape
    out_rows = packed_ws[-1].shape[0]
    num_linear = len(packed_ws)
    if out_dtype is None:
        out_dtype = x_packed.dtype

    # Lane-aligned N tile, capped at ~N/2 so the parallel grid axis has extent
    # >= 2 whenever N >= 256 (keeps both v7x TensorCores busy); large enough to
    # amortize per-grid-step overhead on all generations.
    tile = max(_LANES, min(_round_up(tile_n, _LANES),
                           _round_up(pl.cdiv(N, 2), _LANES)))
    n_pad = _round_up(N, tile)
    if n_pad != N:
        x_packed = jnp.pad(x_packed, ((0, 0), (0, n_pad - N)))
    if mxu_dtype is not None:
        x_packed = x_packed.astype(mxu_dtype)

    grid = (n_pad // tile,)

    in_specs = [pl.BlockSpec((K, tile), lambda n: (0, n))]
    operands = [x_packed]
    for w, b in zip(packed_ws, packed_bs):
        # Full-array blocks with constant index_maps: weights/biases stay
        # resident in VMEM across all N tiles (no redundant weight DMA).
        in_specs.append(pl.BlockSpec(w.shape, lambda n: (0, 0)))
        in_specs.append(pl.BlockSpec(b.shape, lambda n: (0, 0)))
        operands.append(w)
        operands.append(b)
    # Lane-dense output: last block dim is tile_n (>=128 lanes) -> unmasked vst.
    out_spec = pl.BlockSpec((out_rows, tile), lambda n: (0, n))

    out_packed = pl.pallas_call(
        _make_mlp_kernel(num_linear, mxu_dtype),
        out_shape=jax.ShapeDtypeStruct((out_rows, n_pad), out_dtype),
        grid_spec=pltpu.PrefetchScalarGridSpec(
            num_scalar_prefetch=0,
            grid=grid,
            in_specs=in_specs,
            out_specs=out_spec,
        ),
        compiler_params=pltpu.CompilerParams(
            # N tiles are independent -> megacore sharding on v7x (extent >= 2
            # by the tile cap above whenever N allows).
            dimension_semantics=("parallel",),
            # Resident weights + double-buffered N tiles fit well below this on
            # every generation (v5e/v6e 128 MiB phys, v7x 64 MiB phys per TC).
            vmem_limit_bytes=32 * 1024 * 1024,
        ),
    )(*operands)
    return out_packed[:, :N]


def translation_net_forward(x, weights, biases, *, tile_n=1024, mxu_dtype=None):
    """x: (n_dim, N, in_dim) -> (n_dim, N, out_dim); matches TranslationNet.forward.

    mxu_dtype=jnp.bfloat16 (recommended on v6e/v7x, valid on v5e) feeds bf16 MXU
    operands with f32 accumulation; expect ~1e-2 max relative error vs the f32
    reference.  Leave None for exact f32 (PyTorch) semantics.
    """
    n_dim, N, in_dim = x.shape
    out_dim = weights[-1].shape[-1]

    # Thin layout plumbing (features are tiny).  Callers that can adopt the
    # packed (d*f, N) layout should call translation_net_apply_packed directly
    # and skip these two HBM copies (per perf review item on wrapper repacks).
    x_packed = jnp.transpose(x, (0, 2, 1)).reshape(n_dim * in_dim, N)
    packed_ws, packed_bs = pack_params(weights, biases, mxu_dtype)

    out_packed = translation_net_apply_packed(
        x_packed, packed_ws, packed_bs,
        out_dtype=x.dtype, tile_n=tile_n, mxu_dtype=mxu_dtype)

    out = out_packed.reshape(n_dim, out_dim, N)
    return jnp.transpose(out, (0, 2, 1))


def init_translation_net(key, n_dim, in_dim, out_dim, hidden_features=32, hidden_layers=3):
    """Deterministic init mirroring LinearPerDim: U(-sqrt(1/in), sqrt(1/in))."""
    if hidden_layers == 0:
        hidden_features = out_dim

    dims = [(in_dim, hidden_features)]
    for i in range(hidden_layers):
        dims.append(
            (hidden_features, hidden_features if i < hidden_layers - 1 else out_dim)
        )

    weights, biases = [], []
    for (fi, fo) in dims:
        key, kw, kb = jax.random.split(key, 3)
        sqrt_k = np.sqrt(1.0 / fi)
        weights.append(jax.random.uniform(kw, (n_dim, fi, fo), jnp.float32, -sqrt_k, sqrt_k))
        biases.append(jax.random.uniform(kb, (n_dim, 1, fo), jnp.float32, -sqrt_k, sqrt_k))
    return weights, biases


def translation_net_reference(x, weights, biases):
    """Pure-JAX reference matching the PyTorch forward (f32, HIGHEST precision)."""
    h = x
    num_linear = len(weights)
    for i, (w, b) in enumerate(zip(weights, biases)):
        h = jnp.einsum("dni,dio->dno", h, w, precision=lax.Precision.HIGHEST) + b
        if i < num_linear - 1:
            h = jax.nn.relu(h)
    return h


if __name__ == "__main__":
    # Small shapes consistent with TranslationNet (n_dim coords, N points).
    n_dim, N, in_dim, out_dim = 2, 300, 8, 8
    hidden_features, hidden_layers = 32, 3

    key = jax.random.PRNGKey(0)
    key, kx = jax.random.split(key)
    x = jax.random.normal(kx, (n_dim, N, in_dim), jnp.float32)

    weights, biases = init_translation_net(
        key, n_dim, in_dim, out_dim, hidden_features, hidden_layers
    )

    ref = translation_net_reference(x, weights, biases)

    # Exact-semantics path (f32 MXU operands, HIGHEST precision).
    # N=300 -> tile capped to 256 lanes, N padded to 512, grid=(2,) ("parallel").
    fwd = jax.jit(functools.partial(translation_net_forward, tile_n=1024))
    out = jax.block_until_ready(fwd(x, weights, biases))
    assert out.shape == (n_dim, N, out_dim)
    assert jnp.allclose(out, ref, atol=1e-5, rtol=1e-5), "f32 Pallas output mismatch"

    # bf16-MXU-operand path (recommended on v6e/v7x; f32 accumulate, f32 output).
    fwd_bf16 = jax.jit(functools.partial(
        translation_net_forward, tile_n=1024, mxu_dtype=jnp.bfloat16))
    out_bf16 = jax.block_until_ready(fwd_bf16(x, weights, biases))
    assert out_bf16.shape == (n_dim, N, out_dim)
    rel_err = float(jnp.max(jnp.abs(out_bf16 - ref)) / (jnp.max(jnp.abs(ref)) + 1e-12))
    assert rel_err < 5e-2, f"bf16 Pallas output too far from reference: {rel_err}"

    print("KERNEL_OK")
</pallas_src>

<mosaic_0001>
module attributes {stable_mosaic.version = 11 : i64} {
  func.func @kernel(%arg0: i32, %arg1: memref<16x256xf32, #tpu.memory_space<vmem>>, %arg2: memref<64x16xf32, #tpu.memory_space<vmem>>, %arg3: memref<64x1xf32, #tpu.memory_space<vmem>>, %arg4: memref<64x64xf32, #tpu.memory_space<vmem>>, %arg5: memref<64x1xf32, #tpu.memory_space<vmem>>, %arg6: memref<64x64xf32, #tpu.memory_space<vmem>>, %arg7: memref<64x1xf32, #tpu.memory_space<vmem>>, %arg8: memref<16x64xf32, #tpu.memory_space<vmem>>, %arg9: memref<16x1xf32, #tpu.memory_space<vmem>>, %arg10: memref<16x256xf32, #tpu.memory_space<vmem>>) attributes {dimension_semantics = [#tpu.dimension_semantics<parallel>], iteration_bounds = array<i64: 2>, scalar_prefetch = 0 : i64, scratch_operands = 0 : i64, tpu.core_type = #tpu.core_type<tc>, window_params = [{transform_indices = @transform_0, window_bounds = array<i64: 16, 256>}, {pipeline_mode = #tpu.pipeline_mode<synchronous>, transform_indices = @transform_1, window_bounds = array<i64: 64, 16>}, {pipeline_mode = #tpu.pipeline_mode<synchronous>, transform_indices = @transform_2, window_bounds = array<i64: 64, 1>}, {pipeline_mode = #tpu.pipeline_mode<synchronous>, transform_indices = @transform_3, window_bounds = array<i64: 64, 64>}, {pipeline_mode = #tpu.pipeline_mode<synchronous>, transform_indices = @transform_4, window_bounds = array<i64: 64, 1>}, {pipeline_mode = #tpu.pipeline_mode<synchronous>, transform_indices = @transform_5, window_bounds = array<i64: 64, 64>}, {pipeline_mode = #tpu.pipeline_mode<synchronous>, transform_indices = @transform_6, window_bounds = array<i64: 64, 1>}, {pipeline_mode = #tpu.pipeline_mode<synchronous>, transform_indices = @transform_7, window_bounds = array<i64: 16, 64>}, {pipeline_mode = #tpu.pipeline_mode<synchronous>, transform_indices = @transform_8, window_bounds = array<i64: 16, 1>}, {transform_indices = @transform_9, window_bounds = array<i64: 16, 256>}]} {
    %c0 = arith.constant 0 : index
    %c0_0 = arith.constant 0 : index
    %0 = vector.load %arg1[%c0, %c0_0] : memref<16x256xf32, #tpu.memory_space<vmem>>, vector<16x256xf32>
    %c0_1 = arith.constant 0 : index
    %c0_2 = arith.constant 0 : index
    %1 = vector.load %arg2[%c0_1, %c0_2] : memref<64x16xf32, #tpu.memory_space<vmem>>, vector<64x16xf32>
    %c0_3 = arith.constant 0 : index
    %c0_4 = arith.constant 0 : index
    %2 = vector.load %arg3[%c0_3, %c0_4] : memref<64x1xf32, #tpu.memory_space<vmem>>, vector<64x1xf32>
    %cst = arith.constant dense<0.000000e+00> : vector<64x256xf32>
    %3 = tpu.matmul %1, %0, %cst {dimension_numbers = #tpu.dot_dimension_numbers<[1], [0], [0], [1], [0, 0, 1, 1], [], []>, precision = #tpu.contract_precision<fp32>} : vector<64x16xf32>, vector<16x256xf32>, vector<64x256xf32> -> vector<64x256xf32>
    %4 = vector.broadcast %2 : vector<64x1xf32> to vector<64x256xf32>
    %5 = arith.addf %3, %4 : vector<64x256xf32>
    %cst_5 = arith.constant 0.000000e+00 : f32
    %6 = vector.broadcast %cst_5 : f32 to vector<64x256xf32>
    %7 = arith.maximumf %5, %6 : vector<64x256xf32>
    %c0_6 = arith.constant 0 : index
    %c0_7 = arith.constant 0 : index
    %8 = vector.load %arg4[%c0_6, %c0_7] : memref<64x64xf32, #tpu.memory_space<vmem>>, vector<64x64xf32>
    %c0_8 = arith.constant 0 : index
    %c0_9 = arith.constant 0 : index
    %9 = vector.load %arg5[%c0_8, %c0_9] : memref<64x1xf32, #tpu.memory_space<vmem>>, vector<64x1xf32>
    %cst_10 = arith.constant dense<0.000000e+00> : vector<64x256xf32>
    %10 = tpu.matmul %8, %7, %cst_10 {dimension_numbers = #tpu.dot_dimension_numbers<[1], [0], [0], [1], [0, 0, 1, 1], [], []>, precision = #tpu.contract_precision<fp32>} : vector<64x64xf32>, vector<64x256xf32>, vector<64x256xf32> -> vector<64x256xf32>
    %11 = vector.broadcast %9 : vector<64x1xf32> to vector<64x256xf32>
    %12 = arith.addf %10, %11 : vector<64x256xf32>
    %cst_11 = arith.constant 0.000000e+00 : f32
    %13 = vector.broadcast %cst_11 : f32 to vector<64x256xf32>
    %14 = arith.maximumf %12, %13 : vector<64x256xf32>
    %c0_12 = arith.constant 0 : index
    %c0_13 = arith.constant 0 : index
    %15 = vector.load %arg6[%c0_12, %c0_13] : memref<64x64xf32, #tpu.memory_space<vmem>>, vector<64x64xf32>
    %c0_14 = arith.constant 0 : index
    %c0_15 = arith.constant 0 : index
    %16 = vector.load %arg7[%c0_14, %c0_15] : memref<64x1xf32, #tpu.memory_space<vmem>>, vector<64x1xf32>
    %cst_16 = arith.constant dense<0.000000e+00> : vector<64x256xf32>
    %17 = tpu.matmul %15, %14, %cst_16 {dimension_numbers = #tpu.dot_dimension_numbers<[1], [0], [0], [1], [0, 0, 1, 1], [], []>, precision = #tpu.contract_precision<fp32>} : vector<64x64xf32>, vector<64x256xf32>, vector<64x256xf32> -> vector<64x256xf32>
    %18 = vector.broadcast %16 : vector<64x1xf32> to vector<64x256xf32>
    %19 = arith.addf %17, %18 : vector<64x256xf32>
    %cst_17 = arith.constant 0.000000e+00 : f32
    %20 = vector.broadcast %cst_17 : f32 to vector<64x256xf32>
    %21 = arith.maximumf %19, %20 : vector<64x256xf32>
    %c0_18 = arith.constant 0 : index
    %c0_19 = arith.constant 0 : index
    %22 = vector.load %arg8[%c0_18, %c0_19] : memref<16x64xf32, #tpu.memory_space<vmem>>, vector<16x64xf32>
    %c0_20 = arith.constant 0 : index
    %c0_21 = arith.constant 0 : index
    %23 = vector.load %arg9[%c0_20, %c0_21] : memref<16x1xf32, #tpu.memory_space<vmem>>, vector<16x1xf32>
    %cst_22 = arith.constant dense<0.000000e+00> : vector<16x256xf32>
    %24 = tpu.matmul %22, %21, %cst_22 {dimension_numbers = #tpu.dot_dimension_numbers<[1], [0], [0], [1], [0, 0, 1, 1], [], []>, precision = #tpu.contract_precision<fp32>} : vector<16x64xf32>, vector<64x256xf32>, vector<16x256xf32> -> vector<16x256xf32>
    %25 = vector.broadcast %23 : vector<16x1xf32> to vector<16x256xf32>
    %26 = arith.addf %24, %25 : vector<16x256xf32>
    %c0_23 = arith.constant 0 : index
    %c0_24 = arith.constant 0 : index
    %27 = vector.load %arg10[%c0_23, %c0_24] : memref<16x256xf32, #tpu.memory_space<vmem>>, vector<16x256xf32>
    tpu.vector_store %arg10[%c0_23, %c0_24], %26 {strides = array<i32>} : memref<16x256xf32, #tpu.memory_space<vmem>>, vector<16x256xf32>,
    return
  }
  func.func @transform_0(%arg0: i32) -> (i32, i32) {
    %c0_i32 = arith.constant 0 : i32
    %c0_i32_0 = arith.constant 0 : i32
    return %c0_i32, %arg0 : i32, i32
  }
  func.func @transform_1(%arg0: i32) -> (i32, i32) {
    %c0_i32 = arith.constant 0 : i32
    %c0_i32_0 = arith.constant 0 : i32
    %c0_i32_1 = arith.constant 0 : i32
    return %c0_i32, %c0_i32_0 : i32, i32
  }
  func.func @transform_2(%arg0: i32) -> (i32, i32) {
    %c0_i32 = arith.constant 0 : i32
    %c0_i32_0 = arith.constant 0 : i32
    %c0_i32_1 = arith.constant 0 : i32
    return %c0_i32, %c0_i32_0 : i32, i32
  }
  func.func @transform_3(%arg0: i32) -> (i32, i32) {
    %c0_i32 = arith.constant 0 : i32
    %c0_i32_0 = arith.constant 0 : i32
    %c0_i32_1 = arith.constant 0 : i32
    return %c0_i32, %c0_i32_0 : i32, i32
  }
  func.func @transform_4(%arg0: i32) -> (i32, i32) {
    %c0_i32 = arith.constant 0 : i32
    %c0_i32_0 = arith.constant 0 : i32
    %c0_i32_1 = arith.constant 0 : i32
    return %c0_i32, %c0_i32_0 : i32, i32
  }
  func.func @transform_5(%arg0: i32) -> (i32, i32) {
    %c0_i32 = arith.constant 0 : i32
    %c0_i32_0 = arith.constant 0 : i32
    %c0_i32_1 = arith.constant 0 : i32
    return %c0_i32, %c0_i32_0 : i32, i32
  }
  func.func @transform_6(%arg0: i32) -> (i32, i32) {
    %c0_i32 = arith.constant 0 : i32
    %c0_i32_0 = arith.constant 0 : i32
    %c0_i32_1 = arith.constant 0 : i32
    return %c0_i32, %c0_i32_0 : i32, i32
  }
  func.func @transform_7(%arg0: i32) -> (i32, i32) {
    %c0_i32 = arith.constant 0 : i32
    %c0_i32_0 = arith.constant 0 : i32
    %c0_i32_1 = arith.constant 0 : i32
    return %c0_i32, %c0_i32_0 : i32, i32
  }
  func.func @transform_8(%arg0: i32) -> (i32, i32) {
    %c0_i32 = arith.constant 0 : i32
    %c0_i32_0 = arith.constant 0 : i32
    %c0_i32_1 = arith.constant 0 : i32
    return %c0_i32, %c0_i32_0 : i32, i32
  }
  func.func @transform_9(%arg0: i32) -> (i32, i32) {
    %c0_i32 = arith.constant 0 : i32
    %c0_i32_0 = arith.constant 0 : i32
    return %c0_i32, %arg0 : i32, i32
  }
}

</mosaic_0001>

<llo_original>
// kernel: translation_net_forward.1
$region0: #{translation_net_forward.1}
  #allocation0 [shape = 'u32[]', space=smem, size = 0x4, offset = 0x4, fixed_abs, tag = 'smem constant byte address 0x4 - core index']
  #allocation1 [shape = 'u32[144,128]{1,0:T(1,128)}', space=vmem, size = 0x12000, scoped, tag = 'internal scratch']
  %s0 = inlined_call_operand.vmem [shape: f32[16,512], index: 0, kind: input, shape index: {}]
  %s1 = inlined_call_operand.vmem [shape: f32[64,16], index: 1, kind: input, shape index: {}]
  %s2 = inlined_call_operand.vmem [shape: f32[64,1], index: 2, kind: input, shape index: {}]
  %s3 = inlined_call_operand.vmem [shape: f32[64,64], index: 3, kind: input, shape index: {}]
  %s4 = inlined_call_operand.vmem [shape: f32[64,1], index: 4, kind: input, shape index: {}]
  %s5 = inlined_call_operand.vmem [shape: f32[64,64], index: 5, kind: input, shape index: {}]
  %s6 = inlined_call_operand.vmem [shape: f32[64,1], index: 6, kind: input, shape index: {}]
  %s7 = inlined_call_operand.vmem [shape: f32[16,64], index: 7, kind: input, shape index: {}]
  %s8 = inlined_call_operand.vmem [shape: f32[16,1], index: 8, kind: input, shape index: {}]
  %s9 = inlined_call_operand.vmem [shape: f32[16,512], index: 9, kind: output, shape index: {}]
  %s10 = sld [smem:[#allocation0]]
  $region111: #{translation_net_forward.1} parent=0
    _
  %s12 = ssub.s32 1, %s10
  %s13 = scalar_select 0, %s12, %s10
  $region1: #{translation_net_forward.1} parent=0
    #allocation2 [shape = 'u8[32768]{0}', space=vmem, size = 0x8000, scoped, tag = 'input window, operand 0']
    #allocation3 [shape = 'u8[32768]{0}', space=vmem, size = 0x8000, scoped, tag = 'output window, operand 0']
    loop: start=0, step=1, limit=4
    $region2: #{translation_net_forward.1} parent=1 // loop_pre_header
      _
    $region3: #{translation_net_forward.1} parent=1 // loop_header
      %s15 = sphi 0, %s19
      %p16 = scmp.ge.s32.totalorder %s15, 4
      %s25 = sphi 0, %s27
      %s28 = sphi 0, %s25
      %s29 = sphi 0, %s28
      %s45 = sphi 0, %s29
      %s49 = sphi 0, %s49
      %s51 = sphi 0, %s49
      %s52 = sphi 0, %s51
      %s66 = sphi 0, %s52
      %s70 = sphi 0, %s70
      %s72 = sphi 0, %s70
      %s73 = sphi 0, %s72
      %s87 = sphi 0, %s73
      %s91 = sphi 0, %s91
      %s93 = sphi 0, %s91
      %s94 = sphi 0, %s93
      %s108 = sphi 0, %s94
      %s112 = sphi 0, %s112
      %s114 = sphi 0, %s112
      %s115 = sphi 0, %s114
      %s129 = sphi 0, %s115
      %s133 = sphi 0, %s133
      %s135 = sphi 0, %s133
      %s136 = sphi 0, %s135
      %s150 = sphi 0, %s136
      %s154 = sphi 0, %s154
      %s156 = sphi 0, %s154
      %s157 = sphi 0, %s156
      %s171 = sphi 0, %s157
      %s175 = sphi 0, %s175
      %s177 = sphi 0, %s175
      %s178 = sphi 0, %s177
      %s192 = sphi 0, %s178
      %s196 = sphi 0, %s196
      %s198 = sphi 0, %s196
      %s199 = sphi 0, %s198
      %s213 = sphi 0, %s199
      %s219 = sphi 0, %s221
      %s222 = sphi 0, %s219
      %s223 = sphi 0, %s222
      %s239 = sphi 0, %s223
    $region4: #{translation_net_forward.1} parent=1 // loop_header_branch
      %18 = sbr.rel (%p16) target = $region8
    $region5: #{translation_net_forward.1} parent=1 // loop_body
      %s20 = ssub.s32 %s15, 1
      %s21 = ssub.s32 %s15, 2
      %s22 = sadd.s32 %s15, 1
      %s23 = ssub.s32 %s15, %s22
      %p24 = scmp.eq.s32.totalorder %s23, 0
      %s26 = sadd.s32 %s25, 1
      %s27 = scalar_select %p24, %s25, %s26
      %p30 = pneg %p24
      %p31 = scmp.eq.s32.totalorder %s15, 1
      %p32 = por %p30, %p31
      %p33 = scmp.ne.s32.totalorder %s25, %s28
      %p34 = scmp.eq.s32.totalorder %s15, 0
      %p35 = por %p33, %p34
      %p36 = scmp.ne.s32.totalorder %s25, %s28
      %p37 = scmp.eq.s32.totalorder %s20, 1
      %p38 = por %p36, %p37
      %p39 = scmp.ne.s32.totalorder %s28, %s29
      %p40 = scmp.eq.s32.totalorder %s20, 0
      %p41 = por %p39, %p40
      %p42 = scmp.ne.s32.totalorder %s28, %s29
      %p43 = scmp.eq.s32.totalorder %s21, 1
      %p44 = por %p42, %p43
      %p46 = scmp.ne.s32.totalorder %s29, %s45
      %p47 = scmp.eq.s32.totalorder %s21, 0
      %p48 = por %p46, %p47
      %s50 = sadd.s32 %s49, 1
      %p53 = scmp.eq.s32.totalorder %s15, 1
      %p54 = scmp.ne.s32.totalorder %s49, %s51
      %p55 = scmp.eq.s32.totalorder %s15, 0
      %p56 = por %p54, %p55
      %p57 = scmp.ne.s32.totalorder %s49, %s51
      %p58 = scmp.eq.s32.totalorder %s20, 1
      %p59 = por %p57, %p58
      %p60 = scmp.ne.s32.totalorder %s51, %s52
      %p61 = scmp.eq.s32.totalorder %s20, 0
      %p62 = por %p60, %p61
      %p63 = scmp.ne.s32.totalorder %s51, %s52
      %p64 = scmp.eq.s32.totalorder %s21, 1
      %p65 = por %p63, %p64
      %p67 = scmp.ne.s32.totalorder %s52, %s66
      %p68 = scmp.eq.s32.totalorder %s21, 0
      %p69 = por %p67, %p68
      %s71 = sadd.s32 %s70, 1
      %p74 = scmp.eq.s32.totalorder %s15, 1
      %p75 = scmp.ne.s32.totalorder %s70, %s72
      %p76 = scmp.eq.s32.totalorder %s15, 0
      %p77 = por %p75, %p76
      %p78 = scmp.ne.s32.totalorder %s70, %s72
      %p79 = scmp.eq.s32.totalorder %s20, 1
      %p80 = por %p78, %p79
      %p81 = scmp.ne.s32.totalorder %s72, %s73
      %p82 = scmp.eq.s32.totalorder %s20, 0
      %p83 = por %p81, %p82
      %p84 = scmp.ne.s32.totalorder %s72, %s73
      %p85 = scmp.eq.s32.totalorder %s21, 1
      %p86 = por %p84, %p85
      %p88 = scmp.ne.s32.totalorder %s73, %s87
      %p89 = scmp.eq.s32.totalorder %s21, 0
      %p90 = por %p88, %p89
      %s92 = sadd.s32 %s91, 1
      %p95 = scmp.eq.s32.totalorder %s15, 1
      %p96 = scmp.ne.s32.totalorder %s91, %s93
      %p97 = scmp.eq.s32.totalorder %s15, 0
      %p98 = por %p96, %p97
      %p99 = scmp.ne.s32.totalorder %s91, %s93
      %p100 = scmp.eq.s32.totalorder %s20, 1
      %p101 = por %p99, %p100
      %p102 = scmp.ne.s32.totalorder %s93, %s94
      %p103 = scmp.eq.s32.totalorder %s20, 0
      %p104 = por %p102, %p103
      %p105 = scmp.ne.s32.totalorder %s93, %s94
      %p106 = scmp.eq.s32.totalorder %s21, 1
      %p107 = por %p105, %p106
      %p109 = scmp.ne.s32.totalorder %s94, %s108
      %p110 = scmp.eq.s32.totalorder %s21, 0
      %p111 = por %p109, %p110
      %s113 = sadd.s32 %s112, 1
      %p116 = scmp.eq.s32.totalorder %s15, 1
      %p117 = scmp.ne.s32.totalorder %s112, %s114
      %p118 = scmp.eq.s32.totalorder %s15, 0
      %p119 = por %p117, %p118
      %p120 = scmp.ne.s32.totalorder %s112, %s114
      %p121 = scmp.eq.s32.totalorder %s20, 1
      %p122 = por %p120, %p121
      %p123 = scmp.ne.s32.totalorder %s114, %s115
      %p124 = scmp.eq.s32.totalorder %s20, 0
      %p125 = por %p123, %p124
      %p126 = scmp.ne.s32.totalorder %s114, %s115
      %p127 = scmp.eq.s32.totalorder %s21, 1
      %p128 = por %p126, %p127
      %p130 = scmp.ne.s32.totalorder %s115, %s129
      %p131 = scmp.eq.s32.totalorder %s21, 0
      %p132 = por %p130, %p131
      %s134 = sadd.s32 %s133, 1
      %p137 = scmp.eq.s32.totalorder %s15, 1
      %p138 = scmp.ne.s32.totalorder %s133, %s135
      %p139 = scmp.eq.s32.totalorder %s15, 0
      %p140 = por %p138, %p139
      %p141 = scmp.ne.s32.totalorder %s133, %s135
      %p142 = scmp.eq.s32.totalorder %s20, 1
      %p143 = por %p141, %p142
      %p144 = scmp.ne.s32.totalorder %s135, %s136
      %p145 = scmp.eq.s32.totalorder %s20, 0
      %p146 = por %p144, %p145
      %p147 = scmp.ne.s32.totalorder %s135, %s136
      %p148 = scmp.eq.s32.totalorder %s21, 1
      %p149 = por %p147, %p148
      %p151 = scmp.ne.s32.totalorder %s136, %s150
      %p152 = scmp.eq.s32.totalorder %s21, 0
      %p153 = por %p151, %p152
      %s155 = sadd.s32 %s154, 1
      %p158 = scmp.eq.s32.totalorder %s15, 1
      %p159 = scmp.ne.s32.totalorder %s154, %s156
      %p160 = scmp.eq.s32.totalorder %s15, 0
      %p161 = por %p159, %p160
      %p162 = scmp.ne.s32.totalorder %s154, %s156
      %p163 = scmp.eq.s32.totalorder %s20, 1
      %p164 = por %p162, %p163
      %p165 = scmp.ne.s32.totalorder %s156, %s157
      %p166 = scmp.eq.s32.totalorder %s20, 0
      %p167 = por %p165, %p166
      %p168 = scmp.ne.s32.totalorder %s156, %s157
      %p169 = scmp.eq.s32.totalorder %s21, 1
      %p170 = por %p168, %p169
      %p172 = scmp.ne.s32.totalorder %s157, %s171
      %p173 = scmp.eq.s32.totalorder %s21, 0
      %p174 = por %p172, %p173
      %s176 = sadd.s32 %s175, 1
      %p179 = scmp.eq.s32.totalorder %s15, 1
      %p180 = scmp.ne.s32.totalorder %s175, %s177
      %p181 = scmp.eq.s32.totalorder %s15, 0
      %p182 = por %p180, %p181
      %p183 = scmp.ne.s32.totalorder %s175, %s177
      %p184 = scmp.eq.s32.totalorder %s20, 1
      %p185 = por %p183, %p184
      %p186 = scmp.ne.s32.totalorder %s177, %s178
      %p187 = scmp.eq.s32.totalorder %s20, 0
      %p188 = por %p186, %p187
      %p189 = scmp.ne.s32.totalorder %s177, %s178
      %p190 = scmp.eq.s32.totalorder %s21, 1
      %p191 = por %p189, %p190
      %p193 = scmp.ne.s32.totalorder %s178, %s192
      %p194 = scmp.eq.s32.totalorder %s21, 0
      %p195 = por %p193, %p194
      %s197 = sadd.s32 %s196, 1
      %p200 = scmp.eq.s32.totalorder %s15, 1
      %p201 = scmp.ne.s32.totalorder %s196, %s198
      %p202 = scmp.eq.s32.totalorder %s15, 0
      %p203 = por %p201, %p202
      %p204 = scmp.ne.s32.totalorder %s196, %s198
      %p205 = scmp.eq.s32.totalorder %s20, 1
      %p206 = por %p204, %p205
      %p207 = scmp.ne.s32.totalorder %s198, %s199
      %p208 = scmp.eq.s32.totalorder %s20, 0
      %p209 = por %p207, %p208
      %p210 = scmp.ne.s32.totalorder %s198, %s199
      %p211 = scmp.eq.s32.totalorder %s21, 1
      %p212 = por %p210, %p211
      %p214 = scmp.ne.s32.totalorder %s199, %s213
      %p215 = scmp.eq.s32.totalorder %s21, 0
      %p216 = por %p214, %p215
      %s217 = ssub.s32 %s15, %s22
      %p218 = scmp.eq.s32.totalorder %s217, 0
      %s220 = sadd.s32 %s219, 1
      %s221 = scalar_select %p218, %s219, %s220
      %p224 = pneg %p218
      %p225 = scmp.eq.s32.totalorder %s15, 1
      %p226 = por %p224, %p225
      %p227 = scmp.ne.s32.totalorder %s219, %s222
      %p228 = scmp.eq.s32.totalorder %s15, 0
      %p229 = por %p227, %p228
      %p230 = scmp.ne.s32.totalorder %s219, %s222
      %p231 = scmp.eq.s32.totalorder %s20, 1
      %p232 = por %p230, %p231
      %p233 = scmp.ne.s32.totalorder %s222, %s223
      %p234 = scmp.eq.s32.totalorder %s20, 0
      %p235 = por %p233, %p234
      %p236 = scmp.ne.s32.totalorder %s222, %s223
      %p237 = scmp.eq.s32.totalorder %s21, 1
      %p238 = por %p236, %p237
      %p240 = scmp.ne.s32.totalorder %s223, %s239
      %p241 = scmp.eq.s32.totalorder %s21, 0
      %p242 = por %p240, %p241
      %p243 = scmp.le.s32.totalorder 1, %s15
      %p244 = scmp.lt.s32.totalorder %s15, 3
      %p245 = pnand %p243, %p244
      %p246 = pneg %p245
      // Predicated region
      $region9: #{translation_net_forward.1} parent=5 // pred_check
        _
      $region10: #{translation_net_forward.1} parent=5 // pred_check_branch
        %248 = sbr.rel (%p245) target = $region12
      $region11: #{translation_net_forward.1} parent=5 // pred_region
        %s249 = ssub.s32 %s15, 1
        // Predicated region
        $region13: #{translation_net_forward.1} parent=11 // pred_check
          %p250 = pneg %p62
        $region14: #{translation_net_forward.1} parent=11 // pred_check_branch
          %252 = sbr.rel (%p250) target = $region16
        $region15: #{translation_net_forward.1} parent=11 // pred_region
          _
        $region16: #{translation_net_forward.1} parent=11 // pred_fallthru
          _
        // Predicated region
        $region17: #{translation_net_forward.1} parent=11 // pred_check
          %p253 = pneg %p83
        $region18: #{translation_net_forward.1} parent=11 // pred_check_branch
          %255 = sbr.rel (%p253) target = $region20
        $region19: #{translation_net_forward.1} parent=11 // pred_region
          _
        $region20: #{translation_net_forward.1} parent=11 // pred_fallthru
          _
        // Predicated region
        $region21: #{translation_net_forward.1} parent=11 // pred_check
          %p256 = pneg %p104
        $region22: #{translation_net_forward.1} parent=11 // pred_check_branch
          %258 = sbr.rel (%p256) target = $region24
        $region23: #{translation_net_forward.1} parent=11 // pred_region
          _
        $region24: #{translation_net_forward.1} parent=11 // pred_fallthru
          _
        // Predicated region
        $region25: #{translation_net_forward.1} parent=11 // pred_check
          %p259 = pneg %p125
        $region26: #{translation_net_forward.1} parent=11 // pred_check_branch
          %261 = sbr.rel (%p259) target = $region28
        $region27: #{translation_net_forward.1} parent=11 // pred_region
          _
        $region28: #{translation_net_forward.1} parent=11 // pred_fallthru
          _
        // Predicated region
        $region29: #{translation_net_forward.1} parent=11 // pred_check
          %p262 = pneg %p146
        $region30: #{translation_net_forward.1} parent=11 // pred_check_branch
          %264 = sbr.rel (%p262) target = $region32
        $region31: #{translation_net_forward.1} parent=11 // pred_region
          _
        $region32: #{translation_net_forward.1} parent=11 // pred_fallthru
          _
        // Predicated region
        $region33: #{translation_net_forward.1} parent=11 // pred_check
          %p265 = pneg %p167
        $region34: #{translation_net_forward.1} parent=11 // pred_check_branch
          %267 = sbr.rel (%p265) target = $region36
        $region35: #{translation_net_forward.1} parent=11 // pred_region
          _
        $region36: #{translation_net_forward.1} parent=11 // pred_fallthru
          _
        // Predicated region
        $region37: #{translation_net_forward.1} parent=11 // pred_check
          %p268 = pneg %p188
        $region38: #{translation_net_forward.1} parent=11 // pred_check_branch
          %270 = sbr.rel (%p268) target = $region40
        $region39: #{translation_net_forward.1} parent=11 // pred_region
          _
        $region40: #{translation_net_forward.1} parent=11 // pred_fallthru
          _
        // Predicated region
        $region41: #{translation_net_forward.1} parent=11 // pred_check
          %p271 = pneg %p209
        $region42: #{translation_net_forward.1} parent=11 // pred_check_branch
          %273 = sbr.rel (%p271) target = $region44
        $region43: #{translation_net_forward.1} parent=11 // pred_region
          _
        $region44: #{translation_net_forward.1} parent=11 // pred_fallthru
          _
      $region12: #{translation_net_forward.1} parent=5 // pred_fallthru
        _
      %p274 = scmp.lt.s32.totalorder %s15, 2
      // Predicated region
      $region45: #{translation_net_forward.1} parent=5 // pred_check
        %p275 = pneg %p274
      $region46: #{translation_net_forward.1} parent=5 // pred_check_branch
        %277 = sbr.rel (%p275) target = $region48
      $region47: #{translation_net_forward.1} parent=5 // pred_region
        // Predicated region
        $region49: #{translation_net_forward.1} parent=47 // pred_check
          %p278 = pneg %p35
        $region50: #{translation_net_forward.1} parent=47 // pred_check_branch
          %280 = sbr.rel (%p278) target = $region52
        $region51: #{translation_net_forward.1} parent=47 // pred_region
          %s281 = sand.u32 %s25, 1
          %s282 = sand.u32 %s25, 1
          %s283 = smul.addr %s282, 32
          %s284 = scalar_lea.vmem [#allocation2], %s283
          %s285 = smul.u32 2, %s15
          %s286 = smul.addr %s285, 8
          %s287 = scalar_lea.vmem %s0, %s286
          // Predicated region
          $region53: #{translation_net_forward.1} parent=51 // pred_check
            _
          $region54: #{translation_net_forward.1} parent=51 // pred_check_branch
            %289 = sbr.rel (0) target = $region56
          $region55: #{translation_net_forward.1} parent=51 // pred_region
            // Predicated region
            $region57: #{translation_net_forward.1} parent=55 // pred_check
              _
            $region58: #{translation_net_forward.1} parent=55 // pred_check_branch
              %291 = sbr.rel (0) target = $region60
            $region59: #{translation_net_forward.1} parent=55 // pred_region
              loop: start=0, step=1, limit=1
              $region61: #{translation_net_forward.1} parent=59 // loop_pre_header
                _
              $region62: #{translation_net_forward.1} parent=59 // loop_header
                %s293 = sphi 0, %s297
                %p294 = scmp.ge.s32.totalorder %s293, 1
                %s298 = sphi %s287, %s287
                %s299 = sphi %s284, %s284
              $region63: #{translation_net_forward.1} parent=59 // loop_header_branch
                %296 = sbr.rel (%p294) target = $region67
              $region64: #{translation_net_forward.1} parent=59 // loop_body
                %v300 = vld [vmem:[%s298] sm:$0xff]
                %301 = vst [vmem:[%s299] sm:$0xff] %v300
                %v302 = vld [vmem:[%s298 + $0x8] sm:$0xff]
                %303 = vst [vmem:[%s299 + $0x8] sm:$0xff] %v302
                %v304 = vld [vmem:[%s298 + $0x20] sm:$0xff]
                %305 = vst [vmem:[%s299 + $0x10] sm:$0xff] %v304
                %v306 = vld [vmem:[%s298 + $0x28] sm:$0xff]
                %307 = vst [vmem:[%s299 + $0x18] sm:$0xff] %v306
              $region65: #{translation_net_forward.1} parent=59 // loop_footer
                %s297 = sadd.s32 1, %s293
              $region66: #{translation_net_forward.1} parent=59 // loop_footer_branch
                %292 = sbr.rel target = $region62
              $region67: #{translation_net_forward.1} parent=59 // loop_exit
                _
            $region60: #{translation_net_forward.1} parent=55 // pred_fallthru
              _
            // Predicated region
            $region68: #{translation_net_forward.1} parent=55 // pred_check
              _
            $region69: #{translation_net_forward.1} parent=55 // pred_check_branch
              %309 = sbr.rel target = $region71
            $region70: #{translation_net_forward.1} parent=55 // pred_region
              _
            $region71: #{translation_net_forward.1} parent=55 // pred_fallthru
              _
          $region56: #{translation_net_forward.1} parent=51 // pred_fallthru
            _
          %310 = vnop
        $region52: #{translation_net_forward.1} parent=47 // pred_fallthru
          _
      $region48: #{translation_net_forward.1} parent=5 // pred_fallthru
        _
      %p311 = scmp.le.s32.totalorder 1, %s15
      %p312 = scmp.lt.s32.totalorder %s15, 3
      %p313 = pnand %p311, %p312
      %p314 = pneg %p313
      // Predicated region
      $region72: #{translation_net_forward.1} parent=5 // pred_check
        _
      $region73: #{translation_net_forward.1} parent=5 // pred_check_branch
        %316 = sbr.rel (%p313) target = $region75
      $region74: #{translation_net_forward.1} parent=5 // pred_region
        %s317 = ssub.s32 %s15, 1
        %s318 = sand.u32 %s28, 1
        %s319 = sand.u32 %s28, 1
        %s320 = smul.addr %s319, 32
        %s321 = scalar_lea.vmem [#allocation2], %s320
        // Predicated region
        $region76: #{translation_net_forward.1} parent=74 // pred_check
          %p322 = pneg %p41
        $region77: #{translation_net_forward.1} parent=74 // pred_check_branch
          %324 = sbr.rel (%p322) target = $region79
        $region78: #{translation_net_forward.1} parent=74 // pred_region
          _
        $region79: #{translation_net_forward.1} parent=74 // pred_fallthru
          _
        %s325 = sand.u32 %s28, 1
        %s326 = sand.u32 %s28, 1
        %s327 = smul.addr %s326, 32
        %s328 = scalar_lea.vmem [#allocation2], %s327
        %p329 = pneg %p41
        %p330 = pneg %p38
        %p331 = pneg %p62
        %p332 = pneg %p59
        %p333 = pneg %p83
        %p334 = pneg %p80
        %p335 = pneg %p104
        %p336 = pneg %p101
        %p337 = pneg %p125
        %p338 = pneg %p122
        %p339 = pneg %p146
        %p340 = pneg %p143
        %p341 = pneg %p167
        %p342 = pneg %p164
        %p343 = pneg %p188
        %p344 = pneg %p185
        %p345 = pneg %p209
        %p346 = pneg %p206
        %p347 = pneg %p235
        %p348 = pneg %p232
        %s349 = sand.u32 %s222, 1
        %s350 = sand.u32 %s222, 1
        %s351 = smul.addr %s350, 32
        %s352 = scalar_lea.vmem [#allocation3], %s351
        %s353 = smul.u32 2, %s20
        %s354 = smul.u32 2, %s20
        %v355 = vld [vmem:[%s321] sm:$0xff]
        %v356 = vld [vmem:[%s321 + $0x8] sm:$0xff]
        %v357 = vld [vmem:[%s321 + $0x10] sm:$0xff]
        %v358 = vld [vmem:[%s321 + $0x18] sm:$0xff]
        %v359 = vld [vmem:[%s1] sm:$0xff]
        %v360 = vld [vmem:[%s1 + $0x8] sm:$0xff]
        %v361 = vld [vmem:[%s1 + $0x10] sm:$0xff]
        %v362 = vld [vmem:[%s1 + $0x18] sm:$0xff]
        %v363 = vld [vmem:[%s1 + $0x20] sm:$0xff]
        %v364 = vld [vmem:[%s1 + $0x28] sm:$0xff]
        %v365 = vld [vmem:[%s1 + $0x30] sm:$0xff]
        %v366 = vld [vmem:[%s1 + $0x38] sm:$0xff]
        %v367 = vld [vmem:[%s2] sm:$0xff]
        %v368 = vld [vmem:[%s2 + $0x8] sm:$0xff]
        %v369 = vld [vmem:[%s2 + $0x10] sm:$0xff]
        %v370 = vld [vmem:[%s2 + $0x18] sm:$0xff]
        %v371 = vld [vmem:[%s2 + $0x20] sm:$0xff]
        %v372 = vld [vmem:[%s2 + $0x28] sm:$0xff]
        %v373 = vld [vmem:[%s2 + $0x30] sm:$0xff]
        %v374 = vld [vmem:[%s2 + $0x38] sm:$0xff]
        %376 = vset.pattern.permute.xlu0 0
        %377 = vperm.xlu0 %376, %v367
        %v378 = vpop.permute.xlu0 %377
        %381 = vset.pattern.permute.xlu0 0
        %382 = vperm.xlu0 %381, %v368
        %v383 = vpop.permute.xlu0 %382
        %386 = vset.pattern.permute.xlu0 0
        %387 = vperm.xlu0 %386, %v369
        %v388 = vpop.permute.xlu0 %387
        %391 = vset.pattern.permute.xlu0 0
        %392 = vperm.xlu0 %391, %v370
        %v393 = vpop.permute.xlu0 %392
        %396 = vset.pattern.permute.xlu0 0
        %397 = vperm.xlu0 %396, %v371
        %v398 = vpop.permute.xlu0 %397
        %401 = vset.pattern.permute.xlu0 0
        %402 = vperm.xlu0 %401, %v372
        %v403 = vpop.permute.xlu0 %402
        %406 = vset.pattern.permute.xlu0 0
        %407 = vperm.xlu0 %406, %v373
        %v408 = vpop.permute.xlu0 %407
        %411 = vset.pattern.permute.xlu0 0
        %412 = vperm.xlu0 %411, %v374
        %v413 = vpop.permute.xlu0 %412
        %vm415 = vcmask 130048
        %v417 = vsel %vm415, %v359, 0
        %v420 = vsel %vm415, %v360, 0
        %v423 = vsel %vm415, %v361, 0
        %v426 = vsel %vm415, %v362, 0
        %v429 = vsel %vm415, %v363, 0
        %v432 = vsel %vm415, %v364, 0
        %v435 = vsel %vm415, %v365, 0
        %v438 = vsel %vm415, %v366, 0
        %v440 = vand.u32 %v356, 4294901760
        %441 = vmatprep.subr.mxu0 %v440
        %v442 = vand.u32 %v355, 4294901760
        %443 = vmatpush1.msra.mxu0 %v442
        %v444 = vand.u32 %v358, 4294901760
        %445 = vmatprep.subr.mxu0 %v444
        %v446 = vand.u32 %v357, 4294901760
        %447 = vmatpush1.msra.mxu0 %v446
        %448 = vmatprep.subr.mxu0 0.0
        %449 = vmatpush1.msra.mxu0 0.0
        %450 = vmatprep.subr.mxu0 0.0
        %451 = vmatpush1.msra.mxu0 0.0
        %452 = vmatprep.subr.mxu0 0.0
        %453 = vmatpush1.msra.mxu0 0.0
        %454 = vmatprep.subr.mxu0 0.0
        %455 = vmatpush1.msra.mxu0 0.0
        %456 = vmatprep.subr.mxu0 0.0
        %457 = vmatpush1.msra.mxu0 0.0
        %458 = vmatprep.subr.mxu0 0.0
        %459 = vmatpush1.msra.mxu0 0.0
        %460 = vmatprep.subr.mxu0 0.0
        %461 = vmatpush1.msra.mxu0 0.0
        %462 = vmatprep.subr.mxu0 0.0
        %463 = vmatpush1.msra.mxu0 0.0
        %464 = vmatprep.subr.mxu0 0.0
        %465 = vmatpush1.msra.mxu0 0.0
        %466 = vmatprep.subr.mxu0 0.0
        %467 = vmatpush1.msra.mxu0 0.0
        %468 = vmatprep.subr.mxu0 0.0
        %469 = vmatpush1.msra.mxu0 0.0
        %470 = vmatprep.subr.mxu0 0.0
        %471 = vmatpush1.msra.mxu0 0.0
        %472 = vmatprep.subr.mxu0 0.0
        %473 = vmatpush1.msra.mxu0 0.0
        %474 = vmatprep.subr.mxu0 0.0
        %475 = vmatpush1.msra.mxu0 0.0
        %476 = vmatprep.subr.mxu0 0.0
        %477 = vmatpush1.msra.mxu0 0.0
        %478 = vmatprep.subr.mxu0 0.0
        %479 = vmatpush1.msra.mxu0 0.0
        %480 = vmatprep.subr.mxu0 0.0
        %481 = vmatpush1.msra.mxu0 0.0
        %482 = vmatprep.subr.mxu0 0.0
        %483 = vmatpush1.msra.mxu0 0.0
        %484 = vmatprep.subr.mxu0 0.0
        %485 = vmatpush1.msra.mxu0 0.0
        %486 = vmatprep.subr.mxu0 0.0
        %487 = vmatpush1.msra.mxu0 0.0
        %488 = vmatprep.subr.mxu0 0.0
        %489 = vmatpush1.msra.mxu0 0.0
        %490 = vmatprep.subr.mxu0 0.0
        %491 = vmatpush1.msra.mxu0 0.0
        %492 = vmatprep.subr.mxu0 0.0
        %493 = vmatpush1.msra.mxu0 0.0
        %494 = vmatprep.subr.mxu0 0.0
        %495 = vmatpush1.msra.mxu0 0.0
        %496 = vmatprep.subr.mxu0 0.0
        %497 = vmatpush1.msra.mxu0 0.0
        %498 = vmatprep.subr.mxu0 0.0
        %499 = vmatpush1.msra.mxu0 0.0
        %500 = vmatprep.subr.mxu0 0.0
        %501 = vmatpush1.msra.mxu0 0.0
        %502 = vmatprep.subr.mxu0 0.0
        %503 = vmatpush1.msra.mxu0 0.0
        %504 = vmatprep.subr.mxu0 0.0
        %505 = vmatpush1.msra.mxu0 0.0
        %506 = vmatprep.subr.mxu0 0.0
        %507 = vmatpush1.msra.mxu0 0.0
        %508 = vmatprep.mubr.f32.mxu0 0.0
        %v509 = vand.u32 %v417, 4294901760
        %v510 = vsub.f32 %v417, %v509
        %v511 = vand.u32 %v510, 4294901760
        %v512 = vsub.f32 %v510, %v511
        %v513 = vand.u32 %v512, 4294901760
        %514 = vmatmul.mubr.f32.gmra.mrb[0].mxu0 %v513
        %v515 = vpop.f32.mrb[0].mxu0
        %v516 = vadd.f32 %v378, %v515
        %v517 = vpop.f32.mrb[0].mxu0
        %v518 = vadd.f32 %v378, %v517
        %519 = vmatprep.mubr.f32.mxu0 0.0
        %v520 = vand.u32 %v420, 4294901760
        %v521 = vsub.f32 %v420, %v520
        %v522 = vand.u32 %v521, 4294901760
        %v523 = vsub.f32 %v521, %v522
        %v524 = vand.u32 %v523, 4294901760
        %525 = vmatmul.mubr.f32.gmra.mrb[0].mxu0 %v524
        %v526 = vpop.f32.mrb[0].mxu0
        %v527 = vadd.f32 %v383, %v526
        %v528 = vpop.f32.mrb[0].mxu0
        %v529 = vadd.f32 %v383, %v528
        %530 = vmatprep.mubr.f32.mxu0 0.0
        %v531 = vand.u32 %v423, 4294901760
        %v532 = vsub.f32 %v423, %v531
        %v533 = vand.u32 %v532, 4294901760
        %v534 = vsub.f32 %v532, %v533
        %v535 = vand.u32 %v534, 4294901760
        %536 = vmatmul.mubr.f32.gmra.mrb[0].mxu0 %v535
        %v537 = vpop.f32.mrb[0].mxu0
        %v538 = vadd.f32 %v388, %v537
        %v539 = vpop.f32.mrb[0].mxu0
        %v540 = vadd.f32 %v388, %v539
        %541 = vmatprep.mubr.f32.mxu0 0.0
        %v542 = vand.u32 %v426, 4294901760
        %v543 = vsub.f32 %v426, %v542
        %v544 = vand.u32 %v543, 4294901760
        %v545 = vsub.f32 %v543, %v544
        %v546 = vand.u32 %v545, 4294901760
        %547 = vmatmul.mubr.f32.gmra.mrb[0].mxu0 %v546
        %v548 = vpop.f32.mrb[0].mxu0
        %v549 = vadd.f32 %v393, %v548
        %v550 = vpop.f32.mrb[0].mxu0
        %v551 = vadd.f32 %v393, %v550
        %552 = vmatprep.mubr.f32.mxu0 0.0
        %v553 = vand.u32 %v429, 4294901760
        %v554 = vsub.f32 %v429, %v553
        %v555 = vand.u32 %v554, 4294901760
        %v556 = vsub.f32 %v554, %v555
        %v557 = vand.u32 %v556, 4294901760
        %558 = vmatmul.mubr.f32.gmra.mrb[0].mxu0 %v557
        %v559 = vpop.f32.mrb[0].mxu0
        %v560 = vadd.f32 %v398, %v559
        %v561 = vpop.f32.mrb[0].mxu0
        %v562 = vadd.f32 %v398, %v561
        %563 = vmatprep.mubr.f32.mxu0 0.0
        %v564 = vand.u32 %v432, 4294901760
        %v565 = vsub.f32 %v432, %v564
        %v566 = vand.u32 %v565, 4294901760
        %v567 = vsub.f32 %v565, %v566
        %v568 = vand.u32 %v567, 4294901760
        %569 = vmatmul.mubr.f32.gmra.mrb[0].mxu0 %v568
        %v570 = vpop.f32.mrb[0].mxu0
        %v571 = vadd.f32 %v403, %v570
        %v572 = vpop.f32.mrb[0].mxu0
        %v573 = vadd.f32 %v403, %v572
        %574 = vmatprep.mubr.f32.mxu0 0.0
        %v575 = vand.u32 %v435, 4294901760
        %v576 = vsub.f32 %v435, %v575
        %v577 = vand.u32 %v576, 4294901760
        %v578 = vsub.f32 %v576, %v577
        %v579 = vand.u32 %v578, 4294901760
        %580 = vmatmul.mubr.f32.gmra.mrb[0].mxu0 %v579
        %v581 = vpop.f32.mrb[0].mxu0
        %v582 = vadd.f32 %v408, %v581
        %v583 = vpop.f32.mrb[0].mxu0
        %v584 = vadd.f32 %v408, %v583
        %585 = vmatprep.mubr.f32.mxu0 0.0
        %v586 = vand.u32 %v438, 4294901760
        %v587 = vsub.f32 %v438, %v586
        %v588 = vand.u32 %v587, 4294901760
        %v589 = vsub.f32 %v587, %v588
        %v590 = vand.u32 %v589, 4294901760
        %591 = vmatmul.mubr.f32.gmra.mrb[0].mxu0 %v590
        %v592 = vpop.f32.mrb[0].mxu0
        %v593 = vadd.f32 %v413, %v592
        %v594 = vpop.f32.mrb[0].mxu0
        %v595 = vadd.f32 %v413, %v594
        %596 = vdwg.mxu0
        %v597 = vand.u32 %v356, 4294901760
        %v598 = vsub.f32 %v356, %v597
        %v599 = vand.u32 %v598, 4294901760
        %v600 = vsub.f32 %v598, %v599
        %v601 = vand.u32 %v600, 4294901760
        %602 = vmatprep.subr.mxu0 %v601
        %v603 = vand.u32 %v355, 4294901760
        %v604 = vsub.f32 %v355, %v603
        %v605 = vand.u32 %v604, 4294901760
        %v606 = vsub.f32 %v604, %v605
        %v607 = vand.u32 %v606, 4294901760
        %608 = vmatpush1.msra.mxu0 %v607
        %v609 = vand.u32 %v358, 4294901760
        %v610 = vsub.f32 %v358, %v609
        %v611 = vand.u32 %v610, 4294901760
        %v612 = vsub.f32 %v610, %v611
        %v613 = vand.u32 %v612, 4294901760
        %614 = vmatprep.subr.mxu0 %v613
        %v615 = vand.u32 %v357, 4294901760
        %v616 = vsub.f32 %v357, %v615
        %v617 = vand.u32 %v616, 4294901760
        %v618 = vsub.f32 %v616, %v617
        %v619 = vand.u32 %v618, 4294901760
        %620 = vmatpush1.msra.mxu0 %v619
        %621 = vmatprep.subr.mxu0 0.0
        %622 = vmatpush1.msra.mxu0 0.0
        %623 = vmatprep.subr.mxu0 0.0
        %624 = vmatpush1.msra.mxu0 0.0
        %625 = vmatprep.subr.mxu0 0.0
        %626 = vmatpush1.msra.mxu0 0.0
        %627 = vmatprep.subr.mxu0 0.0
        %628 = vmatpush1.msra.mxu0 0.0
        %629 = vmatprep.subr.mxu0 0.0
        %630 = vmatpush1.msra.mxu0 0.0
        %631 = vmatprep.subr.mxu0 0.0
        %632 = vmatpush1.msra.mxu0 0.0
        %633 = vmatprep.subr.mxu0 0.0
        %634 = vmatpush1.msra.mxu0 0.0
        %635 = vmatprep.subr.mxu0 0.0
        %636 = vmatpush1.msra.mxu0 0.0
        %637 = vmatprep.subr.mxu0 0.0
        %638 = vmatpush1.msra.mxu0 0.0
        %639 = vmatprep.subr.mxu0 0.0
        %640 = vmatpush1.msra.mxu0 0.0
        %641 = vmatprep.subr.mxu0 0.0
        %642 = vmatpush1.msra.mxu0 0.0
        %643 = vmatprep.subr.mxu0 0.0
        %644 = vmatpush1.msra.mxu0 0.0
        %645 = vmatprep.subr.mxu0 0.0
        %646 = vmatpush1.msra.mxu0 0.0
        %647 = vmatprep.subr.mxu0 0.0
        %648 = vmatpush1.msra.mxu0 0.0
        %649 = vmatprep.subr.mxu0 0.0
        %650 = vmatpush1.msra.mxu0 0.0
        %651 = vmatprep.subr.mxu0 0.0
        %652 = vmatpush1.msra.mxu0 0.0
        %653 = vmatprep.subr.mxu0 0.0
        %654 = vmatpush1.msra.mxu0 0.0
        %655 = vmatprep.subr.mxu0 0.0
        %656 = vmatpush1.msra.mxu0 0.0
        %657 = vmatprep.subr.mxu0 0.0
        %658 = vmatpush1.msra.mxu0 0.0
        %659 = vmatprep.subr.mxu0 0.0
        %660 = vmatpush1.msra.mxu0 0.0
        %661 = vmatprep.subr.mxu0 0.0
        %662 = vmatpush1.msra.mxu0 0.0
        %663 = vmatprep.subr.mxu0 0.0
        %664 = vmatpush1.msra.mxu0 0.0
        %665 = vmatprep.subr.mxu0 0.0
        %666 = vmatpush1.msra.mxu0 0.0
        %667 = vmatprep.subr.mxu0 0.0
        %668 = vmatpush1.msra.mxu0 0.0
        %669 = vmatprep.subr.mxu0 0.0
        %670 = vmatpush1.msra.mxu0 0.0
        %671 = vmatprep.subr.mxu0 0.0
        %672 = vmatpush1.msra.mxu0 0.0
        %673 = vmatprep.subr.mxu0 0.0
        %674 = vmatpush1.msra.mxu0 0.0
        %675 = vmatprep.subr.mxu0 0.0
        %676 = vmatpush1.msra.mxu0 0.0
        %677 = vmatprep.subr.mxu0 0.0
        %678 = vmatpush1.msra.mxu0 0.0
        %679 = vmatprep.subr.mxu0 0.0
        %680 = vmatpush1.msra.mxu0 0.0
        %681 = vmatprep.mubr.f32.mxu0 0.0
        %v682 = vand.u32 %v417, 4294901760
        %683 = vmatmul.mubr.f32.gmra.mrb[0].mxu0 %v682
        %v684 = vpop.f32.mrb[0].mxu0
        %v685 = vadd.f32 %v516, %v684
        %v686 = vpop.f32.mrb[0].mxu0
        %v687 = vadd.f32 %v518, %v686
        %688 = vmatprep.mubr.f32.mxu0 0.0
        %v689 = vand.u32 %v420, 4294901760
        %690 = vmatmul.mubr.f32.gmra.mrb[0].mxu0 %v689
        %v691 = vpop.f32.mrb[0].mxu0
        %v692 = vadd.f32 %v527, %v691
        %v693 = vpop.f32.mrb[0].mxu0
        %v694 = vadd.f32 %v529, %v693
        %695 = vmatprep.mubr.f32.mxu0 0.0
        %v696 = vand.u32 %v423, 4294901760
        %697 = vmatmul.mubr.f32.gmra.mrb[0].mxu0 %v696
        %v698 = vpop.f32.mrb[0].mxu0
        %v699 = vadd.f32 %v538, %v698
        %v700 = vpop.f32.mrb[0].mxu0
        %v701 = vadd.f32 %v540, %v700
        %702 = vmatprep.mubr.f32.mxu0 0.0
        %v703 = vand.u32 %v426, 4294901760
        %704 = vmatmul.mubr.f32.gmra.mrb[0].mxu0 %v703
        %v705 = vpop.f32.mrb[0].mxu0
        %v706 = vadd.f32 %v549, %v705
        %v707 = vpop.f32.mrb[0].mxu0
        %v708 = vadd.f32 %v551, %v707
        %709 = vmatprep.mubr.f32.mxu0 0.0
        %v710 = vand.u32 %v429, 4294901760
        %711 = vmatmul.mubr.f32.gmra.mrb[0].mxu0 %v710
        %v712 = vpop.f32.mrb[0].mxu0
        %v713 = vadd.f32 %v560, %v712
        %v714 = vpop.f32.mrb[0].mxu0
        %v715 = vadd.f32 %v562, %v714
        %716 = vmatprep.mubr.f32.mxu0 0.0
        %v717 = vand.u32 %v432, 4294901760
        %718 = vmatmul.mubr.f32.gmra.mrb[0].mxu0 %v717
        %v719 = vpop.f32.mrb[0].mxu0
        %v720 = vadd.f32 %v571, %v719
        %v721 = vpop.f32.mrb[0].mxu0
        %v722 = vadd.f32 %v573, %v721
        %723 = vmatprep.mubr.f32.mxu0 0.0
        %v724 = vand.u32 %v435, 4294901760
        %725 = vmatmul.mubr.f32.gmra.mrb[0].mxu0 %v724
        %v726 = vpop.f32.mrb[0].mxu0
        %v727 = vadd.f32 %v582, %v726
        %v728 = vpop.f32.mrb[0].mxu0
        %v729 = vadd.f32 %v584, %v728
        %730 = vmatprep.mubr.f32.mxu0 0.0
        %v731 = vand.u32 %v438, 4294901760
        %732 = vmatmul.mubr.f32.gmra.mrb[0].mxu0 %v731
        %v733 = vpop.f32.mrb[0].mxu0
        %v734 = vadd.f32 %v593, %v733
        %v735 = vpop.f32.mrb[0].mxu0
        %v736 = vadd.f32 %v595, %v735
        %737 = vdwg.mxu0
        %v738 = vand.u32 %v356, 4294901760
        %v739 = vsub.f32 %v356, %v738
        %740 = vmatprep.subr.mxu0 %v739
        %v741 = vand.u32 %v355, 4294901760
        %v742 = vsub.f32 %v355, %v741
        %743 = vmatpush1.msra.mxu0 %v742
        %v744 = vand.u32 %v358, 4294901760
        %v745 = vsub.f32 %v358, %v744
        %746 = vmatprep.subr.mxu0 %v745
        %v747 = vand.u32 %v357, 4294901760
        %v748 = vsub.f32 %v357, %v747
        %749 = vmatpush1.msra.mxu0 %v748
        %750 = vmatprep.subr.mxu0 0.0
        %751 = vmatpush1.msra.mxu0 0.0
        %752 = vmatprep.subr.mxu0 0.0
        %753 = vmatpush1.msra.mxu0 0.0
        %754 = vmatprep.subr.mxu0 0.0
        %755 = vmatpush1.msra.mxu0 0.0
        %756 = vmatprep.subr.mxu0 0.0
        %757 = vmatpush1.msra.mxu0 0.0
        %758 = vmatprep.subr.mxu0 0.0
        %759 = vmatpush1.msra.mxu0 0.0
        %760 = vmatprep.subr.mxu0 0.0
        %761 = vmatpush1.msra.mxu0 0.0
        %762 = vmatprep.subr.mxu0 0.0
        %763 = vmatpush1.msra.mxu0 0.0
        %764 = vmatprep.subr.mxu0 0.0
        %765 = vmatpush1.msra.mxu0 0.0
        %766 = vmatprep.subr.mxu0 0.0
        %767 = vmatpush1.msra.mxu0 0.0
        %768 = vmatprep.subr.mxu0 0.0
        %769 = vmatpush1.msra.mxu0 0.0
        %770 = vmatprep.subr.mxu0 0.0
        %771 = vmatpush1.msra.mxu0 0.0
        %772 = vmatprep.subr.mxu0 0.0
        %773 = vmatpush1.msra.mxu0 0.0
        %774 = vmatprep.subr.mxu0 0.0
        %775 = vmatpush1.msra.mxu0 0.0
        %776 = vmatprep.subr.mxu0 0.0
        %777 = vmatpush1.msra.mxu0 0.0
        %778 = vmatprep.subr.mxu0 0.0
        %779 = vmatpush1.msra.mxu0 0.0
        %780 = vmatprep.subr.mxu0 0.0
        %781 = vmatpush1.msra.mxu0 0.0
        %782 = vmatprep.subr.mxu0 0.0
        %783 = vmatpush1.msra.mxu0 0.0
        %784 = vmatprep.subr.mxu0 0.0
        %785 = vmatpush1.msra.mxu0 0.0
        %786 = vmatprep.subr.mxu0 0.0
        %787 = vmatpush1.msra.mxu0 0.0
        %788 = vmatprep.subr.mxu0 0.0
        %789 = vmatpush1.msra.mxu0 0.0
        %790 = vmatprep.subr.mxu0 0.0
        %791 = vmatpush1.msra.mxu0 0.0
        %792 = vmatprep.subr.mxu0 0.0
        %793 = vmatpush1.msra.mxu0 0.0
        %794 = vmatprep.subr.mxu0 0.0
        %795 = vmatpush1.msra.mxu0 0.0
        %796 = vmatprep.subr.mxu0 0.0
        %797 = vmatpush1.msra.mxu0 0.0
        %798 = vmatprep.subr.mxu0 0.0
        %799 = vmatpush1.msra.mxu0 0.0
        %800 = vmatprep.subr.mxu0 0.0
        %801 = vmatpush1.msra.mxu0 0.0
        %802 = vmatprep.subr.mxu0 0.0
        %803 = vmatpush1.msra.mxu0 0.0
        %804 = vmatprep.subr.mxu0 0.0
        %805 = vmatpush1.msra.mxu0 0.0
        %806 = vmatprep.subr.mxu0 0.0
        %807 = vmatpush1.msra.mxu0 0.0
        %808 = vmatprep.subr.mxu0 0.0
        %809 = vmatpush1.msra.mxu0 0.0
        %810 = vmatprep.mubr.f32.mxu0 0.0
        %v811 = vand.u32 %v417, 4294901760
        %v812 = vsub.f32 %v417, %v811
        %813 = vmatmul.mubr.f32.gmra.mrb[0].mxu0 %v812
        %v814 = vpop.f32.mrb[0].mxu0
        %v815 = vadd.f32 %v685, %v814
        %v816 = vpop.f32.mrb[0].mxu0
        %v817 = vadd.f32 %v687, %v816
        %818 = vmatprep.mubr.f32.mxu0 0.0
        %v819 = vand.u32 %v420, 4294901760
        %v820 = vsub.f32 %v420, %v819
        %821 = vmatmul.mubr.f32.gmra.mrb[0].mxu0 %v820
        %v822 = vpop.f32.mrb[0].mxu0
        %v823 = vadd.f32 %v692, %v822
        %v824 = vpop.f32.mrb[0].mxu0
        %v825 = vadd.f32 %v694, %v824
        %826 = vmatprep.mubr.f32.mxu0 0.0
        %v827 = vand.u32 %v423, 4294901760
        %v828 = vsub.f32 %v423, %v827
        %829 = vmatmul.mubr.f32.gmra.mrb[0].mxu0 %v828
        %v830 = vpop.f32.mrb[0].mxu0
        %v831 = vadd.f32 %v699, %v830
        %v832 = vpop.f32.mrb[0].mxu0
        %v833 = vadd.f32 %v701, %v832
        %834 = vmatprep.mubr.f32.mxu0 0.0
        %v835 = vand.u32 %v426, 4294901760
        %v836 = vsub.f32 %v426, %v835
        %837 = vmatmul.mubr.f32.gmra.mrb[0].mxu0 %v836
        %v838 = vpop.f32.mrb[0].mxu0
        %v839 = vadd.f32 %v706, %v838
        %v840 = vpop.f32.mrb[0].mxu0
        %v841 = vadd.f32 %v708, %v840
        %842 = vmatprep.mubr.f32.mxu0 0.0
        %v843 = vand.u32 %v429, 4294901760
        %v844 = vsub.f32 %v429, %v843
        %845 = vmatmul.mubr.f32.gmra.mrb[0].mxu0 %v844
        %v846 = vpop.f32.mrb[0].mxu0
        %v847 = vadd.f32 %v713, %v846
        %v848 = vpop.f32.mrb[0].mxu0
        %v849 = vadd.f32 %v715, %v848
        %850 = vmatprep.mubr.f32.mxu0 0.0
        %v851 = vand.u32 %v432, 4294901760
        %v852 = vsub.f32 %v432, %v851
        %853 = vmatmul.mubr.f32.gmra.mrb[0].mxu0 %v852
        %v854 = vpop.f32.mrb[0].mxu0
        %v855 = vadd.f32 %v720, %v854
        %v856 = vpop.f32.mrb[0].mxu0
        %v857 = vadd.f32 %v722, %v856
        %858 = vmatprep.mubr.f32.mxu0 0.0
        %v859 = vand.u32 %v435, 4294901760
        %v860 = vsub.f32 %v435, %v859
        %861 = vmatmul.mubr.f32.gmra.mrb[0].mxu0 %v860
        %v862 = vpop.f32.mrb[0].mxu0
        %v863 = vadd.f32 %v727, %v862
        %v864 = vpop.f32.mrb[0].mxu0
        %v865 = vadd.f32 %v729, %v864
        %866 = vmatprep.mubr.f32.mxu0 0.0
        %v867 = vand.u32 %v438, 4294901760
        %v868 = vsub.f32 %v438, %v867
        %869 = vmatmul.mubr.f32.gmra.mrb[0].mxu0 %v868
        %v870 = vpop.f32.mrb[0].mxu0
        %v871 = vadd.f32 %v734, %v870
        %v872 = vpop.f32.mrb[0].mxu0
        %v873 = vadd.f32 %v736, %v872
        %874 = vdwg.mxu0
        %v875 = vand.u32 %v356, 4294901760
        %876 = vmatprep.subr.mxu0 %v875
        %v877 = vand.u32 %v355, 4294901760
        %878 = vmatpush1.msra.mxu0 %v877
        %v879 = vand.u32 %v358, 4294901760
        %880 = vmatprep.subr.mxu0 %v879
        %v881 = vand.u32 %v357, 4294901760
        %882 = vmatpush1.msra.mxu0 %v881
        %883 = vmatprep.subr.mxu0 0.0
        %884 = vmatpush1.msra.mxu0 0.0
        %885 = vmatprep.subr.mxu0 0.0
        %886 = vmatpush1.msra.mxu0 0.0
        %887 = vmatprep.subr.mxu0 0.0
        %888 = vmatpush1.msra.mxu0 0.0
        %889 = vmatprep.subr.mxu0 0.0
        %890 = vmatpush1.msra.mxu0 0.0
        %891 = vmatprep.subr.mxu0 0.0
        %892 = vmatpush1.msra.mxu0 0.0
        %893 = vmatprep.subr.mxu0 0.0
        %894 = vmatpush1.msra.mxu0 0.0
        %895 = vmatprep.subr.mxu0 0.0
        %896 = vmatpush1.msra.mxu0 0.0
        %897 = vmatprep.subr.mxu0 0.0
        %898 = vmatpush1.msra.mxu0 0.0
        %899 = vmatprep.subr.mxu0 0.0
        %900 = vmatpush1.msra.mxu0 0.0
        %901 = vmatprep.subr.mxu0 0.0
        %902 = vmatpush1.msra.mxu0 0.0
        %903 = vmatprep.subr.mxu0 0.0
        %904 = vmatpush1.msra.mxu0 0.0
        %905 = vmatprep.subr.mxu0 0.0
        %906 = vmatpush1.msra.mxu0 0.0
        %907 = vmatprep.subr.mxu0 0.0
        %908 = vmatpush1.msra.mxu0 0.0
        %909 = vmatprep.subr.mxu0 0.0
        %910 = vmatpush1.msra.mxu0 0.0
        %911 = vmatprep.subr.mxu0 0.0
        %912 = vmatpush1.msra.mxu0 0.0
        %913 = vmatprep.subr.mxu0 0.0
        %914 = vmatpush1.msra.mxu0 0.0
        %915 = vmatprep.subr.mxu0 0.0
        %916 = vmatpush1.msra.mxu0 0.0
        %917 = vmatprep.subr.mxu0 0.0
        %918 = vmatpush1.msra.mxu0 0.0
        %919 = vmatprep.subr.mxu0 0.0
        %920 = vmatpush1.msra.mxu0 0.0
        %921 = vmatprep.subr.mxu0 0.0
        %922 = vmatpush1.msra.mxu0 0.0
        %923 = vmatprep.subr.mxu0 0.0
        %924 = vmatpush1.msra.mxu0 0.0
        %925 = vmatprep.subr.mxu0 0.0
        %926 = vmatpush1.msra.mxu0 0.0
        %927 = vmatprep.subr.mxu0 0.0
        %928 = vmatpush1.msra.mxu0 0.0
        %929 = vmatprep.subr.mxu0 0.0
        %930 = vmatpush1.msra.mxu0 0.0
        %931 = vmatprep.subr.mxu0 0.0
        %932 = vmatpush1.msra.mxu0 0.0
        %933 = vmatprep.subr.mxu0 0.0
        %934 = vmatpush1.msra.mxu0 0.0
        %935 = vmatprep.subr.mxu0 0.0
        %936 = vmatpush1.msra.mxu0 0.0
        %937 = vmatprep.subr.mxu0 0.0
        %938 = vmatpush1.msra.mxu0 0.0
        %939 = vmatprep.subr.mxu0 0.0
        %940 = vmatpush1.msra.mxu0 0.0
        %941 = vmatprep.subr.mxu0 0.0
        %942 = vmatpush1.msra.mxu0 0.0
        %943 = vmatprep.mubr.f32.mxu0 0.0
        %v944 = vand.u32 %v417, 4294901760
        %v945 = vsub.f32 %v417, %v944
        %v946 = vand.u32 %v945, 4294901760
        %947 = vmatmul.mubr.f32.gmra.mrb[0].mxu0 %v946
        %v948 = vpop.f32.mrb[0].mxu0
        %v949 = vadd.f32 %v815, %v948
        %v950 = vpop.f32.mrb[0].mxu0
        %v951 = vadd.f32 %v817, %v950
        %952 = vmatprep.mubr.f32.mxu0 0.0
        %v953 = vand.u32 %v420, 4294901760
        %v954 = vsub.f32 %v420, %v953
        %v955 = vand.u32 %v954, 4294901760
        %956 = vmatmul.mubr.f32.gmra.mrb[0].mxu0 %v955
        %v957 = vpop.f32.mrb[0].mxu0
        %v958 = vadd.f32 %v823, %v957
        %v959 = vpop.f32.mrb[0].mxu0
        %v960 = vadd.f32 %v825, %v959
        %961 = vmatprep.mubr.f32.mxu0 0.0
        %v962 = vand.u32 %v423, 4294901760
        %v963 = vsub.f32 %v423, %v962
        %v964 = vand.u32 %v963, 4294901760
        %965 = vmatmul.mubr.f32.gmra.mrb[0].mxu0 %v964
        %v966 = vpop.f32.mrb[0].mxu0
        %v967 = vadd.f32 %v831, %v966
        %v968 = vpop.f32.mrb[0].mxu0
        %v969 = vadd.f32 %v833, %v968
        %970 = vmatprep.mubr.f32.mxu0 0.0
        %v971 = vand.u32 %v426, 4294901760
        %v972 = vsub.f32 %v426, %v971
        %v973 = vand.u32 %v972, 4294901760
        %974 = vmatmul.mubr.f32.gmra.mrb[0].mxu0 %v973
        %v975 = vpop.f32.mrb[0].mxu0
        %v976 = vadd.f32 %v839, %v975
        %v977 = vpop.f32.mrb[0].mxu0
        %v978 = vadd.f32 %v841, %v977
        %979 = vmatprep.mubr.f32.mxu0 0.0
        %v980 = vand.u32 %v429, 4294901760
        %v981 = vsub.f32 %v429, %v980
        %v982 = vand.u32 %v981, 4294901760
        %983 = vmatmul.mubr.f32.gmra.mrb[0].mxu0 %v982
        %v984 = vpop.f32.mrb[0].mxu0
        %v985 = vadd.f32 %v847, %v984
        %v986 = vpop.f32.mrb[0].mxu0
        %v987 = vadd.f32 %v849, %v986
        %988 = vmatprep.mubr.f32.mxu0 0.0
        %v989 = vand.u32 %v432, 4294901760
        %v990 = vsub.f32 %v432, %v989
        %v991 = vand.u32 %v990, 4294901760
        %992 = vmatmul.mubr.f32.gmra.mrb[0].mxu0 %v991
        %v993 = vpop.f32.mrb[0].mxu0
        %v994 = vadd.f32 %v855, %v993
        %v995 = vpop.f32.mrb[0].mxu0
        %v996 = vadd.f32 %v857, %v995
        %997 = vmatprep.mubr.f32.mxu0 0.0
        %v998 = vand.u32 %v435, 4294901760
        %v999 = vsub.f32 %v435, %v998
        %v1000 = vand.u32 %v999, 4294901760
        %1001 = vmatmul.mubr.f32.gmra.mrb[0].mxu0 %v1000
        %v1002 = vpop.f32.mrb[0].mxu0
        %v1003 = vadd.f32 %v863, %v1002
        %v1004 = vpop.f32.mrb[0].mxu0
        %v1005 = vadd.f32 %v865, %v1004
        %1006 = vmatprep.mubr.f32.mxu0 0.0
        %v1007 = vand.u32 %v438, 4294901760
        %v1008 = vsub.f32 %v438, %v1007
        %v1009 = vand.u32 %v1008, 4294901760
        %1010 = vmatmul.mubr.f32.gmra.mrb[0].mxu0 %v1009
        %v1011 = vpop.f32.mrb[0].mxu0
        %v1012 = vadd.f32 %v871, %v1011
        %v1013 = vpop.f32.mrb[0].mxu0
        %v1014 = vadd.f32 %v873, %v1013
        %1015 = vdwg.mxu0
        %v1016 = vand.u32 %v356, 4294901760
        %v1017 = vsub.f32 %v356, %v1016
        %v1018 = vand.u32 %v1017, 4294901760
        %1019 = vmatprep.subr.mxu0 %v1018
        %v1020 = vand.u32 %v355, 4294901760
        %v1021 = vsub.f32 %v355, %v1020
        %v1022 = vand.u32 %v1021, 4294901760
        %1023 = vmatpush1.msra.mxu0 %v1022
        %v1024 = vand.u32 %v358, 4294901760
        %v1025 = vsub.f32 %v358, %v1024
        %v1026 = vand.u32 %v1025, 4294901760
        %1027 = vmatprep.subr.mxu0 %v1026
        %v1028 = vand.u32 %v357, 4294901760
        %v1029 = vsub.f32 %v357, %v1028
        %v1030 = vand.u32 %v1029, 4294901760
        %1031 = vmatpush1.msra.mxu0 %v1030
        %1032 = vmatprep.subr.mxu0 0.0
        %1033 = vmatpush1.msra.mxu0 0.0
        %1034 = vmatprep.subr.mxu0 0.0
        %1035 = vmatpush1.msra.mxu0 0.0
        %1036 = vmatprep.subr.mxu0 0.0
        %1037 = vmatpush1.msra.mxu0 0.0
        %1038 = vmatprep.subr.mxu0 0.0
        %1039 = vmatpush1.msra.mxu0 0.0
        %1040 = vmatprep.subr.mxu0 0.0
        %1041 = vmatpush1.msra.mxu0 0.0
        %1042 = vmatprep.subr.mxu0 0.0
        %1043 = vmatpush1.msra.mxu0 0.0
        %1044 = vmatprep.subr.mxu0 0.0
        %1045 = vmatpush1.msra.mxu0 0.0
        %1046 = vmatprep.subr.mxu0 0.0
        %1047 = vmatpush1.msra.mxu0 0.0
        %1048 = vmatprep.subr.mxu0 0.0
        %1049 = vmatpush1.msra.mxu0 0.0
        %1050 = vmatprep.subr.mxu0 0.0
        %1051 = vmatpush1.msra.mxu0 0.0
        %1052 = vmatprep.subr.mxu0 0.0
        %1053 = vmatpush1.msra.mxu0 0.0
        %1054 = vmatprep.subr.mxu0 0.0
        %1055 = vmatpush1.msra.mxu0 0.0
        %1056 = vmatprep.subr.mxu0 0.0
        %1057 = vmatpush1.msra.mxu0 0.0
        %1058 = vmatprep.subr.mxu0 0.0
        %1059 = vmatpush1.msra.mxu0 0.0
        %1060 = vmatprep.subr.mxu0 0.0
        %1061 = vmatpush1.msra.mxu0 0.0
        %1062 = vmatprep.subr.mxu0 0.0
        %1063 = vmatpush1.msra.mxu0 0.0
        %1064 = vmatprep.subr.mxu0 0.0
        %1065 = vmatpush1.msra.mxu0 0.0
        %1066 = vmatprep.subr.mxu0 0.0
        %1067 = vmatpush1.msra.mxu0 0.0
        %1068 = vmatprep.subr.mxu0 0.0
        %1069 = vmatpush1.msra.mxu0 0.0
        %1070 = vmatprep.subr.mxu0 0.0
        %1071 = vmatpush1.msra.mxu0 0.0
        %1072 = vmatprep.subr.mxu0 0.0
        %1073 = vmatpush1.msra.mxu0 0.0
        %1074 = vmatprep.subr.mxu0 0.0
        %1075 = vmatpush1.msra.mxu0 0.0
        %1076 = vmatprep.subr.mxu0 0.0
        %1077 = vmatpush1.msra.mxu0 0.0
        %1078 = vmatprep.subr.mxu0 0.0
        %1079 = vmatpush1.msra.mxu0 0.0
        %1080 = vmatprep.subr.mxu0 0.0
        %1081 = vmatpush1.msra.mxu0 0.0
        %1082 = vmatprep.subr.mxu0 0.0
        %1083 = vmatpush1.msra.mxu0 0.0
        %1084 = vmatprep.subr.mxu0 0.0
        %1085 = vmatpush1.msra.mxu0 0.0
        %1086 = vmatprep.subr.mxu0 0.0
        %1087 = vmatpush1.msra.mxu0 0.0
        %1088 = vmatprep.subr.mxu0 0.0
        %1089 = vmatpush1.msra.mxu0 0.0
        %1090 = vmatprep.subr.mxu0 0.0
        %1091 = vmatpush1.msra.mxu0 0.0
        %1092 = vmatprep.mubr.f32.mxu0 0.0
        %v1093 = vand.u32 %v417, 4294901760
        %1094 = vmatmul.mubr.f32.gmra.mrb[0].mxu0 %v1093
        %v1095 = vpop.f32.mrb[0].mxu0
        %v1096 = vadd.f32 %v949, %v1095
        %v1097 = vpop.f32.mrb[0].mxu0
        %v1098 = vadd.f32 %v951, %v1097
        %1099 = vmatprep.mubr.f32.mxu0 0.0
        %v1100 = vand.u32 %v420, 4294901760
        %1101 = vmatmul.mubr.f32.gmra.mrb[0].mxu0 %v1100
        %v1102 = vpop.f32.mrb[0].mxu0
        %v1103 = vadd.f32 %v958, %v1102
        %v1104 = vpop.f32.mrb[0].mxu0
        %v1105 = vadd.f32 %v960, %v1104
        %1106 = vmatprep.mubr.f32.mxu0 0.0
        %v1107 = vand.u32 %v423, 4294901760
        %1108 = vmatmul.mubr.f32.gmra.mrb[0].mxu0 %v1107
        %v1109 = vpop.f32.mrb[0].mxu0
        %v1110 = vadd.f32 %v967, %v1109
        %v1111 = vpop.f32.mrb[0].mxu0
        %v1112 = vadd.f32 %v969, %v1111
        %1113 = vmatprep.mubr.f32.mxu0 0.0
        %v1114 = vand.u32 %v426, 4294901760
        %1115 = vmatmul.mubr.f32.gmra.mrb[0].mxu0 %v1114
        %v1116 = vpop.f32.mrb[0].mxu0
        %v1117 = vadd.f32 %v976, %v1116
        %v1118 = vpop.f32.mrb[0].mxu0
        %v1119 = vadd.f32 %v978, %v1118
        %1120 = vmatprep.mubr.f32.mxu0 0.0
        %v1121 = vand.u32 %v429, 4294901760
        %1122 = vmatmul.mubr.f32.gmra.mrb[0].mxu0 %v1121
        %v1123 = vpop.f32.mrb[0].mxu0
        %v1124 = vadd.f32 %v985, %v1123
        %v1125 = vpop.f32.mrb[0].mxu0
        %v1126 = vadd.f32 %v987, %v1125
        %1127 = vmatprep.mubr.f32.mxu0 0.0
        %v1128 = vand.u32 %v432, 4294901760
        %1129 = vmatmul.mubr.f32.gmra.mrb[0].mxu0 %v1128
        %v1130 = vpop.f32.mrb[0].mxu0
        %v1131 = vadd.f32 %v994, %v1130
        %v1132 = vpop.f32.mrb[0].mxu0
        %v1133 = vadd.f32 %v996, %v1132
        %1134 = vmatprep.mubr.f32.mxu0 0.0
        %v1135 = vand.u32 %v435, 4294901760
        %1136 = vmatmul.mubr.f32.gmra.mrb[0].mxu0 %v1135
        %v1137 = vpop.f32.mrb[0].mxu0
        %v1138 = vadd.f32 %v1003, %v1137
        %v1139 = vpop.f32.mrb[0].mxu0
        %v1140 = vadd.f32 %v1005, %v1139
        %1141 = vmatprep.mubr.f32.mxu0 0.0
        %v1142 = vand.u32 %v438, 4294901760
        %1143 = vmatmul.mubr.f32.gmra.mrb[0].mxu0 %v1142
        %v1144 = vpop.f32.mrb[0].mxu0
        %v1145 = vadd.f32 %v1012, %v1144
        %v1146 = vpop.f32.mrb[0].mxu0
        %v1147 = vadd.f32 %v1014, %v1146
        %1148 = vdwg.mxu0
        %v1149 = vand.u32 %v356, 4294901760
        %1150 = vmatprep.subr.mxu0 %v1149
        %v1151 = vand.u32 %v355, 4294901760
        %1152 = vmatpush1.msra.mxu0 %v1151
        %v1153 = vand.u32 %v358, 4294901760
        %1154 = vmatprep.subr.mxu0 %v1153
        %v1155 = vand.u32 %v357, 4294901760
        %1156 = vmatpush1.msra.mxu0 %v1155
        %1157 = vmatprep.subr.mxu0 0.0
        %1158 = vmatpush1.msra.mxu0 0.0
        %1159 = vmatprep.subr.mxu0 0.0
        %1160 = vmatpush1.msra.mxu0 0.0
        %1161 = vmatprep.subr.mxu0 0.0
        %1162 = vmatpush1.msra.mxu0 0.0
        %1163 = vmatprep.subr.mxu0 0.0
        %1164 = vmatpush1.msra.mxu0 0.0
        %1165 = vmatprep.subr.mxu0 0.0
        %1166 = vmatpush1.msra.mxu0 0.0
        %1167 = vmatprep.subr.mxu0 0.0
        %1168 = vmatpush1.msra.mxu0 0.0
        %1169 = vmatprep.subr.mxu0 0.0
        %1170 = vmatpush1.msra.mxu0 0.0
        %1171 = vmatprep.subr.mxu0 0.0
        %1172 = vmatpush1.msra.mxu0 0.0
        %1173 = vmatprep.subr.mxu0 0.0
        %1174 = vmatpush1.msra.mxu0 0.0
        %1175 = vmatprep.subr.mxu0 0.0
        %1176 = vmatpush1.msra.mxu0 0.0
        %1177 = vmatprep.subr.mxu0 0.0
        %1178 = vmatpush1.msra.mxu0 0.0
        %1179 = vmatprep.subr.mxu0 0.0
        %1180 = vmatpush1.msra.mxu0 0.0
        %1181 = vmatprep.subr.mxu0 0.0
        %1182 = vmatpush1.msra.mxu0 0.0
        %1183 = vmatprep.subr.mxu0 0.0
        %1184 = vmatpush1.msra.mxu0 0.0
        %1185 = vmatprep.subr.mxu0 0.0
        %1186 = vmatpush1.msra.mxu0 0.0
        %1187 = vmatprep.subr.mxu0 0.0
        %1188 = vmatpush1.msra.mxu0 0.0
        %1189 = vmatprep.subr.mxu0 0.0
        %1190 = vmatpush1.msra.mxu0 0.0
        %1191 = vmatprep.subr.mxu0 0.0
        %1192 = vmatpush1.msra.mxu0 0.0
        %1193 = vmatprep.subr.mxu0 0.0
        %1194 = vmatpush1.msra.mxu0 0.0
        %1195 = vmatprep.subr.mxu0 0.0
        %1196 = vmatpush1.msra.mxu0 0.0
        %1197 = vmatprep.subr.mxu0 0.0
        %1198 = vmatpush1.msra.mxu0 0.0
        %1199 = vmatprep.subr.mxu0 0.0
        %1200 = vmatpush1.msra.mxu0 0.0
        %1201 = vmatprep.subr.mxu0 0.0
        %1202 = vmatpush1.msra.mxu0 0.0
        %1203 = vmatprep.subr.mxu0 0.0
        %1204 = vmatpush1.msra.mxu0 0.0
        %1205 = vmatprep.subr.mxu0 0.0
        %1206 = vmatpush1.msra.mxu0 0.0
        %1207 = vmatprep.subr.mxu0 0.0
        %1208 = vmatpush1.msra.mxu0 0.0
        %1209 = vmatprep.subr.mxu0 0.0
        %1210 = vmatpush1.msra.mxu0 0.0
        %1211 = vmatprep.subr.mxu0 0.0
        %1212 = vmatpush1.msra.mxu0 0.0
        %1213 = vmatprep.subr.mxu0 0.0
        %1214 = vmatpush1.msra.mxu0 0.0
        %1215 = vmatprep.subr.mxu0 0.0
        %1216 = vmatpush1.msra.mxu0 0.0
        %1217 = vmatprep.mubr.f32.mxu0 0.0
        %v1218 = vand.u32 %v417, 4294901760
        %1219 = vmatmul.mubr.f32.gmra.mrb[0].mxu0 %v1218
        %v1220 = vpop.f32.mrb[0].mxu0
        %v1221 = vadd.f32 %v1096, %v1220
        %v1222 = vpop.f32.mrb[0].mxu0
        %v1223 = vadd.f32 %v1098, %v1222
        %1224 = vmatprep.mubr.f32.mxu0 0.0
        %v1225 = vand.u32 %v420, 4294901760
        %1226 = vmatmul.mubr.f32.gmra.mrb[0].mxu0 %v1225
        %v1227 = vpop.f32.mrb[0].mxu0
        %v1228 = vadd.f32 %v1103, %v1227
        %v1229 = vpop.f32.mrb[0].mxu0
        %v1230 = vadd.f32 %v1105, %v1229
        %1231 = vmatprep.mubr.f32.mxu0 0.0
        %v1232 = vand.u32 %v423, 4294901760
        %1233 = vmatmul.mubr.f32.gmra.mrb[0].mxu0 %v1232
        %v1234 = vpop.f32.mrb[0].mxu0
        %v1235 = vadd.f32 %v1110, %v1234
        %v1236 = vpop.f32.mrb[0].mxu0
        %v1237 = vadd.f32 %v1112, %v1236
        %1238 = vmatprep.mubr.f32.mxu0 0.0
        %v1239 = vand.u32 %v426, 4294901760
        %1240 = vmatmul.mubr.f32.gmra.mrb[0].mxu0 %v1239
        %v1241 = vpop.f32.mrb[0].mxu0
        %v1242 = vadd.f32 %v1117, %v1241
        %v1243 = vpop.f32.mrb[0].mxu0
        %v1244 = vadd.f32 %v1119, %v1243
        %1245 = vmatprep.mubr.f32.mxu0 0.0
        %v1246 = vand.u32 %v429, 4294901760
        %1247 = vmatmul.mubr.f32.gmra.mrb[0].mxu0 %v1246
        %v1248 = vpop.f32.mrb[0].mxu0
        %v1249 = vadd.f32 %v1124, %v1248
        %v1250 = vpop.f32.mrb[0].mxu0
        %v1251 = vadd.f32 %v1126, %v1250
        %1252 = vmatprep.mubr.f32.mxu0 0.0
        %v1253 = vand.u32 %v432, 4294901760
        %1254 = vmatmul.mubr.f32.gmra.mrb[0].mxu0 %v1253
        %v1255 = vpop.f32.mrb[0].mxu0
        %v1256 = vadd.f32 %v1131, %v1255
        %v1257 = vpop.f32.mrb[0].mxu0
        %v1258 = vadd.f32 %v1133, %v1257
        %1259 = vmatprep.mubr.f32.mxu0 0.0
        %v1260 = vand.u32 %v435, 4294901760
        %1261 = vmatmul.mubr.f32.gmra.mrb[0].mxu0 %v1260
        %v1262 = vpop.f32.mrb[0].mxu0
        %v1263 = vadd.f32 %v1138, %v1262
        %v1264 = vpop.f32.mrb[0].mxu0
        %v1265 = vadd.f32 %v1140, %v1264
        %1266 = vmatprep.mubr.f32.mxu0 0.0
        %v1267 = vand.u32 %v438, 4294901760
        %1268 = vmatmul.mubr.f32.gmra.mrb[0].mxu0 %v1267
        %v1269 = vpop.f32.mrb[0].mxu0
        %v1270 = vadd.f32 %v1145, %v1269
        %v1271 = vpop.f32.mrb[0].mxu0
        %v1272 = vadd.f32 %v1147, %v1271
        %1273 = vdwg.mxu0
        %v1274 = vmax.f32 %v1221, 0.0
        %v1275 = vmax.f32 %v1223, 0.0
        %v1276 = vmax.f32 %v1228, 0.0
        %v1277 = vmax.f32 %v1230, 0.0
        %v1278 = vmax.f32 %v1235, 0.0
        %v1279 = vmax.f32 %v1237, 0.0
        %v1280 = vmax.f32 %v1242, 0.0
        %v1281 = vmax.f32 %v1244, 0.0
        %v1282 = vmax.f32 %v1249, 0.0
        %v1283 = vmax.f32 %v1251, 0.0
        %v1284 = vmax.f32 %v1256, 0.0
        %v1285 = vmax.f32 %v1258, 0.0
        %v1286 = vmax.f32 %v1263, 0.0
        %v1287 = vmax.f32 %v1265, 0.0
        %v1288 = vmax.f32 %v1270, 0.0
        %v1289 = vmax.f32 %v1272, 0.0
        %v1290 = vld [vmem:[%s3] sm:$0xff]
        %v1291 = vld [vmem:[%s3 + $0x8] sm:$0xff]
        %v1292 = vld [vmem:[%s3 + $0x10] sm:$0xff]
        %v1293 = vld [vmem:[%s3 + $0x18] sm:$0xff]
        %v1294 = vld [vmem:[%s3 + $0x20] sm:$0xff]
        %v1295 = vld [vmem:[%s3 + $0x28] sm:$0xff]
        %v1296 = vld [vmem:[%s3 + $0x30] sm:$0xff]
        %v1297 = vld [vmem:[%s3 + $0x38] sm:$0xff]
        %v1298 = vld [vmem:[%s4] sm:$0xff]
        %v1299 = vld [vmem:[%s4 + $0x8] sm:$0xff]
        %v1300 = vld [vmem:[%s4 + $0x10] sm:$0xff]
        %v1301 = vld [vmem:[%s4 + $0x18] sm:$0xff]
        %v1302 = vld [vmem:[%s4 + $0x20] sm:$0xff]
        %v1303 = vld [vmem:[%s4 + $0x28] sm:$0xff]
        %v1304 = vld [vmem:[%s4 + $0x30] sm:$0xff]
        %v1305 = vld [vmem:[%s4 + $0x38] sm:$0xff]
        %1307 = vset.pattern.permute.xlu0 0
        %1308 = vperm.xlu0 %1307, %v1298
        %v1309 = vpop.permute.xlu0 %1308
        %1312 = vset.pattern.permute.xlu0 0
        %1313 = vperm.xlu0 %1312, %v1299
        %v1314 = vpop.permute.xlu0 %1313
        %1317 = vset.pattern.permute.xlu0 0
        %1318 = vperm.xlu0 %1317, %v1300
        %v1319 = vpop.permute.xlu0 %1318
        %1322 = vset.pattern.permute.xlu0 0
        %1323 = vperm.xlu0 %1322, %v1301
        %v1324 = vpop.permute.xlu0 %1323
        %1327 = vset.pattern.permute.xlu0 0
        %1328 = vperm.xlu0 %1327, %v1302
        %v1329 = vpop.permute.xlu0 %1328
        %1332 = vset.pattern.permute.xlu0 0
        %1333 = vperm.xlu0 %1332, %v1303
        %v1334 = vpop.permute.xlu0 %1333
        %1337 = vset.pattern.permute.xlu0 0
        %1338 = vperm.xlu0 %1337, %v1304
        %v1339 = vpop.permute.xlu0 %1338
        %1342 = vset.pattern.permute.xlu0 0
        %1343 = vperm.xlu0 %1342, %v1305
        %v1344 = vpop.permute.xlu0 %1343
        %vm1346 = vcmask 523264
        %v1348 = vsel %vm1346, %v1290, 0
        %v1351 = vsel %vm1346, %v1291, 0
        %v1354 = vsel %vm1346, %v1292, 0
        %v1357 = vsel %vm1346, %v1293, 0
        %v1360 = vsel %vm1346, %v1294, 0
        %v1363 = vsel %vm1346, %v1295, 0
        %v1366 = vsel %vm1346, %v1296, 0
        %v1369 = vsel %vm1346, %v1297, 0
        %v1371 = vand.u32 %v1275, 4294901760
        %1372 = vmatprep.subr.mxu0 %v1371
        %v1373 = vand.u32 %v1274, 4294901760
        %1374 = vmatpush1.msra.mxu0 %v1373
        %v1375 = vand.u32 %v1277, 4294901760
        %1376 = vmatprep.subr.mxu0 %v1375
        %v1377 = vand.u32 %v1276, 4294901760
        %1378 = vmatpush1.msra.mxu0 %v1377
        %v1379 = vand.u32 %v1279, 4294901760
        %1380 = vmatprep.subr.mxu0 %v1379
        %v1381 = vand.u32 %v1278, 4294901760
        %1382 = vmatpush1.msra.mxu0 %v1381
        %v1383 = vand.u32 %v1281, 4294901760
        %1384 = vmatprep.subr.mxu0 %v1383
        %v1385 = vand.u32 %v1280, 4294901760
        %1386 = vmatpush1.msra.mxu0 %v1385
        %v1387 = vand.u32 %v1283, 4294901760
        %1388 = vmatprep.subr.mxu0 %v1387
        %v1389 = vand.u32 %v1282, 4294901760
        %1390 = vmatpush1.msra.mxu0 %v1389
        %v1391 = vand.u32 %v1285, 4294901760
        %1392 = vmatprep.subr.mxu0 %v1391
        %v1393 = vand.u32 %v1284, 4294901760
        %1394 = vmatpush1.msra.mxu0 %v1393
        %v1395 = vand.u32 %v1287, 4294901760
        %1396 = vmatprep.subr.mxu0 %v1395
        %v1397 = vand.u32 %v1286, 4294901760
        %1398 = vmatpush1.msra.mxu0 %v1397
        %v1399 = vand.u32 %v1289, 4294901760
        %1400 = vmatprep.subr.mxu0 %v1399
        %v1401 = vand.u32 %v1288, 4294901760
        %1402 = vmatpush1.msra.mxu0 %v1401
        %1403 = vmatprep.subr.mxu0 0.0
        %1404 = vmatpush1.msra.mxu0 0.0
        %1405 = vmatprep.subr.mxu0 0.0
        %1406 = vmatpush1.msra.mxu0 0.0
        %1407 = vmatprep.subr.mxu0 0.0
        %1408 = vmatpush1.msra.mxu0 0.0
        %1409 = vmatprep.subr.mxu0 0.0
        %1410 = vmatpush1.msra.mxu0 0.0
        %1411 = vmatprep.subr.mxu0 0.0
        %1412 = vmatpush1.msra.mxu0 0.0
        %1413 = vmatprep.subr.mxu0 0.0
        %1414 = vmatpush1.msra.mxu0 0.0
        %1415 = vmatprep.subr.mxu0 0.0
        %1416 = vmatpush1.msra.mxu0 0.0
        %1417 = vmatprep.subr.mxu0 0.0
        %1418 = vmatpush1.msra.mxu0 0.0
        %1419 = vmatprep.subr.mxu0 0.0
        %1420 = vmatpush1.msra.mxu0 0.0
        %1421 = vmatprep.subr.mxu0 0.0
        %1422 = vmatpush1.msra.mxu0 0.0
        %1423 = vmatprep.subr.mxu0 0.0
        %1424 = vmatpush1.msra.mxu0 0.0
        %1425 = vmatprep.subr.mxu0 0.0
        %1426 = vmatpush1.msra.mxu0 0.0
        %1427 = vmatprep.subr.mxu0 0.0
        %1428 = vmatpush1.msra.mxu0 0.0
        %1429 = vmatprep.subr.mxu0 0.0
        %1430 = vmatpush1.msra.mxu0 0.0
        %1431 = vmatprep.subr.mxu0 0.0
        %1432 = vmatpush1.msra.mxu0 0.0
        %1433 = vmatprep.subr.mxu0 0.0
        %1434 = vmatpush1.msra.mxu0 0.0
        %1435 = vmatprep.subr.mxu0 0.0
        %1436 = vmatpush1.msra.mxu0 0.0
        %1437 = vmatprep.subr.mxu0 0.0
        %1438 = vmatpush1.msra.mxu0 0.0
        %1439 = vmatprep.subr.mxu0 0.0
        %1440 = vmatpush1.msra.mxu0 0.0
        %1441 = vmatprep.subr.mxu0 0.0
        %1442 = vmatpush1.msra.mxu0 0.0
        %1443 = vmatprep.subr.mxu0 0.0
        %1444 = vmatpush1.msra.mxu0 0.0
        %1445 = vmatprep.subr.mxu0 0.0
        %1446 = vmatpush1.msra.mxu0 0.0
        %1447 = vmatprep.subr.mxu0 0.0
        %1448 = vmatpush1.msra.mxu0 0.0
        %1449 = vmatprep.subr.mxu0 0.0
        %1450 = vmatpush1.msra.mxu0 0.0
        %1451 = vmatprep.mubr.f32.mxu0 0.0
        %v1452 = vand.u32 %v1348, 4294901760
        %v1453 = vsub.f32 %v1348, %v1452
        %v1454 = vand.u32 %v1453, 4294901760
        %v1455 = vsub.f32 %v1453, %v1454
        %v1456 = vand.u32 %v1455, 4294901760
        %1457 = vmatmul.mubr.f32.gmra.mrb[0].mxu0 %v1456
        %v1458 = vpop.f32.mrb[0].mxu0
        %v1459 = vadd.f32 %v1309, %v1458
        %v1460 = vpop.f32.mrb[0].mxu0
        %v1461 = vadd.f32 %v1309, %v1460
        %1462 = vmatprep.mubr.f32.mxu0 0.0
        %v1463 = vand.u32 %v1351, 4294901760
        %v1464 = vsub.f32 %v1351, %v1463
        %v1465 = vand.u32 %v1464, 4294901760
        %v1466 = vsub.f32 %v1464, %v1465
        %v1467 = vand.u32 %v1466, 4294901760
        %1468 = vmatmul.mubr.f32.gmra.mrb[0].mxu0 %v1467
        %v1469 = vpop.f32.mrb[0].mxu0
        %v1470 = vadd.f32 %v1314, %v1469
        %v1471 = vpop.f32.mrb[0].mxu0
        %v1472 = vadd.f32 %v1314, %v1471
        %1473 = vmatprep.mubr.f32.mxu0 0.0
        %v1474 = vand.u32 %v1354, 4294901760
        %v1475 = vsub.f32 %v1354, %v1474
        %v1476 = vand.u32 %v1475, 4294901760
        %v1477 = vsub.f32 %v1475, %v1476
        %v1478 = vand.u32 %v1477, 4294901760
        %1479 = vmatmul.mubr.f32.gmra.mrb[0].mxu0 %v1478
        %v1480 = vpop.f32.mrb[0].mxu0
        %v1481 = vadd.f32 %v1319, %v1480
        %v1482 = vpop.f32.mrb[0].mxu0
        %v1483 = vadd.f32 %v1319, %v1482
        %1484 = vmatprep.mubr.f32.mxu0 0.0
        %v1485 = vand.u32 %v1357, 4294901760
        %v1486 = vsub.f32 %v1357, %v1485
        %v1487 = vand.u32 %v1486, 4294901760
        %v1488 = vsub.f32 %v1486, %v1487
        %v1489 = vand.u32 %v1488, 4294901760
        %1490 = vmatmul.mubr.f32.gmra.mrb[0].mxu0 %v1489
        %v1491 = vpop.f32.mrb[0].mxu0
        %v1492 = vadd.f32 %v1324, %v1491
        %v1493 = vpop.f32.mrb[0].mxu0
        %v1494 = vadd.f32 %v1324, %v1493
        %1495 = vmatprep.mubr.f32.mxu0 0.0
        %v1496 = vand.u32 %v1360, 4294901760
        %v1497 = vsub.f32 %v1360, %v1496
        %v1498 = vand.u32 %v1497, 4294901760
        %v1499 = vsub.f32 %v1497, %v1498
        %v1500 = vand.u32 %v1499, 4294901760
        %1501 = vmatmul.mubr.f32.gmra.mrb[0].mxu0 %v1500
        %v1502 = vpop.f32.mrb[0].mxu0
        %v1503 = vadd.f32 %v1329, %v1502
        %v1504 = vpop.f32.mrb[0].mxu0
        %v1505 = vadd.f32 %v1329, %v1504
        %1506 = vmatprep.mubr.f32.mxu0 0.0
        %v1507 = vand.u32 %v1363, 4294901760
        %v1508 = vsub.f32 %v1363, %v1507
        %v1509 = vand.u32 %v1508, 4294901760
        %v1510 = vsub.f32 %v1508, %v1509
        %v1511 = vand.u32 %v1510, 4294901760
        %1512 = vmatmul.mubr.f32.gmra.mrb[0].mxu0 %v1511
        %v1513 = vpop.f32.mrb[0].mxu0
        %v1514 = vadd.f32 %v1334, %v1513
        %v1515 = vpop.f32.mrb[0].mxu0
        %v1516 = vadd.f32 %v1334, %v1515
        %1517 = vmatprep.mubr.f32.mxu0 0.0
        %v1518 = vand.u32 %v1366, 4294901760
        %v1519 = vsub.f32 %v1366, %v1518
        %v1520 = vand.u32 %v1519, 4294901760
        %v1521 = vsub.f32 %v1519, %v1520
        %v1522 = vand.u32 %v1521, 4294901760
        %1523 = vmatmul.mubr.f32.gmra.mrb[0].mxu0 %v1522
        %v1524 = vpop.f32.mrb[0].mxu0
        %v1525 = vadd.f32 %v1339, %v1524
        %v1526 = vpop.f32.mrb[0].mxu0
        %v1527 = vadd.f32 %v1339, %v1526
        %1528 = vmatprep.mubr.f32.mxu0 0.0
        %v1529 = vand.u32 %v1369, 4294901760
        %v1530 = vsub.f32 %v1369, %v1529
        %v1531 = vand.u32 %v1530, 4294901760
        %v1532 = vsub.f32 %v1530, %v1531
        %v1533 = vand.u32 %v1532, 4294901760
        %1534 = vmatmul.mubr.f32.gmra.mrb[0].mxu0 %v1533
        %v1535 = vpop.f32.mrb[0].mxu0
        %v1536 = vadd.f32 %v1344, %v1535
        %v1537 = vpop.f32.mrb[0].mxu0
        %v1538 = vadd.f32 %v1344, %v1537
        %1539 = vdwg.mxu0
        %v1540 = vand.u32 %v1275, 4294901760
        %v1541 = vsub.f32 %v1275, %v1540
        %v1542 = vand.u32 %v1541, 4294901760
        %v1543 = vsub.f32 %v1541, %v1542
        %v1544 = vand.u32 %v1543, 4294901760
        %1545 = vmatprep.subr.mxu0 %v1544
        %v1546 = vand.u32 %v1274, 4294901760
        %v1547 = vsub.f32 %v1274, %v1546
        %v1548 = vand.u32 %v1547, 4294901760
        %v1549 = vsub.f32 %v1547, %v1548
        %v1550 = vand.u32 %v1549, 4294901760
        %1551 = vmatpush1.msra.mxu0 %v1550
        %v1552 = vand.u32 %v1277, 4294901760
        %v1553 = vsub.f32 %v1277, %v1552
        %v1554 = vand.u32 %v1553, 4294901760
        %v1555 = vsub.f32 %v1553, %v1554
        %v1556 = vand.u32 %v1555, 4294901760
        %1557 = vmatprep.subr.mxu0 %v1556
        %v1558 = vand.u32 %v1276, 4294901760
        %v1559 = vsub.f32 %v1276, %v1558
        %v1560 = vand.u32 %v1559, 4294901760
        %v1561 = vsub.f32 %v1559, %v1560
        %v1562 = vand.u32 %v1561, 4294901760
        %1563 = vmatpush1.msra.mxu0 %v1562
        %v1564 = vand.u32 %v1279, 4294901760
        %v1565 = vsub.f32 %v1279, %v1564
        %v1566 = vand.u32 %v1565, 4294901760
        %v1567 = vsub.f32 %v1565, %v1566
        %v1568 = vand.u32 %v1567, 4294901760
        %1569 = vmatprep.subr.mxu0 %v1568
        %v1570 = vand.u32 %v1278, 4294901760
        %v1571 = vsub.f32 %v1278, %v1570
        %v1572 = vand.u32 %v1571, 4294901760
        %v1573 = vsub.f32 %v1571, %v1572
        %v1574 = vand.u32 %v1573, 4294901760
        %1575 = vmatpush1.msra.mxu0 %v1574
        %v1576 = vand.u32 %v1281, 4294901760
        %v1577 = vsub.f32 %v1281, %v1576
        %v1578 = vand.u32 %v1577, 4294901760
        %v1579 = vsub.f32 %v1577, %v1578
        %v1580 = vand.u32 %v1579, 4294901760
        %1581 = vmatprep.subr.mxu0 %v1580
        %v1582 = vand.u32 %v1280, 4294901760
        %v1583 = vsub.f32 %v1280, %v1582
        %v1584 = vand.u32 %v1583, 4294901760
        %v1585 = vsub.f32 %v1583, %v1584
        %v1586 = vand.u32 %v1585, 4294901760
        %1587 = vmatpush1.msra.mxu0 %v1586
        %v1588 = vand.u32 %v1283, 4294901760
        %v1589 = vsub.f32 %v1283, %v1588
        %v1590 = vand.u32 %v1589, 4294901760
        %v1591 = vsub.f32 %v1589, %v1590
        %v1592 = vand.u32 %v1591, 4294901760
        %1593 = vmatprep.subr.mxu0 %v1592
        %v1594 = vand.u32 %v1282, 4294901760
        %v1595 = vsub.f32 %v1282, %v1594
        %v1596 = vand.u32 %v1595, 4294901760
        %v1597 = vsub.f32 %v1595, %v1596
        %v1598 = vand.u32 %v1597, 4294901760
        %1599 = vmatpush1.msra.mxu0 %v1598
        %v1600 = vand.u32 %v1285, 4294901760
        %v1601 = vsub.f32 %v1285, %v1600
        %v1602 = vand.u32 %v1601, 4294901760
        %v1603 = vsub.f32 %v1601, %v1602
        %v1604 = vand.u32 %v1603, 4294901760
        %1605 = vmatprep.subr.mxu0 %v1604
        %v1606 = vand.u32 %v1284, 4294901760
        %v1607 = vsub.f32 %v1284, %v1606
        %v1608 = vand.u32 %v1607, 4294901760
        %v1609 = vsub.f32 %v1607, %v1608
        %v1610 = vand.u32 %v1609, 4294901760
        %1611 = vmatpush1.msra.mxu0 %v1610
        %v1612 = vand.u32 %v1287, 4294901760
        %v1613 = vsub.f32 %v1287, %v1612
        %v1614 = vand.u32 %v1613, 4294901760
        %v1615 = vsub.f32 %v1613, %v1614
        %v1616 = vand.u32 %v1615, 4294901760
        %1617 = vmatprep.subr.mxu0 %v1616
        %v1618 = vand.u32 %v1286, 4294901760
        %v1619 = vsub.f32 %v1286, %v1618
        %v1620 = vand.u32 %v1619, 4294901760
        %v1621 = vsub.f32 %v1619, %v1620
        %v1622 = vand.u32 %v1621, 4294901760
        %1623 = vmatpush1.msra.mxu0 %v1622
        %v1624 = vand.u32 %v1289, 4294901760
        %v1625 = vsub.f32 %v1289, %v1624
        %v1626 = vand.u32 %v1625, 4294901760
        %v1627 = vsub.f32 %v1625, %v1626
        %v1628 = vand.u32 %v1627, 4294901760
        %1629 = vmatprep.subr.mxu0 %v1628
        %v1630 = vand.u32 %v1288, 4294901760
        %v1631 = vsub.f32 %v1288, %v1630
        %v1632 = vand.u32 %v1631, 4294901760
        %v1633 = vsub.f32 %v1631, %v1632
        %v1634 = vand.u32 %v1633, 4294901760
        %1635 = vmatpush1.msra.mxu0 %v1634
        %1636 = vmatprep.subr.mxu0 0.0
        %1637 = vmatpush1.msra.mxu0 0.0
        %1638 = vmatprep.subr.mxu0 0.0
        %1639 = vmatpush1.msra.mxu0 0.0
        %1640 = vmatprep.subr.mxu0 0.0
        %1641 = vmatpush1.msra.mxu0 0.0
        %1642 = vmatprep.subr.mxu0 0.0
        %1643 = vmatpush1.msra.mxu0 0.0
        %1644 = vmatprep.subr.mxu0 0.0
        %1645 = vmatpush1.msra.mxu0 0.0
        %1646 = vmatprep.subr.mxu0 0.0
        %1647 = vmatpush1.msra.mxu0 0.0
        %1648 = vmatprep.subr.mxu0 0.0
        %1649 = vmatpush1.msra.mxu0 0.0
        %1650 = vmatprep.subr.mxu0 0.0
        %1651 = vmatpush1.msra.mxu0 0.0
        %1652 = vmatprep.subr.mxu0 0.0
        %1653 = vmatpush1.msra.mxu0 0.0
        %1654 = vmatprep.subr.mxu0 0.0
        %1655 = vmatpush1.msra.mxu0 0.0
        %1656 = vmatprep.subr.mxu0 0.0
        %1657 = vmatpush1.msra.mxu0 0.0
        %1658 = vmatprep.subr.mxu0 0.0
        %1659 = vmatpush1.msra.mxu0 0.0
        %1660 = vmatprep.subr.mxu0 0.0
        %1661 = vmatpush1.msra.mxu0 0.0
        %1662 = vmatprep.subr.mxu0 0.0
        %1663 = vmatpush1.msra.mxu0 0.0
        %1664 = vmatprep.subr.mxu0 0.0
        %1665 = vmatpush1.msra.mxu0 0.0
        %1666 = vmatprep.subr.mxu0 0.0
        %1667 = vmatpush1.msra.mxu0 0.0
        %1668 = vmatprep.subr.mxu0 0.0
        %1669 = vmatpush1.msra.mxu0 0.0
        %1670 = vmatprep.subr.mxu0 0.0
        %1671 = vmatpush1.msra.mxu0 0.0
        %1672 = vmatprep.subr.mxu0 0.0
        %1673 = vmatpush1.msra.mxu0 0.0
        %1674 = vmatprep.subr.mxu0 0.0
        %1675 = vmatpush1.msra.mxu0 0.0
        %1676 = vmatprep.subr.mxu0 0.0
        %1677 = vmatpush1.msra.mxu0 0.0
        %1678 = vmatprep.subr.mxu0 0.0
        %1679 = vmatpush1.msra.mxu0 0.0
        %1680 = vmatprep.subr.mxu0 0.0
        %1681 = vmatpush1.msra.mxu0 0.0
        %1682 = vmatprep.subr.mxu0 0.0
        %1683 = vmatpush1.msra.mxu0 0.0
        %1684 = vmatprep.mubr.f32.mxu0 0.0
        %v1685 = vand.u32 %v1348, 4294901760
        %1686 = vmatmul.mubr.f32.gmra.mrb[0].mxu0 %v1685
        %v1687 = vpop.f32.mrb[0].mxu0
        %v1688 = vadd.f32 %v1459, %v1687
        %v1689 = vpop.f32.mrb[0].mxu0
        %v1690 = vadd.f32 %v1461, %v1689
        %1691 = vmatprep.mubr.f32.mxu0 0.0
        %v1692 = vand.u32 %v1351, 4294901760
        %1693 = vmatmul.mubr.f32.gmra.mrb[0].mxu0 %v1692
        %v1694 = vpop.f32.mrb[0].mxu0
        %v1695 = vadd.f32 %v1470, %v1694
        %v1696 = vpop.f32.mrb[0].mxu0
        %v1697 = vadd.f32 %v1472, %v1696
        %1698 = vmatprep.mubr.f32.mxu0 0.0
        %v1699 = vand.u32 %v1354, 4294901760
        %1700 = vmatmul.mubr.f32.gmra.mrb[0].mxu0 %v1699
        %v1701 = vpop.f32.mrb[0].mxu0
        %v1702 = vadd.f32 %v1481, %v1701
        %v1703 = vpop.f32.mrb[0].mxu0
        %v1704 = vadd.f32 %v1483, %v1703
        %1705 = vmatprep.mubr.f32.mxu0 0.0
        %v1706 = vand.u32 %v1357, 4294901760
        %1707 = vmatmul.mubr.f32.gmra.mrb[0].mxu0 %v1706
        %v1708 = vpop.f32.mrb[0].mxu0
        %v1709 = vadd.f32 %v1492, %v1708
        %v1710 = vpop.f32.mrb[0].mxu0
        %v1711 = vadd.f32 %v1494, %v1710
        %1712 = vmatprep.mubr.f32.mxu0 0.0
        %v1713 = vand.u32 %v1360, 4294901760
        %1714 = vmatmul.mubr.f32.gmra.mrb[0].mxu0 %v1713
        %v1715 = vpop.f32.mrb[0].mxu0
        %v1716 = vadd.f32 %v1503, %v1715
        %v1717 = vpop.f32.mrb[0].mxu0
        %v1718 = vadd.f32 %v1505, %v1717
        %1719 = vmatprep.mubr.f32.mxu0 0.0
        %v1720 = vand.u32 %v1363, 4294901760
        %1721 = vmatmul.mubr.f32.gmra.mrb[0].mxu0 %v1720
        %v1722 = vpop.f32.mrb[0].mxu0
        %v1723 = vadd.f32 %v1514, %v1722
        %v1724 = vpop.f32.mrb[0].mxu0
        %v1725 = vadd.f32 %v1516, %v1724
        %1726 = vmatprep.mubr.f32.mxu0 0.0
        %v1727 = vand.u32 %v1366, 4294901760
        %1728 = vmatmul.mubr.f32.gmra.mrb[0].mxu0 %v1727
        %v1729 = vpop.f32.mrb[0].mxu0
        %v1730 = vadd.f32 %v1525, %v1729
        %v1731 = vpop.f32.mrb[0].mxu0
        %v1732 = vadd.f32 %v1527, %v1731
        %1733 = vmatprep.mubr.f32.mxu0 0.0
        %v1734 = vand.u32 %v1369, 4294901760
        %1735 = vmatmul.mubr.f32.gmra.mrb[0].mxu0 %v1734
        %v1736 = vpop.f32.mrb[0].mxu0
        %v1737 = vadd.f32 %v1536, %v1736
        %v1738 = vpop.f32.mrb[0].mxu0
        %v1739 = vadd.f32 %v1538, %v1738
        %1740 = vdwg.mxu0
        %v1741 = vand.u32 %v1275, 4294901760
        %v1742 = vsub.f32 %v1275, %v1741
        %1743 = vmatprep.subr.mxu0 %v1742
        %v1744 = vand.u32 %v1274, 4294901760
        %v1745 = vsub.f32 %v1274, %v1744
        %1746 = vmatpush1.msra.mxu0 %v1745
        %v1747 = vand.u32 %v1277, 4294901760
        %v1748 = vsub.f32 %v1277, %v1747
        %1749 = vmatprep.subr.mxu0 %v1748
        %v1750 = vand.u32 %v1276, 4294901760
        %v1751 = vsub.f32 %v1276, %v1750
        %1752 = vmatpush1.msra.mxu0 %v1751
        %v1753 = vand.u32 %v1279, 4294901760
        %v1754 = vsub.f32 %v1279, %v1753
        %1755 = vmatprep.subr.mxu0 %v1754
        %v1756 = vand.u32 %v1278, 4294901760
        %v1757 = vsub.f32 %v1278, %v1756
        %1758 = vmatpush1.msra.mxu0 %v1757
        %v1759 = vand.u32 %v1281, 4294901760
        %v1760 = vsub.f32 %v1281, %v1759
        %1761 = vmatprep.subr.mxu0 %v1760
        %v1762 = vand.u32 %v1280, 4294901760
        %v1763 = vsub.f32 %v1280, %v1762
        %1764 = vmatpush1.msra.mxu0 %v1763
        %v1765 = vand.u32 %v1283, 4294901760
        %v1766 = vsub.f32 %v1283, %v1765
        %1767 = vmatprep.subr.mxu0 %v1766
        %v1768 = vand.u32 %v1282, 4294901760
        %v1769 = vsub.f32 %v1282, %v1768
        %1770 = vmatpush1.msra.mxu0 %v1769
        %v1771 = vand.u32 %v1285, 4294901760
        %v1772 = vsub.f32 %v1285, %v1771
        %1773 = vmatprep.subr.mxu0 %v1772
        %v1774 = vand.u32 %v1284, 4294901760
        %v1775 = vsub.f32 %v1284, %v1774
        %1776 = vmatpush1.msra.mxu0 %v1775
        %v1777 = vand.u32 %v1287, 4294901760
        %v1778 = vsub.f32 %v1287, %v1777
        %1779 = vmatprep.subr.mxu0 %v1778
        %v1780 = vand.u32 %v1286, 4294901760
        %v1781 = vsub.f32 %v1286, %v1780
        %1782 = vmatpush1.msra.mxu0 %v1781
        %v1783 = vand.u32 %v1289, 4294901760
        %v1784 = vsub.f32 %v1289, %v1783
        %1785 = vmatprep.subr.mxu0 %v1784
        %v1786 = vand.u32 %v1288, 4294901760
        %v1787 = vsub.f32 %v1288, %v1786
        %1788 = vmatpush1.msra.mxu0 %v1787
        %1789 = vmatprep.subr.mxu0 0.0
        %1790 = vmatpush1.msra.mxu0 0.0
        %1791 = vmatprep.subr.mxu0 0.0
        %1792 = vmatpush1.msra.mxu0 0.0
        %1793 = vmatprep.subr.mxu0 0.0
        %1794 = vmatpush1.msra.mxu0 0.0
        %1795 = vmatprep.subr.mxu0 0.0
        %1796 = vmatpush1.msra.mxu0 0.0
        %1797 = vmatprep.subr.mxu0 0.0
        %1798 = vmatpush1.msra.mxu0 0.0
        %1799 = vmatprep.subr.mxu0 0.0
        %1800 = vmatpush1.msra.mxu0 0.0
        %1801 = vmatprep.subr.mxu0 0.0
        %1802 = vmatpush1.msra.mxu0 0.0
        %1803 = vmatprep.subr.mxu0 0.0
        %1804 = vmatpush1.msra.mxu0 0.0
        %1805 = vmatprep.subr.mxu0 0.0
        %1806 = vmatpush1.msra.mxu0 0.0
        %1807 = vmatprep.subr.mxu0 0.0
        %1808 = vmatpush1.msra.mxu0 0.0
        %1809 = vmatprep.subr.mxu0 0.0
        %1810 = vmatpush1.msra.mxu0 0.0
        %1811 = vmatprep.subr.mxu0 0.0
        %1812 = vmatpush1.msra.mxu0 0.0
        %1813 = vmatprep.subr.mxu0 0.0
        %1814 = vmatpush1.msra.mxu0 0.0
        %1815 = vmatprep.subr.mxu0 0.0
        %1816 = vmatpush1.msra.mxu0 0.0
        %1817 = vmatprep.subr.mxu0 0.0
        %1818 = vmatpush1.msra.mxu0 0.0
        %1819 = vmatprep.subr.mxu0 0.0
        %1820 = vmatpush1.msra.mxu0 0.0
        %1821 = vmatprep.subr.mxu0 0.0
        %1822 = vmatpush1.msra.mxu0 0.0
        %1823 = vmatprep.subr.mxu0 0.0
        %1824 = vmatpush1.msra.mxu0 0.0
        %1825 = vmatprep.subr.mxu0 0.0
        %1826 = vmatpush1.msra.mxu0 0.0
        %1827 = vmatprep.subr.mxu0 0.0
        %1828 = vmatpush1.msra.mxu0 0.0
        %1829 = vmatprep.subr.mxu0 0.0
        %1830 = vmatpush1.msra.mxu0 0.0
        %1831 = vmatprep.subr.mxu0 0.0
        %1832 = vmatpush1.msra.mxu0 0.0
        %1833 = vmatprep.subr.mxu0 0.0
        %1834 = vmatpush1.msra.mxu0 0.0
        %1835 = vmatprep.subr.mxu0 0.0
        %1836 = vmatpush1.msra.mxu0 0.0
        %1837 = vmatprep.mubr.f32.mxu0 0.0
        %v1838 = vand.u32 %v1348, 4294901760
        %v1839 = vsub.f32 %v1348, %v1838
        %1840 = vmatmul.mubr.f32.gmra.mrb[0].mxu0 %v1839
        %v1841 = vpop.f32.mrb[0].mxu0
        %v1842 = vadd.f32 %v1688, %v1841
        %v1843 = vpop.f32.mrb[0].mxu0
        %v1844 = vadd.f32 %v1690, %v1843
        %1845 = vmatprep.mubr.f32.mxu0 0.0
        %v1846 = vand.u32 %v1351, 4294901760
        %v1847 = vsub.f32 %v1351, %v1846
        %1848 = vmatmul.mubr.f32.gmra.mrb[0].mxu0 %v1847
        %v1849 = vpop.f32.mrb[0].mxu0
        %v1850 = vadd.f32 %v1695, %v1849
        %v1851 = vpop.f32.mrb[0].mxu0
        %v1852 = vadd.f32 %v1697, %v1851
        %1853 = vmatprep.mubr.f32.mxu0 0.0
        %v1854 = vand.u32 %v1354, 4294901760
        %v1855 = vsub.f32 %v1354, %v1854
        %1856 = vmatmul.mubr.f32.gmra.mrb[0].mxu0 %v1855
        %v1857 = vpop.f32.mrb[0].mxu0
        %v1858 = vadd.f32 %v1702, %v1857
        %v1859 = vpop.f32.mrb[0].mxu0
        %v1860 = vadd.f32 %v1704, %v1859
        %1861 = vmatprep.mubr.f32.mxu0 0.0
        %v1862 = vand.u32 %v1357, 4294901760
        %v1863 = vsub.f32 %v1357, %v1862
        %1864 = vmatmul.mubr.f32.gmra.mrb[0].mxu0 %v1863
        %v1865 = vpop.f32.mrb[0].mxu0
        %v1866 = vadd.f32 %v1709, %v1865
        %v1867 = vpop.f32.mrb[0].mxu0
        %v1868 = vadd.f32 %v1711, %v1867
        %1869 = vmatprep.mubr.f32.mxu0 0.0
        %v1870 = vand.u32 %v1360, 4294901760
        %v1871 = vsub.f32 %v1360, %v1870
        %1872 = vmatmul.mubr.f32.gmra.mrb[0].mxu0 %v1871
        %v1873 = vpop.f32.mrb[0].mxu0
        %v1874 = vadd.f32 %v1716, %v1873
        %v1875 = vpop.f32.mrb[0].mxu0
        %v1876 = vadd.f32 %v1718, %v1875
        %1877 = vmatprep.mubr.f32.mxu0 0.0
        %v1878 = vand.u32 %v1363, 4294901760
        %v1879 = vsub.f32 %v1363, %v1878
        %1880 = vmatmul.mubr.f32.gmra.mrb[0].mxu0 %v1879
        %v1881 = vpop.f32.mrb[0].mxu0
        %v1882 = vadd.f32 %v1723, %v1881
        %v1883 = vpop.f32.mrb[0].mxu0
        %v1884 = vadd.f32 %v1725, %v1883
        %1885 = vmatprep.mubr.f32.mxu0 0.0
        %v1886 = vand.u32 %v1366, 4294901760
        %v1887 = vsub.f32 %v1366, %v1886
        %1888 = vmatmul.mubr.f32.gmra.mrb[0].mxu0 %v1887
        %v1889 = vpop.f32.mrb[0].mxu0
        %v1890 = vadd.f32 %v1730, %v1889
        %v1891 = vpop.f32.mrb[0].mxu0
        %v1892 = vadd.f32 %v1732, %v1891
        %1893 = vmatprep.mubr.f32.mxu0 0.0
        %v1894 = vand.u32 %v1369, 4294901760
        %v1895 = vsub.f32 %v1369, %v1894
        %1896 = vmatmul.mubr.f32.gmra.mrb[0].mxu0 %v1895
        %v1897 = vpop.f32.mrb[0].mxu0
        %v1898 = vadd.f32 %v1737, %v1897
        %v1899 = vpop.f32.mrb[0].mxu0
        %v1900 = vadd.f32 %v1739, %v1899
        %1901 = vdwg.mxu0
        %v1902 = vand.u32 %v1275, 4294901760
        %1903 = vmatprep.subr.mxu0 %v1902
        %v1904 = vand.u32 %v1274, 4294901760
        %1905 = vmatpush1.msra.mxu0 %v1904
        %v1906 = vand.u32 %v1277, 4294901760
        %1907 = vmatprep.subr.mxu0 %v1906
        %v1908 = vand.u32 %v1276, 4294901760
        %1909 = vmatpush1.msra.mxu0 %v1908
        %v1910 = vand.u32 %v1279, 4294901760
        %1911 = vmatprep.subr.mxu0 %v1910
        %v1912 = vand.u32 %v1278, 4294901760
        %1913 = vmatpush1.msra.mxu0 %v1912
        %v1914 = vand.u32 %v1281, 4294901760
        %1915 = vmatprep.subr.mxu0 %v1914
        %v1916 = vand.u32 %v1280, 4294901760
        %1917 = vmatpush1.msra.mxu0 %v1916
        %v1918 = vand.u32 %v1283, 4294901760
        %1919 = vmatprep.subr.mxu0 %v1918
        %v1920 = vand.u32 %v1282, 4294901760
        %1921 = vmatpush1.msra.mxu0 %v1920
        %v1922 = vand.u32 %v1285, 4294901760
        %1923 = vmatprep.subr.mxu0 %v1922
        %v1924 = vand.u32 %v1284, 4294901760
        %1925 = vmatpush1.msra.mxu0 %v1924
        %v1926 = vand.u32 %v1287, 4294901760
        %1927 = vmatprep.subr.mxu0 %v1926
        %v1928 = vand.u32 %v1286, 4294901760
        %1929 = vmatpush1.msra.mxu0 %v1928
        %v1930 = vand.u32 %v1289, 4294901760
        %1931 = vmatprep.subr.mxu0 %v1930
        %v1932 = vand.u32 %v1288, 4294901760
        %1933 = vmatpush1.msra.mxu0 %v1932
        %1934 = vmatprep.subr.mxu0 0.0
        %1935 = vmatpush1.msra.mxu0 0.0
        %1936 = vmatprep.subr.mxu0 0.0
        %1937 = vmatpush1.msra.mxu0 0.0
        %1938 = vmatprep.subr.mxu0 0.0
        %1939 = vmatpush1.msra.mxu0 0.0
        %1940 = vmatprep.subr.mxu0 0.0
        %1941 = vmatpush1.msra.mxu0 0.0
        %1942 = vmatprep.subr.mxu0 0.0
        %1943 = vmatpush1.msra.mxu0 0.0
        %1944 = vmatprep.subr.mxu0 0.0
        %1945 = vmatpush1.msra.mxu0 0.0
        %1946 = vmatprep.subr.mxu0 0.0
        %1947 = vmatpush1.msra.mxu0 0.0
        %1948 = vmatprep.subr.mxu0 0.0
        %1949 = vmatpush1.msra.mxu0 0.0
        %1950 = vmatprep.subr.mxu0 0.0
        %1951 = vmatpush1.msra.mxu0 0.0
        %1952 = vmatprep.subr.mxu0 0.0
        %1953 = vmatpush1.msra.mxu0 0.0
        %1954 = vmatprep.subr.mxu0 0.0
        %1955 = vmatpush1.msra.mxu0 0.0
        %1956 = vmatprep.subr.mxu0 0.0
        %1957 = vmatpush1.msra.mxu0 0.0
        %1958 = vmatprep.subr.mxu0 0.0
        %1959 = vmatpush1.msra.mxu0 0.0
        %1960 = vmatprep.subr.mxu0 0.0
        %1961 = vmatpush1.msra.mxu0 0.0
        %1962 = vmatprep.subr.mxu0 0.0
        %1963 = vmatpush1.msra.mxu0 0.0
        %1964 = vmatprep.subr.mxu0 0.0
        %1965 = vmatpush1.msra.mxu0 0.0
        %1966 = vmatprep.subr.mxu0 0.0
        %1967 = vmatpush1.msra.mxu0 0.0
        %1968 = vmatprep.subr.mxu0 0.0
        %1969 = vmatpush1.msra.mxu0 0.0
        %1970 = vmatprep.subr.mxu0 0.0
        %1971 = vmatpush1.msra.mxu0 0.0
        %1972 = vmatprep.subr.mxu0 0.0
        %1973 = vmatpush1.msra.mxu0 0.0
        %1974 = vmatprep.subr.mxu0 0.0
        %1975 = vmatpush1.msra.mxu0 0.0
        %1976 = vmatprep.subr.mxu0 0.0
        %1977 = vmatpush1.msra.mxu0 0.0
        %1978 = vmatprep.subr.mxu0 0.0
        %1979 = vmatpush1.msra.mxu0 0.0
        %1980 = vmatprep.subr.mxu0 0.0
        %1981 = vmatpush1.msra.mxu0 0.0
        %1982 = vmatprep.mubr.f32.mxu0 0.0
        %v1983 = vand.u32 %v1348, 4294901760
        %v1984 = vsub.f32 %v1348, %v1983
        %v1985 = vand.u32 %v1984, 4294901760
        %1986 = vmatmul.mubr.f32.gmra.mrb[0].mxu0 %v1985
        %v1987 = vpop.f32.mrb[0].mxu0
        %v1988 = vadd.f32 %v1842, %v1987
        %v1989 = vpop.f32.mrb[0].mxu0
        %v1990 = vadd.f32 %v1844, %v1989
        %1991 = vmatprep.mubr.f32.mxu0 0.0
        %v1992 = vand.u32 %v1351, 4294901760
        %v1993 = vsub.f32 %v1351, %v1992
        %v1994 = vand.u32 %v1993, 4294901760
        %1995 = vmatmul.mubr.f32.gmra.mrb[0].mxu0 %v1994
        %v1996 = vpop.f32.mrb[0].mxu0
        %v1997 = vadd.f32 %v1850, %v1996
        %v1998 = vpop.f32.mrb[0].mxu0
        %v1999 = vadd.f32 %v1852, %v1998
        %2000 = vmatprep.mubr.f32.mxu0 0.0
        %v2001 = vand.u32 %v1354, 4294901760
        %v2002 = vsub.f32 %v1354, %v2001
        %v2003 = vand.u32 %v2002, 4294901760
        %2004 = vmatmul.mubr.f32.gmra.mrb[0].mxu0 %v2003
        %v2005 = vpop.f32.mrb[0].mxu0
        %v2006 = vadd.f32 %v1858, %v2005
        %v2007 = vpop.f32.mrb[0].mxu0
        %v2008 = vadd.f32 %v1860, %v2007
        %2009 = vmatprep.mubr.f32.mxu0 0.0
        %v2010 = vand.u32 %v1357, 4294901760
        %v2011 = vsub.f32 %v1357, %v2010
        %v2012 = vand.u32 %v2011, 4294901760
        %2013 = vmatmul.mubr.f32.gmra.mrb[0].mxu0 %v2012
        %v2014 = vpop.f32.mrb[0].mxu0
        %v2015 = vadd.f32 %v1866, %v2014
        %v2016 = vpop.f32.mrb[0].mxu0
        %v2017 = vadd.f32 %v1868, %v2016
        %2018 = vmatprep.mubr.f32.mxu0 0.0
        %v2019 = vand.u32 %v1360, 4294901760
        %v2020 = vsub.f32 %v1360, %v2019
        %v2021 = vand.u32 %v2020, 4294901760
        %2022 = vmatmul.mubr.f32.gmra.mrb[0].mxu0 %v2021
        %v2023 = vpop.f32.mrb[0].mxu0
        %v2024 = vadd.f32 %v1874, %v2023
        %v2025 = vpop.f32.mrb[0].mxu0
        %v2026 = vadd.f32 %v1876, %v2025
        %2027 = vmatprep.mubr.f32.mxu0 0.0
        %v2028 = vand.u32 %v1363, 4294901760
        %v2029 = vsub.f32 %v1363, %v2028
        %v2030 = vand.u32 %v2029, 4294901760
        %2031 = vmatmul.mubr.f32.gmra.mrb[0].mxu0 %v2030
        %v2032 = vpop.f32.mrb[0].mxu0
        %v2033 = vadd.f32 %v1882, %v2032
        %v2034 = vpop.f32.mrb[0].mxu0
        %v2035 = vadd.f32 %v1884, %v2034
        %2036 = vmatprep.mubr.f32.mxu0 0.0
        %v2037 = vand.u32 %v1366, 4294901760
        %v2038 = vsub.f32 %v1366, %v2037
        %v2039 = vand.u32 %v2038, 4294901760
        %2040 = vmatmul.mubr.f32.gmra.mrb[0].mxu0 %v2039
        %v2041 = vpop.f32.mrb[0].mxu0
        %v2042 = vadd.f32 %v1890, %v2041
        %v2043 = vpop.f32.mrb[0].mxu0
        %v2044 = vadd.f32 %v1892, %v2043
        %2045 = vmatprep.mubr.f32.mxu0 0.0
        %v2046 = vand.u32 %v1369, 4294901760
        %v2047 = vsub.f32 %v1369, %v2046
        %v2048 = vand.u32 %v2047, 4294901760
        %2049 = vmatmul.mubr.f32.gmra.mrb[0].mxu0 %v2048
        %v2050 = vpop.f32.mrb[0].mxu0
        %v2051 = vadd.f32 %v1898, %v2050
        %v2052 = vpop.f32.mrb[0].mxu0
        %v2053 = vadd.f32 %v1900, %v2052
        %2054 = vdwg.mxu0
        %v2055 = vand.u32 %v1275, 4294901760
        %v2056 = vsub.f32 %v1275, %v2055
        %v2057 = vand.u32 %v2056, 4294901760
        %2058 = vmatprep.subr.mxu0 %v2057
        %v2059 = vand.u32 %v1274, 4294901760
        %v2060 = vsub.f32 %v1274, %v2059
        %v2061 = vand.u32 %v2060, 4294901760
        %2062 = vmatpush1.msra.mxu0 %v2061
        %v2063 = vand.u32 %v1277, 4294901760
        %v2064 = vsub.f32 %v1277, %v2063
        %v2065 = vand.u32 %v2064, 4294901760
        %2066 = vmatprep.subr.mxu0 %v2065
        %v2067 = vand.u32 %v1276, 4294901760
        %v2068 = vsub.f32 %v1276, %v2067
        %v2069 = vand.u32 %v2068, 4294901760
        %2070 = vmatpush1.msra.mxu0 %v2069
        %v2071 = vand.u32 %v1279, 4294901760
        %v2072 = vsub.f32 %v1279, %v2071
        %v2073 = vand.u32 %v2072, 4294901760
        %2074 = vmatprep.subr.mxu0 %v2073
        %v2075 = vand.u32 %v1278, 4294901760
        %v2076 = vsub.f32 %v1278, %v2075
        %v2077 = vand.u32 %v2076, 4294901760
        %2078 = vmatpush1.msra.mxu0 %v2077
        %v2079 = vand.u32 %v1281, 4294901760
        %v2080 = vsub.f32 %v1281, %v2079
        %v2081 = vand.u32 %v2080, 4294901760
        %2082 = vmatprep.subr.mxu0 %v2081
        %v2083 = vand.u32 %v1280, 4294901760
        %v2084 = vsub.f32 %v1280, %v2083
        %v2085 = vand.u32 %v2084, 4294901760
        %2086 = vmatpush1.msra.mxu0 %v2085
        %v2087 = vand.u32 %v1283, 4294901760
        %v2088 = vsub.f32 %v1283, %v2087
        %v2089 = vand.u32 %v2088, 4294901760
        %2090 = vmatprep.subr.mxu0 %v2089
        %v2091 = vand.u32 %v1282, 4294901760
        %v2092 = vsub.f32 %v1282, %v2091
        %v2093 = vand.u32 %v2092, 4294901760
        %2094 = vmatpush1.msra.mxu0 %v2093
        %v2095 = vand.u32 %v1285, 4294901760
        %v2096 = vsub.f32 %v1285, %v2095
        %v2097 = vand.u32 %v2096, 4294901760
        %2098 = vmatprep.subr.mxu0 %v2097
        %v2099 = vand.u32 %v1284, 4294901760
        %v2100 = vsub.f32 %v1284, %v2099
        %v2101 = vand.u32 %v2100, 4294901760
        %2102 = vmatpush1.msra.mxu0 %v2101
        %v2103 = vand.u32 %v1287, 4294901760
        %v2104 = vsub.f32 %v1287, %v2103
        %v2105 = vand.u32 %v2104, 4294901760
        %2106 = vmatprep.subr.mxu0 %v2105
        %v2107 = vand.u32 %v1286, 4294901760
        %v2108 = vsub.f32 %v1286, %v2107
        %v2109 = vand.u32 %v2108, 4294901760
        %2110 = vmatpush1.msra.mxu0 %v2109
        %v2111 = vand.u32 %v1289, 4294901760
        %v2112 = vsub.f32 %v1289, %v2111
        %v2113 = vand.u32 %v2112, 4294901760
        %2114 = vmatprep.subr.mxu0 %v2113
        %v2115 = vand.u32 %v1288, 4294901760
        %v2116 = vsub.f32 %v1288, %v2115
        %v2117 = vand.u32 %v2116, 4294901760
        %2118 = vmatpush1.msra.mxu0 %v2117
        %2119 = vmatprep.subr.mxu0 0.0
        %2120 = vmatpush1.msra.mxu0 0.0
        %2121 = vmatprep.subr.mxu0 0.0
        %2122 = vmatpush1.msra.mxu0 0.0
        %2123 = vmatprep.subr.mxu0 0.0
        %2124 = vmatpush1.msra.mxu0 0.0
        %2125 = vmatprep.subr.mxu0 0.0
        %2126 = vmatpush1.msra.mxu0 0.0
        %2127 = vmatprep.subr.mxu0 0.0
        %2128 = vmatpush1.msra.mxu0 0.0
        %2129 = vmatprep.subr.mxu0 0.0
        %2130 = vmatpush1.msra.mxu0 0.0
        %2131 = vmatprep.subr.mxu0 0.0
        %2132 = vmatpush1.msra.mxu0 0.0
        %2133 = vmatprep.subr.mxu0 0.0
        %2134 = vmatpush1.msra.mxu0 0.0
        %2135 = vmatprep.subr.mxu0 0.0
        %2136 = vmatpush1.msra.mxu0 0.0
        %2137 = vmatprep.subr.mxu0 0.0
        %2138 = vmatpush1.msra.mxu0 0.0
        %2139 = vmatprep.subr.mxu0 0.0
        %2140 = vmatpush1.msra.mxu0 0.0
        %2141 = vmatprep.subr.mxu0 0.0
        %2142 = vmatpush1.msra.mxu0 0.0
        %2143 = vmatprep.subr.mxu0 0.0
        %2144 = vmatpush1.msra.mxu0 0.0
        %2145 = vmatprep.subr.mxu0 0.0
        %2146 = vmatpush1.msra.mxu0 0.0
        %2147 = vmatprep.subr.mxu0 0.0
        %2148 = vmatpush1.msra.mxu0 0.0
        %2149 = vmatprep.subr.mxu0 0.0
        %2150 = vmatpush1.msra.mxu0 0.0
        %2151 = vmatprep.subr.mxu0 0.0
        %2152 = vmatpush1.msra.mxu0 0.0
        %2153 = vmatprep.subr.mxu0 0.0
        %2154 = vmatpush1.msra.mxu0 0.0
        %2155 = vmatprep.subr.mxu0 0.0
        %2156 = vmatpush1.msra.mxu0 0.0
        %2157 = vmatprep.subr.mxu0 0.0
        %2158 = vmatpush1.msra.mxu0 0.0
        %2159 = vmatprep.subr.mxu0 0.0
        %2160 = vmatpush1.msra.mxu0 0.0
        %2161 = vmatprep.subr.mxu0 0.0
        %2162 = vmatpush1.msra.mxu0 0.0
        %2163 = vmatprep.subr.mxu0 0.0
        %2164 = vmatpush1.msra.mxu0 0.0
        %2165 = vmatprep.subr.mxu0 0.0
        %2166 = vmatpush1.msra.mxu0 0.0
        %2167 = vmatprep.mubr.f32.mxu0 0.0
        %v2168 = vand.u32 %v1348, 4294901760
        %2169 = vmatmul.mubr.f32.gmra.mrb[0].mxu0 %v2168
        %v2170 = vpop.f32.mrb[0].mxu0
        %v2171 = vadd.f32 %v1988, %v2170
        %v2172 = vpop.f32.mrb[0].mxu0
        %v2173 = vadd.f32 %v1990, %v2172
        %2174 = vmatprep.mubr.f32.mxu0 0.0
        %v2175 = vand.u32 %v1351, 4294901760
        %2176 = vmatmul.mubr.f32.gmra.mrb[0].mxu0 %v2175
        %v2177 = vpop.f32.mrb[0].mxu0
        %v2178 = vadd.f32 %v1997, %v2177
        %v2179 = vpop.f32.mrb[0].mxu0
        %v2180 = vadd.f32 %v1999, %v2179
        %2181 = vmatprep.mubr.f32.mxu0 0.0
        %v2182 = vand.u32 %v1354, 4294901760
        %2183 = vmatmul.mubr.f32.gmra.mrb[0].mxu0 %v2182
        %v2184 = vpop.f32.mrb[0].mxu0
        %v2185 = vadd.f32 %v2006, %v2184
        %v2186 = vpop.f32.mrb[0].mxu0
        %v2187 = vadd.f32 %v2008, %v2186
        %2188 = vmatprep.mubr.f32.mxu0 0.0
        %v2189 = vand.u32 %v1357, 4294901760
        %2190 = vmatmul.mubr.f32.gmra.mrb[0].mxu0 %v2189
        %v2191 = vpop.f32.mrb[0].mxu0
        %v2192 = vadd.f32 %v2015, %v2191
        %v2193 = vpop.f32.mrb[0].mxu0
        %v2194 = vadd.f32 %v2017, %v2193
        %2195 = vmatprep.mubr.f32.mxu0 0.0
        %v2196 = vand.u32 %v1360, 4294901760
        %2197 = vmatmul.mubr.f32.gmra.mrb[0].mxu0 %v2196
        %v2198 = vpop.f32.mrb[0].mxu0
        %v2199 = vadd.f32 %v2024, %v2198
        %v2200 = vpop.f32.mrb[0].mxu0
        %v2201 = vadd.f32 %v2026, %v2200
        %2202 = vmatprep.mubr.f32.mxu0 0.0
        %v2203 = vand.u32 %v1363, 4294901760
        %2204 = vmatmul.mubr.f32.gmra.mrb[0].mxu0 %v2203
        %v2205 = vpop.f32.mrb[0].mxu0
        %v2206 = vadd.f32 %v2033, %v2205
        %v2207 = vpop.f32.mrb[0].mxu0
        %v2208 = vadd.f32 %v2035, %v2207
        %2209 = vmatprep.mubr.f32.mxu0 0.0
        %v2210 = vand.u32 %v1366, 4294901760
        %2211 = vmatmul.mubr.f32.gmra.mrb[0].mxu0 %v2210
        %v2212 = vpop.f32.mrb[0].mxu0
        %v2213 = vadd.f32 %v2042, %v2212
        %v2214 = vpop.f32.mrb[0].mxu0
        %v2215 = vadd.f32 %v2044, %v2214
        %2216 = vmatprep.mubr.f32.mxu0 0.0
        %v2217 = vand.u32 %v1369, 4294901760
        %2218 = vmatmul.mubr.f32.gmra.mrb[0].mxu0 %v2217
        %v2219 = vpop.f32.mrb[0].mxu0
        %v2220 = vadd.f32 %v2051, %v2219
        %v2221 = vpop.f32.mrb[0].mxu0
        %v2222 = vadd.f32 %v2053, %v2221
        %2223 = vdwg.mxu0
        %v2224 = vand.u32 %v1275, 4294901760
        %2225 = vmatprep.subr.mxu0 %v2224
        %v2226 = vand.u32 %v1274, 4294901760
        %2227 = vmatpush1.msra.mxu0 %v2226
        %v2228 = vand.u32 %v1277, 4294901760
        %2229 = vmatprep.subr.mxu0 %v2228
        %v2230 = vand.u32 %v1276, 4294901760
        %2231 = vmatpush1.msra.mxu0 %v2230
        %v2232 = vand.u32 %v1279, 4294901760
        %2233 = vmatprep.subr.mxu0 %v2232
        %v2234 = vand.u32 %v1278, 4294901760
        %2235 = vmatpush1.msra.mxu0 %v2234
        %v2236 = vand.u32 %v1281, 4294901760
        %2237 = vmatprep.subr.mxu0 %v2236
        %v2238 = vand.u32 %v1280, 4294901760
        %2239 = vmatpush1.msra.mxu0 %v2238
        %v2240 = vand.u32 %v1283, 4294901760
        %2241 = vmatprep.subr.mxu0 %v2240
        %v2242 = vand.u32 %v1282, 4294901760
        %2243 = vmatpush1.msra.mxu0 %v2242
        %v2244 = vand.u32 %v1285, 4294901760
        %2245 = vmatprep.subr.mxu0 %v2244
        %v2246 = vand.u32 %v1284, 4294901760
        %2247 = vmatpush1.msra.mxu0 %v2246
        %v2248 = vand.u32 %v1287, 4294901760
        %2249 = vmatprep.subr.mxu0 %v2248
        %v2250 = vand.u32 %v1286, 4294901760
        %2251 = vmatpush1.msra.mxu0 %v2250
        %v2252 = vand.u32 %v1289, 4294901760
        %2253 = vmatprep.subr.mxu0 %v2252
        %v2254 = vand.u32 %v1288, 4294901760
        %2255 = vmatpush1.msra.mxu0 %v2254
        %2256 = vmatprep.subr.mxu0 0.0
        %2257 = vmatpush1.msra.mxu0 0.0
        %2258 = vmatprep.subr.mxu0 0.0
        %2259 = vmatpush1.msra.mxu0 0.0
        %2260 = vmatprep.subr.mxu0 0.0
        %2261 = vmatpush1.msra.mxu0 0.0
        %2262 = vmatprep.subr.mxu0 0.0
        %2263 = vmatpush1.msra.mxu0 0.0
        %2264 = vmatprep.subr.mxu0 0.0
        %2265 = vmatpush1.msra.mxu0 0.0
        %2266 = vmatprep.subr.mxu0 0.0
        %2267 = vmatpush1.msra.mxu0 0.0
        %2268 = vmatprep.subr.mxu0 0.0
        %2269 = vmatpush1.msra.mxu0 0.0
        %2270 = vmatprep.subr.mxu0 0.0
        %2271 = vmatpush1.msra.mxu0 0.0
        %2272 = vmatprep.subr.mxu0 0.0
        %2273 = vmatpush1.msra.mxu0 0.0
        %2274 = vmatprep.subr.mxu0 0.0
        %2275 = vmatpush1.msra.mxu0 0.0
        %2276 = vmatprep.subr.mxu0 0.0
        %2277 = vmatpush1.msra.mxu0 0.0
        %2278 = vmatprep.subr.mxu0 0.0
        %2279 = vmatpush1.msra.mxu0 0.0
        %2280 = vmatprep.subr.mxu0 0.0
        %2281 = vmatpush1.msra.mxu0 0.0
        %2282 = vmatprep.subr.mxu0 0.0
        %2283 = vmatpush1.msra.mxu0 0.0
        %2284 = vmatprep.subr.mxu0 0.0
        %2285 = vmatpush1.msra.mxu0 0.0
        %2286 = vmatprep.subr.mxu0 0.0
        %2287 = vmatpush1.msra.mxu0 0.0
        %2288 = vmatprep.subr.mxu0 0.0
        %2289 = vmatpush1.msra.mxu0 0.0
        %2290 = vmatprep.subr.mxu0 0.0
        %2291 = vmatpush1.msra.mxu0 0.0
        %2292 = vmatprep.subr.mxu0 0.0
        %2293 = vmatpush1.msra.mxu0 0.0
        %2294 = vmatprep.subr.mxu0 0.0
        %2295 = vmatpush1.msra.mxu0 0.0
        %2296 = vmatprep.subr.mxu0 0.0
        %2297 = vmatpush1.msra.mxu0 0.0
        %2298 = vmatprep.subr.mxu0 0.0
        %2299 = vmatpush1.msra.mxu0 0.0
        %2300 = vmatprep.subr.mxu0 0.0
        %2301 = vmatpush1.msra.mxu0 0.0
        %2302 = vmatprep.subr.mxu0 0.0
        %2303 = vmatpush1.msra.mxu0 0.0
        %2304 = vmatprep.mubr.f32.mxu0 0.0
        %v2305 = vand.u32 %v1348, 4294901760
        %2306 = vmatmul.mubr.f32.gmra.mrb[0].mxu0 %v2305
        %v2307 = vpop.f32.mrb[0].mxu0
        %v2308 = vadd.f32 %v2171, %v2307
        %v2309 = vpop.f32.mrb[0].mxu0
        %v2310 = vadd.f32 %v2173, %v2309
        %2311 = vmatprep.mubr.f32.mxu0 0.0
        %v2312 = vand.u32 %v1351, 4294901760
        %2313 = vmatmul.mubr.f32.gmra.mrb[0].mxu0 %v2312
        %v2314 = vpop.f32.mrb[0].mxu0
        %v2315 = vadd.f32 %v2178, %v2314
        %v2316 = vpop.f32.mrb[0].mxu0
        %v2317 = vadd.f32 %v2180, %v2316
        %2318 = vmatprep.mubr.f32.mxu0 0.0
        %v2319 = vand.u32 %v1354, 4294901760
        %2320 = vmatmul.mubr.f32.gmra.mrb[0].mxu0 %v2319
        %v2321 = vpop.f32.mrb[0].mxu0
        %v2322 = vadd.f32 %v2185, %v2321
        %v2323 = vpop.f32.mrb[0].mxu0
        %v2324 = vadd.f32 %v2187, %v2323
        %2325 = vmatprep.mubr.f32.mxu0 0.0
        %v2326 = vand.u32 %v1357, 4294901760
        %2327 = vmatmul.mubr.f32.gmra.mrb[0].mxu0 %v2326
        %v2328 = vpop.f32.mrb[0].mxu0
        %v2329 = vadd.f32 %v2192, %v2328
        %v2330 = vpop.f32.mrb[0].mxu0
        %v2331 = vadd.f32 %v2194, %v2330
        %2332 = vmatprep.mubr.f32.mxu0 0.0
        %v2333 = vand.u32 %v1360, 4294901760
        %2334 = vmatmul.mubr.f32.gmra.mrb[0].mxu0 %v2333
        %v2335 = vpop.f32.mrb[0].mxu0
        %v2336 = vadd.f32 %v2199, %v2335
        %v2337 = vpop.f32.mrb[0].mxu0
        %v2338 = vadd.f32 %v2201, %v2337
        %2339 = vmatprep.mubr.f32.mxu0 0.0
        %v2340 = vand.u32 %v1363, 4294901760
        %2341 = vmatmul.mubr.f32.gmra.mrb[0].mxu0 %v2340
        %v2342 = vpop.f32.mrb[0].mxu0
        %v2343 = vadd.f32 %v2206, %v2342
        %v2344 = vpop.f32.mrb[0].mxu0
        %v2345 = vadd.f32 %v2208, %v2344
        %2346 = vmatprep.mubr.f32.mxu0 0.0
        %v2347 = vand.u32 %v1366, 4294901760
        %2348 = vmatmul.mubr.f32.gmra.mrb[0].mxu0 %v2347
        %v2349 = vpop.f32.mrb[0].mxu0
        %v2350 = vadd.f32 %v2213, %v2349
        %v2351 = vpop.f32.mrb[0].mxu0
        %v2352 = vadd.f32 %v2215, %v2351
        %2353 = vmatprep.mubr.f32.mxu0 0.0
        %v2354 = vand.u32 %v1369, 4294901760
        %2355 = vmatmul.mubr.f32.gmra.mrb[0].mxu0 %v2354
        %v2356 = vpop.f32.mrb[0].mxu0
        %v2357 = vadd.f32 %v2220, %v2356
        %v2358 = vpop.f32.mrb[0].mxu0
        %v2359 = vadd.f32 %v2222, %v2358
        %2360 = vdwg.mxu0
        %v2361 = vmax.f32 %v2308, 0.0
        %v2362 = vmax.f32 %v2310, 0.0
        %v2363 = vmax.f32 %v2315, 0.0
        %v2364 = vmax.f32 %v2317, 0.0
        %v2365 = vmax.f32 %v2322, 0.0
        %v2366 = vmax.f32 %v2324, 0.0
        %v2367 = vmax.f32 %v2329, 0.0
        %v2368 = vmax.f32 %v2331, 0.0
        %v2369 = vmax.f32 %v2336, 0.0
        %v2370 = vmax.f32 %v2338, 0.0
        %v2371 = vmax.f32 %v2343, 0.0
        %v2372 = vmax.f32 %v2345, 0.0
        %v2373 = vmax.f32 %v2350, 0.0
        %v2374 = vmax.f32 %v2352, 0.0
        %v2375 = vmax.f32 %v2357, 0.0
        %v2376 = vmax.f32 %v2359, 0.0
        %v2377 = vld [vmem:[%s5] sm:$0xff]
        %v2378 = vld [vmem:[%s5 + $0x8] sm:$0xff]
        %v2379 = vld [vmem:[%s5 + $0x10] sm:$0xff]
        %v2380 = vld [vmem:[%s5 + $0x18] sm:$0xff]
        %v2381 = vld [vmem:[%s5 + $0x20] sm:$0xff]
        %v2382 = vld [vmem:[%s5 + $0x28] sm:$0xff]
        %v2383 = vld [vmem:[%s5 + $0x30] sm:$0xff]
        %v2384 = vld [vmem:[%s5 + $0x38] sm:$0xff]
        %v2385 = vld [vmem:[%s6] sm:$0xff]
        %v2386 = vld [vmem:[%s6 + $0x8] sm:$0xff]
        %v2387 = vld [vmem:[%s6 + $0x10] sm:$0xff]
        %v2388 = vld [vmem:[%s6 + $0x18] sm:$0xff]
        %v2389 = vld [vmem:[%s6 + $0x20] sm:$0xff]
        %v2390 = vld [vmem:[%s6 + $0x28] sm:$0xff]
        %v2391 = vld [vmem:[%s6 + $0x30] sm:$0xff]
        %v2392 = vld [vmem:[%s6 + $0x38] sm:$0xff]
        %2394 = vset.pattern.permute.xlu0 0
        %2395 = vperm.xlu0 %2394, %v2385
        %v2396 = vpop.permute.xlu0 %2395
        %2399 = vset.pattern.permute.xlu0 0
        %2400 = vperm.xlu0 %2399, %v2386
        %v2401 = vpop.permute.xlu0 %2400
        %2404 = vset.pattern.permute.xlu0 0
        %2405 = vperm.xlu0 %2404, %v2387
        %v2406 = vpop.permute.xlu0 %2405
        %2409 = vset.pattern.permute.xlu0 0
        %2410 = vperm.xlu0 %2409, %v2388
        %v2411 = vpop.permute.xlu0 %2410
        %2414 = vset.pattern.permute.xlu0 0
        %2415 = vperm.xlu0 %2414, %v2389
        %v2416 = vpop.permute.xlu0 %2415
        %2419 = vset.pattern.permute.xlu0 0
        %2420 = vperm.xlu0 %2419, %v2390
        %v2421 = vpop.permute.xlu0 %2420
        %2424 = vset.pattern.permute.xlu0 0
        %2425 = vperm.xlu0 %2424, %v2391
        %v2426 = vpop.permute.xlu0 %2425
        %2429 = vset.pattern.permute.xlu0 0
        %2430 = vperm.xlu0 %2429, %v2392
        %v2431 = vpop.permute.xlu0 %2430
        %v2434 = vsel %vm1346, %v2377, 0
        %v2437 = vsel %vm1346, %v2378, 0
        %v2440 = vsel %vm1346, %v2379, 0
        %v2443 = vsel %vm1346, %v2380, 0
        %v2446 = vsel %vm1346, %v2381, 0
        %v2449 = vsel %vm1346, %v2382, 0
        %v2452 = vsel %vm1346, %v2383, 0
        %v2455 = vsel %vm1346, %v2384, 0
        %v2457 = vand.u32 %v2362, 4294901760
        %2458 = vmatprep.subr.mxu0 %v2457
        %v2459 = vand.u32 %v2361, 4294901760
        %2460 = vmatpush1.msra.mxu0 %v2459
        %v2461 = vand.u32 %v2364, 4294901760
        %2462 = vmatprep.subr.mxu0 %v2461
        %v2463 = vand.u32 %v2363, 4294901760
        %2464 = vmatpush1.msra.mxu0 %v2463
        %v2465 = vand.u32 %v2366, 4294901760
        %2466 = vmatprep.subr.mxu0 %v2465
        %v2467 = vand.u32 %v2365, 4294901760
        %2468 = vmatpush1.msra.mxu0 %v2467
        %v2469 = vand.u32 %v2368, 4294901760
        %2470 = vmatprep.subr.mxu0 %v2469
        %v2471 = vand.u32 %v2367, 4294901760
        %2472 = vmatpush1.msra.mxu0 %v2471
        %v2473 = vand.u32 %v2370, 4294901760
        %2474 = vmatprep.subr.mxu0 %v2473
        %v2475 = vand.u32 %v2369, 4294901760
        %2476 = vmatpush1.msra.mxu0 %v2475
        %v2477 = vand.u32 %v2372, 4294901760
        %2478 = vmatprep.subr.mxu0 %v2477
        %v2479 = vand.u32 %v2371, 4294901760
        %2480 = vmatpush1.msra.mxu0 %v2479
        %v2481 = vand.u32 %v2374, 4294901760
        %2482 = vmatprep.subr.mxu0 %v2481
        %v2483 = vand.u32 %v2373, 4294901760
        %2484 = vmatpush1.msra.mxu0 %v2483
        %v2485 = vand.u32 %v2376, 4294901760
        %2486 = vmatprep.subr.mxu0 %v2485
        %v2487 = vand.u32 %v2375, 4294901760
        %2488 = vmatpush1.msra.mxu0 %v2487
        %2489 = vmatprep.subr.mxu0 0.0
        %2490 = vmatpush1.msra.mxu0 0.0
        %2491 = vmatprep.subr.mxu0 0.0
        %2492 = vmatpush1.msra.mxu0 0.0
        %2493 = vmatprep.subr.mxu0 0.0
        %2494 = vmatpush1.msra.mxu0 0.0
        %2495 = vmatprep.subr.mxu0 0.0
        %2496 = vmatpush1.msra.mxu0 0.0
        %2497 = vmatprep.subr.mxu0 0.0
        %2498 = vmatpush1.msra.mxu0 0.0
        %2499 = vmatprep.subr.mxu0 0.0
        %2500 = vmatpush1.msra.mxu0 0.0
        %2501 = vmatprep.subr.mxu0 0.0
        %2502 = vmatpush1.msra.mxu0 0.0
        %2503 = vmatprep.subr.mxu0 0.0
        %2504 = vmatpush1.msra.mxu0 0.0
        %2505 = vmatprep.subr.mxu0 0.0
        %2506 = vmatpush1.msra.mxu0 0.0
        %2507 = vmatprep.subr.mxu0 0.0
        %2508 = vmatpush1.msra.mxu0 0.0
        %2509 = vmatprep.subr.mxu0 0.0
        %2510 = vmatpush1.msra.mxu0 0.0
        %2511 = vmatprep.subr.mxu0 0.0
        %2512 = vmatpush1.msra.mxu0 0.0
        %2513 = vmatprep.subr.mxu0 0.0
        %2514 = vmatpush1.msra.mxu0 0.0
        %2515 = vmatprep.subr.mxu0 0.0
        %2516 = vmatpush1.msra.mxu0 0.0
        %2517 = vmatprep.subr.mxu0 0.0
        %2518 = vmatpush1.msra.mxu0 0.0
        %2519 = vmatprep.subr.mxu0 0.0
        %2520 = vmatpush1.msra.mxu0 0.0
        %2521 = vmatprep.subr.mxu0 0.0
        %2522 = vmatpush1.msra.mxu0 0.0
        %2523 = vmatprep.subr.mxu0 0.0
        %2524 = vmatpush1.msra.mxu0 0.0
        %2525 = vmatprep.subr.mxu0 0.0
        %2526 = vmatpush1.msra.mxu0 0.0
        %2527 = vmatprep.subr.mxu0 0.0
        %2528 = vmatpush1.msra.mxu0 0.0
        %2529 = vmatprep.subr.mxu0 0.0
        %2530 = vmatpush1.msra.mxu0 0.0
        %2531 = vmatprep.subr.mxu0 0.0
        %2532 = vmatpush1.msra.mxu0 0.0
        %2533 = vmatprep.subr.mxu0 0.0
        %2534 = vmatpush1.msra.mxu0 0.0
        %2535 = vmatprep.subr.mxu0 0.0
        %2536 = vmatpush1.msra.mxu0 0.0
        %2537 = vmatprep.mubr.f32.mxu0 0.0
        %v2538 = vand.u32 %v2434, 4294901760
        %v2539 = vsub.f32 %v2434, %v2538
        %v2540 = vand.u32 %v2539, 4294901760
        %v2541 = vsub.f32 %v2539, %v2540
        %v2542 = vand.u32 %v2541, 4294901760
        %2543 = vmatmul.mubr.f32.gmra.mrb[0].mxu0 %v2542
        %v2544 = vpop.f32.mrb[0].mxu0
        %v2545 = vadd.f32 %v2396, %v2544
        %v2546 = vpop.f32.mrb[0].mxu0
        %v2547 = vadd.f32 %v2396, %v2546
        %2548 = vmatprep.mubr.f32.mxu0 0.0
        %v2549 = vand.u32 %v2437, 4294901760
        %v2550 = vsub.f32 %v2437, %v2549
        %v2551 = vand.u32 %v2550, 4294901760
        %v2552 = vsub.f32 %v2550, %v2551
        %v2553 = vand.u32 %v2552, 4294901760
        %2554 = vmatmul.mubr.f32.gmra.mrb[0].mxu0 %v2553
        %v2555 = vpop.f32.mrb[0].mxu0
        %v2556 = vadd.f32 %v2401, %v2555
        %v2557 = vpop.f32.mrb[0].mxu0
        %v2558 = vadd.f32 %v2401, %v2557
        %2559 = vmatprep.mubr.f32.mxu0 0.0
        %v2560 = vand.u32 %v2440, 4294901760
        %v2561 = vsub.f32 %v2440, %v2560
        %v2562 = vand.u32 %v2561, 4294901760
        %v2563 = vsub.f32 %v2561, %v2562
        %v2564 = vand.u32 %v2563, 4294901760
        %2565 = vmatmul.mubr.f32.gmra.mrb[0].mxu0 %v2564
        %v2566 = vpop.f32.mrb[0].mxu0
        %v2567 = vadd.f32 %v2406, %v2566
        %v2568 = vpop.f32.mrb[0].mxu0
        %v2569 = vadd.f32 %v2406, %v2568
        %2570 = vmatprep.mubr.f32.mxu0 0.0
        %v2571 = vand.u32 %v2443, 4294901760
        %v2572 = vsub.f32 %v2443, %v2571
        %v2573 = vand.u32 %v2572, 4294901760
        %v2574 = vsub.f32 %v2572, %v2573
        %v2575 = vand.u32 %v2574, 4294901760
        %2576 = vmatmul.mubr.f32.gmra.mrb[0].mxu0 %v2575
        %v2577 = vpop.f32.mrb[0].mxu0
        %v2578 = vadd.f32 %v2411, %v2577
        %v2579 = vpop.f32.mrb[0].mxu0
        %v2580 = vadd.f32 %v2411, %v2579
        %2581 = vmatprep.mubr.f32.mxu0 0.0
        %v2582 = vand.u32 %v2446, 4294901760
        %v2583 = vsub.f32 %v2446, %v2582
        %v2584 = vand.u32 %v2583, 4294901760
        %v2585 = vsub.f32 %v2583, %v2584
        %v2586 = vand.u32 %v2585, 4294901760
        %2587 = vmatmul.mubr.f32.gmra.mrb[0].mxu0 %v2586
        %v2588 = vpop.f32.mrb[0].mxu0
        %v2589 = vadd.f32 %v2416, %v2588
        %v2590 = vpop.f32.mrb[0].mxu0
        %v2591 = vadd.f32 %v2416, %v2590
        %2592 = vmatprep.mubr.f32.mxu0 0.0
        %v2593 = vand.u32 %v2449, 4294901760
        %v2594 = vsub.f32 %v2449, %v2593
        %v2595 = vand.u32 %v2594, 4294901760
        %v2596 = vsub.f32 %v2594, %v2595
        %v2597 = vand.u32 %v2596, 4294901760
        %2598 = vmatmul.mubr.f32.gmra.mrb[0].mxu0 %v2597
        %v2599 = vpop.f32.mrb[0].mxu0
        %v2600 = vadd.f32 %v2421, %v2599
        %v2601 = vpop.f32.mrb[0].mxu0
        %v2602 = vadd.f32 %v2421, %v2601
        %2603 = vmatprep.mubr.f32.mxu0 0.0
        %v2604 = vand.u32 %v2452, 4294901760
        %v2605 = vsub.f32 %v2452, %v2604
        %v2606 = vand.u32 %v2605, 4294901760
        %v2607 = vsub.f32 %v2605, %v2606
        %v2608 = vand.u32 %v2607, 4294901760
        %2609 = vmatmul.mubr.f32.gmra.mrb[0].mxu0 %v2608
        %v2610 = vpop.f32.mrb[0].mxu0
        %v2611 = vadd.f32 %v2426, %v2610
        %v2612 = vpop.f32.mrb[0].mxu0
        %v2613 = vadd.f32 %v2426, %v2612
        %2614 = vmatprep.mubr.f32.mxu0 0.0
        %v2615 = vand.u32 %v2455, 4294901760
        %v2616 = vsub.f32 %v2455, %v2615
        %v2617 = vand.u32 %v2616, 4294901760
        %v2618 = vsub.f32 %v2616, %v2617
        %v2619 = vand.u32 %v2618, 4294901760
        %2620 = vmatmul.mubr.f32.gmra.mrb[0].mxu0 %v2619
        %v2621 = vpop.f32.mrb[0].mxu0
        %v2622 = vadd.f32 %v2431, %v2621
        %v2623 = vpop.f32.mrb[0].mxu0
        %v2624 = vadd.f32 %v2431, %v2623
        %2625 = vdwg.mxu0
        %v2626 = vand.u32 %v2362, 4294901760
        %v2627 = vsub.f32 %v2362, %v2626
        %v2628 = vand.u32 %v2627, 4294901760
        %v2629 = vsub.f32 %v2627, %v2628
        %v2630 = vand.u32 %v2629, 4294901760
        %2631 = vmatprep.subr.mxu0 %v2630
        %v2632 = vand.u32 %v2361, 4294901760
        %v2633 = vsub.f32 %v2361, %v2632
        %v2634 = vand.u32 %v2633, 4294901760
        %v2635 = vsub.f32 %v2633, %v2634
        %v2636 = vand.u32 %v2635, 4294901760
        %2637 = vmatpush1.msra.mxu0 %v2636
        %v2638 = vand.u32 %v2364, 4294901760
        %v2639 = vsub.f32 %v2364, %v2638
        %v2640 = vand.u32 %v2639, 4294901760
        %v2641 = vsub.f32 %v2639, %v2640
        %v2642 = vand.u32 %v2641, 4294901760
        %2643 = vmatprep.subr.mxu0 %v2642
        %v2644 = vand.u32 %v2363, 4294901760
        %v2645 = vsub.f32 %v2363, %v2644
        %v2646 = vand.u32 %v2645, 4294901760
        %v2647 = vsub.f32 %v2645, %v2646
        %v2648 = vand.u32 %v2647, 4294901760
        %2649 = vmatpush1.msra.mxu0 %v2648
        %v2650 = vand.u32 %v2366, 4294901760
        %v2651 = vsub.f32 %v2366, %v2650
        %v2652 = vand.u32 %v2651, 4294901760
        %v2653 = vsub.f32 %v2651, %v2652
        %v2654 = vand.u32 %v2653, 4294901760
        %2655 = vmatprep.subr.mxu0 %v2654
        %v2656 = vand.u32 %v2365, 4294901760
        %v2657 = vsub.f32 %v2365, %v2656
        %v2658 = vand.u32 %v2657, 4294901760
        %v2659 = vsub.f32 %v2657, %v2658
        %v2660 = vand.u32 %v2659, 4294901760
        %2661 = vmatpush1.msra.mxu0 %v2660
        %v2662 = vand.u32 %v2368, 4294901760
        %v2663 = vsub.f32 %v2368, %v2662
        %v2664 = vand.u32 %v2663, 4294901760
        %v2665 = vsub.f32 %v2663, %v2664
        %v2666 = vand.u32 %v2665, 4294901760
        %2667 = vmatprep.subr.mxu0 %v2666
        %v2668 = vand.u32 %v2367, 4294901760
        %v2669 = vsub.f32 %v2367, %v2668
        %v2670 = vand.u32 %v2669, 4294901760
        %v2671 = vsub.f32 %v2669, %v2670
        %v2672 = vand.u32 %v2671, 4294901760
        %2673 = vmatpush1.msra.mxu0 %v2672
        %v2674 = vand.u32 %v2370, 4294901760
        %v2675 = vsub.f32 %v2370, %v2674
        %v2676 = vand.u32 %v2675, 4294901760
        %v2677 = vsub.f32 %v2675, %v2676
        %v2678 = vand.u32 %v2677, 4294901760
        %2679 = vmatprep.subr.mxu0 %v2678
        %v2680 = vand.u32 %v2369, 4294901760
        %v2681 = vsub.f32 %v2369, %v2680
        %v2682 = vand.u32 %v2681, 4294901760
        %v2683 = vsub.f32 %v2681, %v2682
        %v2684 = vand.u32 %v2683, 4294901760
        %2685 = vmatpush1.msra.mxu0 %v2684
        %v2686 = vand.u32 %v2372, 4294901760
        %v2687 = vsub.f32 %v2372, %v2686
        %v2688 = vand.u32 %v2687, 4294901760
        %v2689 = vsub.f32 %v2687, %v2688
        %v2690 = vand.u32 %v2689, 4294901760
        %2691 = vmatprep.subr.mxu0 %v2690
        %v2692 = vand.u32 %v2371, 4294901760
        %v2693 = vsub.f32 %v2371, %v2692
        %v2694 = vand.u32 %v2693, 4294901760
        %v2695 = vsub.f32 %v2693, %v2694
        %v2696 = vand.u32 %v2695, 4294901760
        %2697 = vmatpush1.msra.mxu0 %v2696
        %v2698 = vand.u32 %v2374, 4294901760
        %v2699 = vsub.f32 %v2374, %v2698
        %v2700 = vand.u32 %v2699, 4294901760
        %v2701 = vsub.f32 %v2699, %v2700
        %v2702 = vand.u32 %v2701, 4294901760
        %2703 = vmatprep.subr.mxu0 %v2702
        %v2704 = vand.u32 %v2373, 4294901760
        %v2705 = vsub.f32 %v2373, %v2704
        %v2706 = vand.u32 %v2705, 4294901760
        %v2707 = vsub.f32 %v2705, %v2706
        %v2708 = vand.u32 %v2707, 4294901760
        %2709 = vmatpush1.msra.mxu0 %v2708
        %v2710 = vand.u32 %v2376, 4294901760
        %v2711 = vsub.f32 %v2376, %v2710
        %v2712 = vand.u32 %v2711, 4294901760
        %v2713 = vsub.f32 %v2711, %v2712
        %v2714 = vand.u32 %v2713, 4294901760
        %2715 = vmatprep.subr.mxu0 %v2714
        %v2716 = vand.u32 %v2375, 4294901760
        %v2717 = vsub.f32 %v2375, %v2716
        %v2718 = vand.u32 %v2717, 4294901760
        %v2719 = vsub.f32 %v2717, %v2718
        %v2720 = vand.u32 %v2719, 4294901760
        %2721 = vmatpush1.msra.mxu0 %v2720
        %2722 = vmatprep.subr.mxu0 0.0
        %2723 = vmatpush1.msra.mxu0 0.0
        %2724 = vmatprep.subr.mxu0 0.0
        %2725 = vmatpush1.msra.mxu0 0.0
        %2726 = vmatprep.subr.mxu0 0.0
        %2727 = vmatpush1.msra.mxu0 0.0
        %2728 = vmatprep.subr.mxu0 0.0
        %2729 = vmatpush1.msra.mxu0 0.0
        %2730 = vmatprep.subr.mxu0 0.0
        %2731 = vmatpush1.msra.mxu0 0.0
        %2732 = vmatprep.subr.mxu0 0.0
        %2733 = vmatpush1.msra.mxu0 0.0
        %2734 = vmatprep.subr.mxu0 0.0
        %2735 = vmatpush1.msra.mxu0 0.0
        %2736 = vmatprep.subr.mxu0 0.0
        %2737 = vmatpush1.msra.mxu0 0.0
        %2738 = vmatprep.subr.mxu0 0.0
        %2739 = vmatpush1.msra.mxu0 0.0
        %2740 = vmatprep.subr.mxu0 0.0
        %2741 = vmatpush1.msra.mxu0 0.0
        %2742 = vmatprep.subr.mxu0 0.0
        %2743 = vmatpush1.msra.mxu0 0.0
        %2744 = vmatprep.subr.mxu0 0.0
        %2745 = vmatpush1.msra.mxu0 0.0
        %2746 = vmatprep.subr.mxu0 0.0
        %2747 = vmatpush1.msra.mxu0 0.0
        %2748 = vmatprep.subr.mxu0 0.0
        %2749 = vmatpush1.msra.mxu0 0.0
        %2750 = vmatprep.subr.mxu0 0.0
        %2751 = vmatpush1.msra.mxu0 0.0
        %2752 = vmatprep.subr.mxu0 0.0
        %2753 = vmatpush1.msra.mxu0 0.0
        %2754 = vmatprep.subr.mxu0 0.0
        %2755 = vmatpush1.msra.mxu0 0.0
        %2756 = vmatprep.subr.mxu0 0.0
        %2757 = vmatpush1.msra.mxu0 0.0
        %2758 = vmatprep.subr.mxu0 0.0
        %2759 = vmatpush1.msra.mxu0 0.0
        %2760 = vmatprep.subr.mxu0 0.0
        %2761 = vmatpush1.msra.mxu0 0.0
        %2762 = vmatprep.subr.mxu0 0.0
        %2763 = vmatpush1.msra.mxu0 0.0
        %2764 = vmatprep.subr.mxu0 0.0
        %2765 = vmatpush1.msra.mxu0 0.0
        %2766 = vmatprep.subr.mxu0 0.0
        %2767 = vmatpush1.msra.mxu0 0.0
        %2768 = vmatprep.subr.mxu0 0.0
        %2769 = vmatpush1.msra.mxu0 0.0
        %2770 = vmatprep.mubr.f32.mxu0 0.0
        %v2771 = vand.u32 %v2434, 4294901760
        %2772 = vmatmul.mubr.f32.gmra.mrb[0].mxu0 %v2771
        %v2773 = vpop.f32.mrb[0].mxu0
        %v2774 = vadd.f32 %v2545, %v2773
        %v2775 = vpop.f32.mrb[0].mxu0
        %v2776 = vadd.f32 %v2547, %v2775
        %2777 = vmatprep.mubr.f32.mxu0 0.0
        %v2778 = vand.u32 %v2437, 4294901760
        %2779 = vmatmul.mubr.f32.gmra.mrb[0].mxu0 %v2778
        %v2780 = vpop.f32.mrb[0].mxu0
        %v2781 = vadd.f32 %v2556, %v2780
        %v2782 = vpop.f32.mrb[0].mxu0
        %v2783 = vadd.f32 %v2558, %v2782
        %2784 = vmatprep.mubr.f32.mxu0 0.0
        %v2785 = vand.u32 %v2440, 4294901760
        %2786 = vmatmul.mubr.f32.gmra.mrb[0].mxu0 %v2785
        %v2787 = vpop.f32.mrb[0].mxu0
        %v2788 = vadd.f32 %v2567, %v2787
        %v2789 = vpop.f32.mrb[0].mxu0
        %v2790 = vadd.f32 %v2569, %v2789
        %2791 = vmatprep.mubr.f32.mxu0 0.0
        %v2792 = vand.u32 %v2443, 4294901760
        %2793 = vmatmul.mubr.f32.gmra.mrb[0].mxu0 %v2792
        %v2794 = vpop.f32.mrb[0].mxu0
        %v2795 = vadd.f32 %v2578, %v2794
        %v2796 = vpop.f32.mrb[0].mxu0
        %v2797 = vadd.f32 %v2580, %v2796
        %2798 = vmatprep.mubr.f32.mxu0 0.0
        %v2799 = vand.u32 %v2446, 4294901760
        %2800 = vmatmul.mubr.f32.gmra.mrb[0].mxu0 %v2799
        %v2801 = vpop.f32.mrb[0].mxu0
        %v2802 = vadd.f32 %v2589, %v2801
        %v2803 = vpop.f32.mrb[0].mxu0
        %v2804 = vadd.f32 %v2591, %v2803
        %2805 = vmatprep.mubr.f32.mxu0 0.0
        %v2806 = vand.u32 %v2449, 4294901760
        %2807 = vmatmul.mubr.f32.gmra.mrb[0].mxu0 %v2806
        %v2808 = vpop.f32.mrb[0].mxu0
        %v2809 = vadd.f32 %v2600, %v2808
        %v2810 = vpop.f32.mrb[0].mxu0
        %v2811 = vadd.f32 %v2602, %v2810
        %2812 = vmatprep.mubr.f32.mxu0 0.0
        %v2813 = vand.u32 %v2452, 4294901760
        %2814 = vmatmul.mubr.f32.gmra.mrb[0].mxu0 %v2813
        %v2815 = vpop.f32.mrb[0].mxu0
        %v2816 = vadd.f32 %v2611, %v2815
        %v2817 = vpop.f32.mrb[0].mxu0
        %v2818 = vadd.f32 %v2613, %v2817
        %2819 = vmatprep.mubr.f32.mxu0 0.0
        %v2820 = vand.u32 %v2455, 4294901760
        %2821 = vmatmul.mubr.f32.gmra.mrb[0].mxu0 %v2820
        %v2822 = vpop.f32.mrb[0].mxu0
        %v2823 = vadd.f32 %v2622, %v2822
        %v2824 = vpop.f32.mrb[0].mxu0
        %v2825 = vadd.f32 %v2624, %v2824
        %2826 = vdwg.mxu0
        %v2827 = vand.u32 %v2362, 4294901760
        %v2828 = vsub.f32 %v2362, %v2827
        %2829 = vmatprep.subr.mxu0 %v2828
        %v2830 = vand.u32 %v2361, 4294901760
        %v2831 = vsub.f32 %v2361, %v2830
        %2832 = vmatpush1.msra.mxu0 %v2831
        %v2833 = vand.u32 %v2364, 4294901760
        %v2834 = vsub.f32 %v2364, %v2833
        %2835 = vmatprep.subr.mxu0 %v2834
        %v2836 = vand.u32 %v2363, 4294901760
        %v2837 = vsub.f32 %v2363, %v2836
        %2838 = vmatpush1.msra.mxu0 %v2837
        %v2839 = vand.u32 %v2366, 4294901760
        %v2840 = vsub.f32 %v2366, %v2839
        %2841 = vmatprep.subr.mxu0 %v2840
        %v2842 = vand.u32 %v2365, 4294901760
        %v2843 = vsub.f32 %v2365, %v2842
        %2844 = vmatpush1.msra.mxu0 %v2843
        %v2845 = vand.u32 %v2368, 4294901760
        %v2846 = vsub.f32 %v2368, %v2845
        %2847 = vmatprep.subr.mxu0 %v2846
        %v2848 = vand.u32 %v2367, 4294901760
        %v2849 = vsub.f32 %v2367, %v2848
        %2850 = vmatpush1.msra.mxu0 %v2849
        %v2851 = vand.u32 %v2370, 4294901760
        %v2852 = vsub.f32 %v2370, %v2851
        %2853 = vmatprep.subr.mxu0 %v2852
        %v2854 = vand.u32 %v2369, 4294901760
        %v2855 = vsub.f32 %v2369, %v2854
        %2856 = vmatpush1.msra.mxu0 %v2855
        %v2857 = vand.u32 %v2372, 4294901760
        %v2858 = vsub.f32 %v2372, %v2857
        %2859 = vmatprep.subr.mxu0 %v2858
        %v2860 = vand.u32 %v2371, 4294901760
        %v2861 = vsub.f32 %v2371, %v2860
        %2862 = vmatpush1.msra.mxu0 %v2861
        %v2863 = vand.u32 %v2374, 4294901760
        %v2864 = vsub.f32 %v2374, %v2863
        %2865 = vmatprep.subr.mxu0 %v2864
        %v2866 = vand.u32 %v2373, 4294901760
        %v2867 = vsub.f32 %v2373, %v2866
        %2868 = vmatpush1.msra.mxu0 %v2867
        %v2869 = vand.u32 %v2376, 4294901760
        %v2870 = vsub.f32 %v2376, %v2869
        %2871 = vmatprep.subr.mxu0 %v2870
        %v2872 = vand.u32 %v2375, 4294901760
        %v2873 = vsub.f32 %v2375, %v2872
        %2874 = vmatpush1.msra.mxu0 %v2873
        %2875 = vmatprep.subr.mxu0 0.0
        %2876 = vmatpush1.msra.mxu0 0.0
        %2877 = vmatprep.subr.mxu0 0.0
        %2878 = vmatpush1.msra.mxu0 0.0
        %2879 = vmatprep.subr.mxu0 0.0
        %2880 = vmatpush1.msra.mxu0 0.0
        %2881 = vmatprep.subr.mxu0 0.0
        %2882 = vmatpush1.msra.mxu0 0.0
        %2883 = vmatprep.subr.mxu0 0.0
        %2884 = vmatpush1.msra.mxu0 0.0
        %2885 = vmatprep.subr.mxu0 0.0
        %2886 = vmatpush1.msra.mxu0 0.0
        %2887 = vmatprep.subr.mxu0 0.0
        %2888 = vmatpush1.msra.mxu0 0.0
        %2889 = vmatprep.subr.mxu0 0.0
        %2890 = vmatpush1.msra.mxu0 0.0
        %2891 = vmatprep.subr.mxu0 0.0
        %2892 = vmatpush1.msra.mxu0 0.0
        %2893 = vmatprep.subr.mxu0 0.0
        %2894 = vmatpush1.msra.mxu0 0.0
        %2895 = vmatprep.subr.mxu0 0.0
        %2896 = vmatpush1.msra.mxu0 0.0
        %2897 = vmatprep.subr.mxu0 0.0
        %2898 = vmatpush1.msra.mxu0 0.0
        %2899 = vmatprep.subr.mxu0 0.0
        %2900 = vmatpush1.msra.mxu0 0.0
        %2901 = vmatprep.subr.mxu0 0.0
        %2902 = vmatpush1.msra.mxu0 0.0
        %2903 = vmatprep.subr.mxu0 0.0
        %2904 = vmatpush1.msra.mxu0 0.0
        %2905 = vmatprep.subr.mxu0 0.0
        %2906 = vmatpush1.msra.mxu0 0.0
        %2907 = vmatprep.subr.mxu0 0.0
        %2908 = vmatpush1.msra.mxu0 0.0
        %2909 = vmatprep.subr.mxu0 0.0
        %2910 = vmatpush1.msra.mxu0 0.0
        %2911 = vmatprep.subr.mxu0 0.0
        %2912 = vmatpush1.msra.mxu0 0.0
        %2913 = vmatprep.subr.mxu0 0.0
        %2914 = vmatpush1.msra.mxu0 0.0
        %2915 = vmatprep.subr.mxu0 0.0
        %2916 = vmatpush1.msra.mxu0 0.0
        %2917 = vmatprep.subr.mxu0 0.0
        %2918 = vmatpush1.msra.mxu0 0.0
        %2919 = vmatprep.subr.mxu0 0.0
        %2920 = vmatpush1.msra.mxu0 0.0
        %2921 = vmatprep.subr.mxu0 0.0
        %2922 = vmatpush1.msra.mxu0 0.0
        %2923 = vmatprep.mubr.f32.mxu0 0.0
        %v2924 = vand.u32 %v2434, 4294901760
        %v2925 = vsub.f32 %v2434, %v2924
        %2926 = vmatmul.mubr.f32.gmra.mrb[0].mxu0 %v2925
        %v2927 = vpop.f32.mrb[0].mxu0
        %v2928 = vadd.f32 %v2774, %v2927
        %v2929 = vpop.f32.mrb[0].mxu0
        %v2930 = vadd.f32 %v2776, %v2929
        %2931 = vmatprep.mubr.f32.mxu0 0.0
        %v2932 = vand.u32 %v2437, 4294901760
        %v2933 = vsub.f32 %v2437, %v2932
        %2934 = vmatmul.mubr.f32.gmra.mrb[0].mxu0 %v2933
        %v2935 = vpop.f32.mrb[0].mxu0
        %v2936 = vadd.f32 %v2781, %v2935
        %v2937 = vpop.f32.mrb[0].mxu0
        %v2938 = vadd.f32 %v2783, %v2937
        %2939 = vmatprep.mubr.f32.mxu0 0.0
        %v2940 = vand.u32 %v2440, 4294901760
        %v2941 = vsub.f32 %v2440, %v2940
        %2942 = vmatmul.mubr.f32.gmra.mrb[0].mxu0 %v2941
        %v2943 = vpop.f32.mrb[0].mxu0
        %v2944 = vadd.f32 %v2788, %v2943
        %v2945 = vpop.f32.mrb[0].mxu0
        %v2946 = vadd.f32 %v2790, %v2945
        %2947 = vmatprep.mubr.f32.mxu0 0.0
        %v2948 = vand.u32 %v2443, 4294901760
        %v2949 = vsub.f32 %v2443, %v2948
        %2950 = vmatmul.mubr.f32.gmra.mrb[0].mxu0 %v2949
        %v2951 = vpop.f32.mrb[0].mxu0
        %v2952 = vadd.f32 %v2795, %v2951
        %v2953 = vpop.f32.mrb[0].mxu0
        %v2954 = vadd.f32 %v2797, %v2953
        %2955 = vmatprep.mubr.f32.mxu0 0.0
        %v2956 = vand.u32 %v2446, 4294901760
        %v2957 = vsub.f32 %v2446, %v2956
        %2958 = vmatmul.mubr.f32.gmra.mrb[0].mxu0 %v2957
        %v2959 = vpop.f32.mrb[0].mxu0
        %v2960 = vadd.f32 %v2802, %v2959
        %v2961 = vpop.f32.mrb[0].mxu0
        %v2962 = vadd.f32 %v2804, %v2961
        %2963 = vmatprep.mubr.f32.mxu0 0.0
        %v2964 = vand.u32 %v2449, 4294901760
        %v2965 = vsub.f32 %v2449, %v2964
        %2966 = vmatmul.mubr.f32.gmra.mrb[0].mxu0 %v2965
        %v2967 = vpop.f32.mrb[0].mxu0
        %v2968 = vadd.f32 %v2809, %v2967
        %v2969 = vpop.f32.mrb[0].mxu0
        %v2970 = vadd.f32 %v2811, %v2969
        %2971 = vmatprep.mubr.f32.mxu0 0.0
        %v2972 = vand.u32 %v2452, 4294901760
        %v2973 = vsub.f32 %v2452, %v2972
        %2974 = vmatmul.mubr.f32.gmra.mrb[0].mxu0 %v2973
        %v2975 = vpop.f32.mrb[0].mxu0
        %v2976 = vadd.f32 %v2816, %v2975
        %v2977 = vpop.f32.mrb[0].mxu0
        %v2978 = vadd.f32 %v2818, %v2977
        %2979 = vmatprep.mubr.f32.mxu0 0.0
        %v2980 = vand.u32 %v2455, 4294901760
        %v2981 = vsub.f32 %v2455, %v2980
        %2982 = vmatmul.mubr.f32.gmra.mrb[0].mxu0 %v2981
        %v2983 = vpop.f32.mrb[0].mxu0
        %v2984 = vadd.f32 %v2823, %v2983
        %v2985 = vpop.f32.mrb[0].mxu0
        %v2986 = vadd.f32 %v2825, %v2985
        %2987 = vdwg.mxu0
        %v2988 = vand.u32 %v2362, 4294901760
        %2989 = vmatprep.subr.mxu0 %v2988
        %v2990 = vand.u32 %v2361, 4294901760
        %2991 = vmatpush1.msra.mxu0 %v2990
        %v2992 = vand.u32 %v2364, 4294901760
        %2993 = vmatprep.subr.mxu0 %v2992
        %v2994 = vand.u32 %v2363, 4294901760
        %2995 = vmatpush1.msra.mxu0 %v2994
        %v2996 = vand.u32 %v2366, 4294901760
        %2997 = vmatprep.subr.mxu0 %v2996
        %v2998 = vand.u32 %v2365, 4294901760
        %2999 = vmatpush1.msra.mxu0 %v2998
        %v3000 = vand.u32 %v2368, 4294901760
        %3001 = vmatprep.subr.mxu0 %v3000
        %v3002 = vand.u32 %v2367, 4294901760
        %3003 = vmatpush1.msra.mxu0 %v3002
        %v3004 = vand.u32 %v2370, 4294901760
        %3005 = vmatprep.subr.mxu0 %v3004
        %v3006 = vand.u32 %v2369, 4294901760
        %3007 = vmatpush1.msra.mxu0 %v3006
        %v3008 = vand.u32 %v2372, 4294901760
        %3009 = vmatprep.subr.mxu0 %v3008
        %v3010 = vand.u32 %v2371, 4294901760
        %3011 = vmatpush1.msra.mxu0 %v3010
        %v3012 = vand.u32 %v2374, 4294901760
        %3013 = vmatprep.subr.mxu0 %v3012
        %v3014 = vand.u32 %v2373, 4294901760
        %3015 = vmatpush1.msra.mxu0 %v3014
        %v3016 = vand.u32 %v2376, 4294901760
        %3017 = vmatprep.subr.mxu0 %v3016
        %v3018 = vand.u32 %v2375, 4294901760
        %3019 = vmatpush1.msra.mxu0 %v3018
        %3020 = vmatprep.subr.mxu0 0.0
        %3021 = vmatpush1.msra.mxu0 0.0
        %3022 = vmatprep.subr.mxu0 0.0
        %3023 = vmatpush1.msra.mxu0 0.0
        %3024 = vmatprep.subr.mxu0 0.0
        %3025 = vmatpush1.msra.mxu0 0.0
        %3026 = vmatprep.subr.mxu0 0.0
        %3027 = vmatpush1.msra.mxu0 0.0
        %3028 = vmatprep.subr.mxu0 0.0
        %3029 = vmatpush1.msra.mxu0 0.0
        %3030 = vmatprep.subr.mxu0 0.0
        %3031 = vmatpush1.msra.mxu0 0.0
        %3032 = vmatprep.subr.mxu0 0.0
        %3033 = vmatpush1.msra.mxu0 0.0
        %3034 = vmatprep.subr.mxu0 0.0
        %3035 = vmatpush1.msra.mxu0 0.0
        %3036 = vmatprep.subr.mxu0 0.0
        %3037 = vmatpush1.msra.mxu0 0.0
        %3038 = vmatprep.subr.mxu0 0.0
        %3039 = vmatpush1.msra.mxu0 0.0
        %3040 = vmatprep.subr.mxu0 0.0
        %3041 = vmatpush1.msra.mxu0 0.0
        %3042 = vmatprep.subr.mxu0 0.0
        %3043 = vmatpush1.msra.mxu0 0.0
        %3044 = vmatprep.subr.mxu0 0.0
        %3045 = vmatpush1.msra.mxu0 0.0
        %3046 = vmatprep.subr.mxu0 0.0
        %3047 = vmatpush1.msra.mxu0 0.0
        %3048 = vmatprep.subr.mxu0 0.0
        %3049 = vmatpush1.msra.mxu0 0.0
        %3050 = vmatprep.subr.mxu0 0.0
        %3051 = vmatpush1.msra.mxu0 0.0
        %3052 = vmatprep.subr.mxu0 0.0
        %3053 = vmatpush1.msra.mxu0 0.0
        %3054 = vmatprep.subr.mxu0 0.0
        %3055 = vmatpush1.msra.mxu0 0.0
        %3056 = vmatprep.subr.mxu0 0.0
        %3057 = vmatpush1.msra.mxu0 0.0
        %3058 = vmatprep.subr.mxu0 0.0
        %3059 = vmatpush1.msra.mxu0 0.0
        %3060 = vmatprep.subr.mxu0 0.0
        %3061 = vmatpush1.msra.mxu0 0.0
        %3062 = vmatprep.subr.mxu0 0.0
        %3063 = vmatpush1.msra.mxu0 0.0
        %3064 = vmatprep.subr.mxu0 0.0
        %3065 = vmatpush1.msra.mxu0 0.0
        %3066 = vmatprep.subr.mxu0 0.0
        %3067 = vmatpush1.msra.mxu0 0.0
        %3068 = vmatprep.mubr.f32.mxu0 0.0
        %v3069 = vand.u32 %v2434, 4294901760
        %v3070 = vsub.f32 %v2434, %v3069
        %v3071 = vand.u32 %v3070, 4294901760
        %3072 = vmatmul.mubr.f32.gmra.mrb[0].mxu0 %v3071
        %v3073 = vpop.f32.mrb[0].mxu0
        %v3074 = vadd.f32 %v2928, %v3073
        %v3075 = vpop.f32.mrb[0].mxu0
        %v3076 = vadd.f32 %v2930, %v3075
        %3077 = vmatprep.mubr.f32.mxu0 0.0
        %v3078 = vand.u32 %v2437, 4294901760
        %v3079 = vsub.f32 %v2437, %v3078
        %v3080 = vand.u32 %v3079, 4294901760
        %3081 = vmatmul.mubr.f32.gmra.mrb[0].mxu0 %v3080
        %v3082 = vpop.f32.mrb[0].mxu0
        %v3083 = vadd.f32 %v2936, %v3082
        %v3084 = vpop.f32.mrb[0].mxu0
        %v3085 = vadd.f32 %v2938, %v3084
        %3086 = vmatprep.mubr.f32.mxu0 0.0
        %v3087 = vand.u32 %v2440, 4294901760
        %v3088 = vsub.f32 %v2440, %v3087
        %v3089 = vand.u32 %v3088, 4294901760
        %3090 = vmatmul.mubr.f32.gmra.mrb[0].mxu0 %v3089
        %v3091 = vpop.f32.mrb[0].mxu0
        %v3092 = vadd.f32 %v2944, %v3091
        %v3093 = vpop.f32.mrb[0].mxu0
        %v3094 = vadd.f32 %v2946, %v3093
        %3095 = vmatprep.mubr.f32.mxu0 0.0
        %v3096 = vand.u32 %v2443, 4294901760
        %v3097 = vsub.f32 %v2443, %v3096
        %v3098 = vand.u32 %v3097, 4294901760
        %3099 = vmatmul.mubr.f32.gmra.mrb[0].mxu0 %v3098
        %v3100 = vpop.f32.mrb[0].mxu0
        %v3101 = vadd.f32 %v2952, %v3100
        %v3102 = vpop.f32.mrb[0].mxu0
        %v3103 = vadd.f32 %v2954, %v3102
        %3104 = vmatprep.mubr.f32.mxu0 0.0
        %v3105 = vand.u32 %v2446, 4294901760
        %v3106 = vsub.f32 %v2446, %v3105
        %v3107 = vand.u32 %v3106, 4294901760
        %3108 = vmatmul.mubr.f32.gmra.mrb[0].mxu0 %v3107
        %v3109 = vpop.f32.mrb[0].mxu0
        %v3110 = vadd.f32 %v2960, %v3109
        %v3111 = vpop.f32.mrb[0].mxu0
        %v3112 = vadd.f32 %v2962, %v3111
        %3113 = vmatprep.mubr.f32.mxu0 0.0
        %v3114 = vand.u32 %v2449, 4294901760
        %v3115 = vsub.f32 %v2449, %v3114
        %v3116 = vand.u32 %v3115, 4294901760
        %3117 = vmatmul.mubr.f32.gmra.mrb[0].mxu0 %v3116
        %v3118 = vpop.f32.mrb[0].mxu0
        %v3119 = vadd.f32 %v2968, %v3118
        %v3120 = vpop.f32.mrb[0].mxu0
        %v3121 = vadd.f32 %v2970, %v3120
        %3122 = vmatprep.mubr.f32.mxu0 0.0
        %v3123 = vand.u32 %v2452, 4294901760
        %v3124 = vsub.f32 %v2452, %v3123
        %v3125 = vand.u32 %v3124, 4294901760
        %3126 = vmatmul.mubr.f32.gmra.mrb[0].mxu0 %v3125
        %v3127 = vpop.f32.mrb[0].mxu0
        %v3128 = vadd.f32 %v2976, %v3127
        %v3129 = vpop.f32.mrb[0].mxu0
        %v3130 = vadd.f32 %v2978, %v3129
        %3131 = vmatprep.mubr.f32.mxu0 0.0
        %v3132 = vand.u32 %v2455, 4294901760
        %v3133 = vsub.f32 %v2455, %v3132
        %v3134 = vand.u32 %v3133, 4294901760
        %3135 = vmatmul.mubr.f32.gmra.mrb[0].mxu0 %v3134
        %v3136 = vpop.f32.mrb[0].mxu0
        %v3137 = vadd.f32 %v2984, %v3136
        %v3138 = vpop.f32.mrb[0].mxu0
        %v3139 = vadd.f32 %v2986, %v3138
        %3140 = vdwg.mxu0
        %v3141 = vand.u32 %v2362, 4294901760
        %v3142 = vsub.f32 %v2362, %v3141
        %v3143 = vand.u32 %v3142, 4294901760
        %3144 = vmatprep.subr.mxu0 %v3143
        %v3145 = vand.u32 %v2361, 4294901760
        %v3146 = vsub.f32 %v2361, %v3145
        %v3147 = vand.u32 %v3146, 4294901760
        %3148 = vmatpush1.msra.mxu0 %v3147
        %v3149 = vand.u32 %v2364, 4294901760
        %v3150 = vsub.f32 %v2364, %v3149
        %v3151 = vand.u32 %v3150, 4294901760
        %3152 = vmatprep.subr.mxu0 %v3151
        %v3153 = vand.u32 %v2363, 4294901760
        %v3154 = vsub.f32 %v2363, %v3153
        %v3155 = vand.u32 %v3154, 4294901760
        %3156 = vmatpush1.msra.mxu0 %v3155
        %v3157 = vand.u32 %v2366, 4294901760
        %v3158 = vsub.f32 %v2366, %v3157
        %v3159 = vand.u32 %v3158, 4294901760
        %3160 = vmatprep.subr.mxu0 %v3159
        %v3161 = vand.u32 %v2365, 4294901760
        %v3162 = vsub.f32 %v2365, %v3161
        %v3163 = vand.u32 %v3162, 4294901760
        %3164 = vmatpush1.msra.mxu0 %v3163
        %v3165 = vand.u32 %v2368, 4294901760
        %v3166 = vsub.f32 %v2368, %v3165
        %v3167 = vand.u32 %v3166, 4294901760
        %3168 = vmatprep.subr.mxu0 %v3167
        %v3169 = vand.u32 %v2367, 4294901760
        %v3170 = vsub.f32 %v2367, %v3169
        %v3171 = vand.u32 %v3170, 4294901760
        %3172 = vmatpush1.msra.mxu0 %v3171
        %v3173 = vand.u32 %v2370, 4294901760
        %v3174 = vsub.f32 %v2370, %v3173
        %v3175 = vand.u32 %v3174, 4294901760
        %3176 = vmatprep.subr.mxu0 %v3175
        %v3177 = vand.u32 %v2369, 4294901760
        %v3178 = vsub.f32 %v2369, %v3177
        %v3179 = vand.u32 %v3178, 4294901760
        %3180 = vmatpush1.msra.mxu0 %v3179
        %v3181 = vand.u32 %v2372, 4294901760
        %v3182 = vsub.f32 %v2372, %v3181
        %v3183 = vand.u32 %v3182, 4294901760
        %3184 = vmatprep.subr.mxu0 %v3183
        %v3185 = vand.u32 %v2371, 4294901760
        %v3186 = vsub.f32 %v2371, %v3185
        %v3187 = vand.u32 %v3186, 4294901760
        %3188 = vmatpush1.msra.mxu0 %v3187
        %v3189 = vand.u32 %v2374, 4294901760
        %v3190 = vsub.f32 %v2374, %v3189
        %v3191 = vand.u32 %v3190, 4294901760
        %3192 = vmatprep.subr.mxu0 %v3191
        %v3193 = vand.u32 %v2373, 4294901760
        %v3194 = vsub.f32 %v2373, %v3193
        %v3195 = vand.u32 %v3194, 4294901760
        %3196 = vmatpush1.msra.mxu0 %v3195
        %v3197 = vand.u32 %v2376, 4294901760
        %v3198 = vsub.f32 %v2376, %v3197
        %v3199 = vand.u32 %v3198, 4294901760
        %3200 = vmatprep.subr.mxu0 %v3199
        %v3201 = vand.u32 %v2375, 4294901760
        %v3202 = vsub.f32 %v2375, %v3201
        %v3203 = vand.u32 %v3202, 4294901760
        %3204 = vmatpush1.msra.mxu0 %v3203
        %3205 = vmatprep.subr.mxu0 0.0
        %3206 = vmatpush1.msra.mxu0 0.0
        %3207 = vmatprep.subr.mxu0 0.0
        %3208 = vmatpush1.msra.mxu0 0.0
        %3209 = vmatprep.subr.mxu0 0.0
        %3210 = vmatpush1.msra.mxu0 0.0
        %3211 = vmatprep.subr.mxu0 0.0
        %3212 = vmatpush1.msra.mxu0 0.0
        %3213 = vmatprep.subr.mxu0 0.0
        %3214 = vmatpush1.msra.mxu0 0.0
        %3215 = vmatprep.subr.mxu0 0.0
        %3216 = vmatpush1.msra.mxu0 0.0
        %3217 = vmatprep.subr.mxu0 0.0
        %3218 = vmatpush1.msra.mxu0 0.0
        %3219 = vmatprep.subr.mxu0 0.0
        %3220 = vmatpush1.msra.mxu0 0.0
        %3221 = vmatprep.subr.mxu0 0.0
        %3222 = vmatpush1.msra.mxu0 0.0
        %3223 = vmatprep.subr.mxu0 0.0
        %3224 = vmatpush1.msra.mxu0 0.0
        %3225 = vmatprep.subr.mxu0 0.0
        %3226 = vmatpush1.msra.mxu0 0.0
        %3227 = vmatprep.subr.mxu0 0.0
        %3228 = vmatpush1.msra.mxu0 0.0
        %3229 = vmatprep.subr.mxu0 0.0
        %3230 = vmatpush1.msra.mxu0 0.0
        %3231 = vmatprep.subr.mxu0 0.0
        %3232 = vmatpush1.msra.mxu0 0.0
        %3233 = vmatprep.subr.mxu0 0.0
        %3234 = vmatpush1.msra.mxu0 0.0
        %3235 = vmatprep.subr.mxu0 0.0
        %3236 = vmatpush1.msra.mxu0 0.0
        %3237 = vmatprep.subr.mxu0 0.0
        %3238 = vmatpush1.msra.mxu0 0.0
        %3239 = vmatprep.subr.mxu0 0.0
        %3240 = vmatpush1.msra.mxu0 0.0
        %3241 = vmatprep.subr.mxu0 0.0
        %3242 = vmatpush1.msra.mxu0 0.0
        %3243 = vmatprep.subr.mxu0 0.0
        %3244 = vmatpush1.msra.mxu0 0.0
        %3245 = vmatprep.subr.mxu0 0.0
        %3246 = vmatpush1.msra.mxu0 0.0
        %3247 = vmatprep.subr.mxu0 0.0
        %3248 = vmatpush1.msra.mxu0 0.0
        %3249 = vmatprep.subr.mxu0 0.0
        %3250 = vmatpush1.msra.mxu0 0.0
        %3251 = vmatprep.subr.mxu0 0.0
        %3252 = vmatpush1.msra.mxu0 0.0
        %3253 = vmatprep.mubr.f32.mxu0 0.0
        %v3254 = vand.u32 %v2434, 4294901760
        %3255 = vmatmul.mubr.f32.gmra.mrb[0].mxu0 %v3254
        %v3256 = vpop.f32.mrb[0].mxu0
        %v3257 = vadd.f32 %v3074, %v3256
        %v3258 = vpop.f32.mrb[0].mxu0
        %v3259 = vadd.f32 %v3076, %v3258
        %3260 = vmatprep.mubr.f32.mxu0 0.0
        %v3261 = vand.u32 %v2437, 4294901760
        %3262 = vmatmul.mubr.f32.gmra.mrb[0].mxu0 %v3261
        %v3263 = vpop.f32.mrb[0].mxu0
        %v3264 = vadd.f32 %v3083, %v3263
        %v3265 = vpop.f32.mrb[0].mxu0
        %v3266 = vadd.f32 %v3085, %v3265
        %3267 = vmatprep.mubr.f32.mxu0 0.0
        %v3268 = vand.u32 %v2440, 4294901760
        %3269 = vmatmul.mubr.f32.gmra.mrb[0].mxu0 %v3268
        %v3270 = vpop.f32.mrb[0].mxu0
        %v3271 = vadd.f32 %v3092, %v3270
        %v3272 = vpop.f32.mrb[0].mxu0
        %v3273 = vadd.f32 %v3094, %v3272
        %3274 = vmatprep.mubr.f32.mxu0 0.0
        %v3275 = vand.u32 %v2443, 4294901760
        %3276 = vmatmul.mubr.f32.gmra.mrb[0].mxu0 %v3275
        %v3277 = vpop.f32.mrb[0].mxu0
        %v3278 = vadd.f32 %v3101, %v3277
        %v3279 = vpop.f32.mrb[0].mxu0
        %v3280 = vadd.f32 %v3103, %v3279
        %3281 = vmatprep.mubr.f32.mxu0 0.0
        %v3282 = vand.u32 %v2446, 4294901760
        %3283 = vmatmul.mubr.f32.gmra.mrb[0].mxu0 %v3282
        %v3284 = vpop.f32.mrb[0].mxu0
        %v3285 = vadd.f32 %v3110, %v3284
        %v3286 = vpop.f32.mrb[0].mxu0
        %v3287 = vadd.f32 %v3112, %v3286
        %3288 = vmatprep.mubr.f32.mxu0 0.0
        %v3289 = vand.u32 %v2449, 4294901760
        %3290 = vmatmul.mubr.f32.gmra.mrb[0].mxu0 %v3289
        %v3291 = vpop.f32.mrb[0].mxu0
        %v3292 = vadd.f32 %v3119, %v3291
        %v3293 = vpop.f32.mrb[0].mxu0
        %v3294 = vadd.f32 %v3121, %v3293
        %3295 = vmatprep.mubr.f32.mxu0 0.0
        %v3296 = vand.u32 %v2452, 4294901760
        %3297 = vmatmul.mubr.f32.gmra.mrb[0].mxu0 %v3296
        %v3298 = vpop.f32.mrb[0].mxu0
        %v3299 = vadd.f32 %v3128, %v3298
        %v3300 = vpop.f32.mrb[0].mxu0
        %v3301 = vadd.f32 %v3130, %v3300
        %3302 = vmatprep.mubr.f32.mxu0 0.0
        %v3303 = vand.u32 %v2455, 4294901760
        %3304 = vmatmul.mubr.f32.gmra.mrb[0].mxu0 %v3303
        %v3305 = vpop.f32.mrb[0].mxu0
        %v3306 = vadd.f32 %v3137, %v3305
        %v3307 = vpop.f32.mrb[0].mxu0
        %v3308 = vadd.f32 %v3139, %v3307
        %3309 = vdwg.mxu0
        %v3310 = vand.u32 %v2362, 4294901760
        %3311 = vmatprep.subr.mxu0 %v3310
        %v3312 = vand.u32 %v2361, 4294901760
        %3313 = vmatpush1.msra.mxu0 %v3312
        %v3314 = vand.u32 %v2364, 4294901760
        %3315 = vmatprep.subr.mxu0 %v3314
        %v3316 = vand.u32 %v2363, 4294901760
        %3317 = vmatpush1.msra.mxu0 %v3316
        %v3318 = vand.u32 %v2366, 4294901760
        %3319 = vmatprep.subr.mxu0 %v3318
        %v3320 = vand.u32 %v2365, 4294901760
        %3321 = vmatpush1.msra.mxu0 %v3320
        %v3322 = vand.u32 %v2368, 4294901760
        %3323 = vmatprep.subr.mxu0 %v3322
        %v3324 = vand.u32 %v2367, 4294901760
        %3325 = vmatpush1.msra.mxu0 %v3324
        %v3326 = vand.u32 %v2370, 4294901760
        %3327 = vmatprep.subr.mxu0 %v3326
        %v3328 = vand.u32 %v2369, 4294901760
        %3329 = vmatpush1.msra.mxu0 %v3328
        %v3330 = vand.u32 %v2372, 4294901760
        %3331 = vmatprep.subr.mxu0 %v3330
        %v3332 = vand.u32 %v2371, 4294901760
        %3333 = vmatpush1.msra.mxu0 %v3332
        %v3334 = vand.u32 %v2374, 4294901760
        %3335 = vmatprep.subr.mxu0 %v3334
        %v3336 = vand.u32 %v2373, 4294901760
        %3337 = vmatpush1.msra.mxu0 %v3336
        %v3338 = vand.u32 %v2376, 4294901760
        %3339 = vmatprep.subr.mxu0 %v3338
        %v3340 = vand.u32 %v2375, 4294901760
        %3341 = vmatpush1.msra.mxu0 %v3340
        %3342 = vmatprep.subr.mxu0 0.0
        %3343 = vmatpush1.msra.mxu0 0.0
        %3344 = vmatprep.subr.mxu0 0.0
        %3345 = vmatpush1.msra.mxu0 0.0
        %3346 = vmatprep.subr.mxu0 0.0
        %3347 = vmatpush1.msra.mxu0 0.0
        %3348 = vmatprep.subr.mxu0 0.0
        %3349 = vmatpush1.msra.mxu0 0.0
        %3350 = vmatprep.subr.mxu0 0.0
        %3351 = vmatpush1.msra.mxu0 0.0
        %3352 = vmatprep.subr.mxu0 0.0
        %3353 = vmatpush1.msra.mxu0 0.0
        %3354 = vmatprep.subr.mxu0 0.0
        %3355 = vmatpush1.msra.mxu0 0.0
        %3356 = vmatprep.subr.mxu0 0.0
        %3357 = vmatpush1.msra.mxu0 0.0
        %3358 = vmatprep.subr.mxu0 0.0
        %3359 = vmatpush1.msra.mxu0 0.0
        %3360 = vmatprep.subr.mxu0 0.0
        %3361 = vmatpush1.msra.mxu0 0.0
        %3362 = vmatprep.subr.mxu0 0.0
        %3363 = vmatpush1.msra.mxu0 0.0
        %3364 = vmatprep.subr.mxu0 0.0
        %3365 = vmatpush1.msra.mxu0 0.0
        %3366 = vmatprep.subr.mxu0 0.0
        %3367 = vmatpush1.msra.mxu0 0.0
        %3368 = vmatprep.subr.mxu0 0.0
        %3369 = vmatpush1.msra.mxu0 0.0
        %3370 = vmatprep.subr.mxu0 0.0
        %3371 = vmatpush1.msra.mxu0 0.0
        %3372 = vmatprep.subr.mxu0 0.0
        %3373 = vmatpush1.msra.mxu0 0.0
        %3374 = vmatprep.subr.mxu0 0.0
        %3375 = vmatpush1.msra.mxu0 0.0
        %3376 = vmatprep.subr.mxu0 0.0
        %3377 = vmatpush1.msra.mxu0 0.0
        %3378 = vmatprep.subr.mxu0 0.0
        %3379 = vmatpush1.msra.mxu0 0.0
        %3380 = vmatprep.subr.mxu0 0.0
        %3381 = vmatpush1.msra.mxu0 0.0
        %3382 = vmatprep.subr.mxu0 0.0
        %3383 = vmatpush1.msra.mxu0 0.0
        %3384 = vmatprep.subr.mxu0 0.0
        %3385 = vmatpush1.msra.mxu0 0.0
        %3386 = vmatprep.subr.mxu0 0.0
        %3387 = vmatpush1.msra.mxu0 0.0
        %3388 = vmatprep.subr.mxu0 0.0
        %3389 = vmatpush1.msra.mxu0 0.0
        %3390 = vmatprep.mubr.f32.mxu0 0.0
        %v3391 = vand.u32 %v2434, 4294901760
        %3392 = vmatmul.mubr.f32.gmra.mrb[0].mxu0 %v3391
        %v3393 = vpop.f32.mrb[0].mxu0
        %v3394 = vadd.f32 %v3257, %v3393
        %v3395 = vpop.f32.mrb[0].mxu0
        %v3396 = vadd.f32 %v3259, %v3395
        %3397 = vmatprep.mubr.f32.mxu0 0.0
        %v3398 = vand.u32 %v2437, 4294901760
        %3399 = vmatmul.mubr.f32.gmra.mrb[0].mxu0 %v3398
        %v3400 = vpop.f32.mrb[0].mxu0
        %v3401 = vadd.f32 %v3264, %v3400
        %v3402 = vpop.f32.mrb[0].mxu0
        %v3403 = vadd.f32 %v3266, %v3402
        %3404 = vmatprep.mubr.f32.mxu0 0.0
        %v3405 = vand.u32 %v2440, 4294901760
        %3406 = vmatmul.mubr.f32.gmra.mrb[0].mxu0 %v3405
        %v3407 = vpop.f32.mrb[0].mxu0
        %v3408 = vadd.f32 %v3271, %v3407
        %v3409 = vpop.f32.mrb[0].mxu0
        %v3410 = vadd.f32 %v3273, %v3409
        %3411 = vmatprep.mubr.f32.mxu0 0.0
        %v3412 = vand.u32 %v2443, 4294901760
        %3413 = vmatmul.mubr.f32.gmra.mrb[0].mxu0 %v3412
        %v3414 = vpop.f32.mrb[0].mxu0
        %v3415 = vadd.f32 %v3278, %v3414
        %v3416 = vpop.f32.mrb[0].mxu0
        %v3417 = vadd.f32 %v3280, %v3416
        %3418 = vmatprep.mubr.f32.mxu0 0.0
        %v3419 = vand.u32 %v2446, 4294901760
        %3420 = vmatmul.mubr.f32.gmra.mrb[0].mxu0 %v3419
        %v3421 = vpop.f32.mrb[0].mxu0
        %v3422 = vadd.f32 %v3285, %v3421
        %v3423 = vpop.f32.mrb[0].mxu0
        %v3424 = vadd.f32 %v3287, %v3423
        %3425 = vmatprep.mubr.f32.mxu0 0.0
        %v3426 = vand.u32 %v2449, 4294901760
        %3427 = vmatmul.mubr.f32.gmra.mrb[0].mxu0 %v3426
        %v3428 = vpop.f32.mrb[0].mxu0
        %v3429 = vadd.f32 %v3292, %v3428
        %v3430 = vpop.f32.mrb[0].mxu0
        %v3431 = vadd.f32 %v3294, %v3430
        %3432 = vmatprep.mubr.f32.mxu0 0.0
        %v3433 = vand.u32 %v2452, 4294901760
        %3434 = vmatmul.mubr.f32.gmra.mrb[0].mxu0 %v3433
        %v3435 = vpop.f32.mrb[0].mxu0
        %v3436 = vadd.f32 %v3299, %v3435
        %v3437 = vpop.f32.mrb[0].mxu0
        %v3438 = vadd.f32 %v3301, %v3437
        %3439 = vmatprep.mubr.f32.mxu0 0.0
        %v3440 = vand.u32 %v2455, 4294901760
        %3441 = vmatmul.mubr.f32.gmra.mrb[0].mxu0 %v3440
        %v3442 = vpop.f32.mrb[0].mxu0
        %v3443 = vadd.f32 %v3306, %v3442
        %v3444 = vpop.f32.mrb[0].mxu0
        %v3445 = vadd.f32 %v3308, %v3444
        %3446 = vdwg.mxu0
        %v3447 = vmax.f32 %v3394, 0.0
        %v3448 = vmax.f32 %v3396, 0.0
        %v3449 = vmax.f32 %v3401, 0.0
        %v3450 = vmax.f32 %v3403, 0.0
        %v3451 = vmax.f32 %v3408, 0.0
        %v3452 = vmax.f32 %v3410, 0.0
        %v3453 = vmax.f32 %v3415, 0.0
        %v3454 = vmax.f32 %v3417, 0.0
        %v3455 = vmax.f32 %v3422, 0.0
        %v3456 = vmax.f32 %v3424, 0.0
        %v3457 = vmax.f32 %v3429, 0.0
        %v3458 = vmax.f32 %v3431, 0.0
        %v3459 = vmax.f32 %v3436, 0.0
        %v3460 = vmax.f32 %v3438, 0.0
        %v3461 = vmax.f32 %v3443, 0.0
        %v3462 = vmax.f32 %v3445, 0.0
        %v3463 = vld [vmem:[%s7] sm:$0xff]
        %v3464 = vld [vmem:[%s7 + $0x8] sm:$0xff]
        %v3465 = vld [vmem:[%s8] sm:$0xff]
        %v3466 = vld [vmem:[%s8 + $0x8] sm:$0xff]
        %3468 = vset.pattern.permute.xlu0 0
        %3469 = vperm.xlu0 %3468, %v3465
        %v3470 = vpop.permute.xlu0 %3469
        %3473 = vset.pattern.permute.xlu0 0
        %3474 = vperm.xlu0 %3473, %v3466
        %v3475 = vpop.permute.xlu0 %3474
        %v3478 = vsel %vm1346, %v3463, 0
        %v3481 = vsel %vm1346, %v3464, 0
        %v3483 = vand.u32 %v3448, 4294901760
        %3484 = vmatprep.subr.mxu0 %v3483
        %v3485 = vand.u32 %v3447, 4294901760
        %3486 = vmatpush1.msra.mxu0 %v3485
        %v3487 = vand.u32 %v3450, 4294901760
        %3488 = vmatprep.subr.mxu0 %v3487
        %v3489 = vand.u32 %v3449, 4294901760
        %3490 = vmatpush1.msra.mxu0 %v3489
        %v3491 = vand.u32 %v3452, 4294901760
        %3492 = vmatprep.subr.mxu0 %v3491
        %v3493 = vand.u32 %v3451, 4294901760
        %3494 = vmatpush1.msra.mxu0 %v3493
        %v3495 = vand.u32 %v3454, 4294901760
        %3496 = vmatprep.subr.mxu0 %v3495
        %v3497 = vand.u32 %v3453, 4294901760
        %3498 = vmatpush1.msra.mxu0 %v3497
        %v3499 = vand.u32 %v3456, 4294901760
        %3500 = vmatprep.subr.mxu0 %v3499
        %v3501 = vand.u32 %v3455, 4294901760
        %3502 = vmatpush1.msra.mxu0 %v3501
        %v3503 = vand.u32 %v3458, 4294901760
        %3504 = vmatprep.subr.mxu0 %v3503
        %v3505 = vand.u32 %v3457, 4294901760
        %3506 = vmatpush1.msra.mxu0 %v3505
        %v3507 = vand.u32 %v3460, 4294901760
        %3508 = vmatprep.subr.mxu0 %v3507
        %v3509 = vand.u32 %v3459, 4294901760
        %3510 = vmatpush1.msra.mxu0 %v3509
        %v3511 = vand.u32 %v3462, 4294901760
        %3512 = vmatprep.subr.mxu0 %v3511
        %v3513 = vand.u32 %v3461, 4294901760
        %3514 = vmatpush1.msra.mxu0 %v3513
        %3515 = vmatprep.subr.mxu0 0.0
        %3516 = vmatpush1.msra.mxu0 0.0
        %3517 = vmatprep.subr.mxu0 0.0
        %3518 = vmatpush1.msra.mxu0 0.0
        %3519 = vmatprep.subr.mxu0 0.0
        %3520 = vmatpush1.msra.mxu0 0.0
        %3521 = vmatprep.subr.mxu0 0.0
        %3522 = vmatpush1.msra.mxu0 0.0
        %3523 = vmatprep.subr.mxu0 0.0
        %3524 = vmatpush1.msra.mxu0 0.0
        %3525 = vmatprep.subr.mxu0 0.0
        %3526 = vmatpush1.msra.mxu0 0.0
        %3527 = vmatprep.subr.mxu0 0.0
        %3528 = vmatpush1.msra.mxu0 0.0
        %3529 = vmatprep.subr.mxu0 0.0
        %3530 = vmatpush1.msra.mxu0 0.0
        %3531 = vmatprep.subr.mxu0 0.0
        %3532 = vmatpush1.msra.mxu0 0.0
        %3533 = vmatprep.subr.mxu0 0.0
        %3534 = vmatpush1.msra.mxu0 0.0
        %3535 = vmatprep.subr.mxu0 0.0
        %3536 = vmatpush1.msra.mxu0 0.0
        %3537 = vmatprep.subr.mxu0 0.0
        %3538 = vmatpush1.msra.mxu0 0.0
        %3539 = vmatprep.subr.mxu0 0.0
        %3540 = vmatpush1.msra.mxu0 0.0
        %3541 = vmatprep.subr.mxu0 0.0
        %3542 = vmatpush1.msra.mxu0 0.0
        %3543 = vmatprep.subr.mxu0 0.0
        %3544 = vmatpush1.msra.mxu0 0.0
        %3545 = vmatprep.subr.mxu0 0.0
        %3546 = vmatpush1.msra.mxu0 0.0
        %3547 = vmatprep.subr.mxu0 0.0
        %3548 = vmatpush1.msra.mxu0 0.0
        %3549 = vmatprep.subr.mxu0 0.0
        %3550 = vmatpush1.msra.mxu0 0.0
        %3551 = vmatprep.subr.mxu0 0.0
        %3552 = vmatpush1.msra.mxu0 0.0
        %3553 = vmatprep.subr.mxu0 0.0
        %3554 = vmatpush1.msra.mxu0 0.0
        %3555 = vmatprep.subr.mxu0 0.0
        %3556 = vmatpush1.msra.mxu0 0.0
        %3557 = vmatprep.subr.mxu0 0.0
        %3558 = vmatpush1.msra.mxu0 0.0
        %3559 = vmatprep.subr.mxu0 0.0
        %3560 = vmatpush1.msra.mxu0 0.0
        %3561 = vmatprep.subr.mxu0 0.0
        %3562 = vmatpush1.msra.mxu0 0.0
        %3563 = vmatprep.mubr.f32.mxu0 0.0
        %v3564 = vand.u32 %v3478, 4294901760
        %v3565 = vsub.f32 %v3478, %v3564
        %v3566 = vand.u32 %v3565, 4294901760
        %v3567 = vsub.f32 %v3565, %v3566
        %v3568 = vand.u32 %v3567, 4294901760
        %3569 = vmatmul.mubr.f32.gmra.mrb[0].mxu0 %v3568
        %v3570 = vpop.f32.mrb[0].mxu0
        %v3571 = vadd.f32 %v3470, %v3570
        %v3572 = vpop.f32.mrb[0].mxu0
        %v3573 = vadd.f32 %v3470, %v3572
        %3574 = vmatprep.mubr.f32.mxu0 0.0
        %v3575 = vand.u32 %v3481, 4294901760
        %v3576 = vsub.f32 %v3481, %v3575
        %v3577 = vand.u32 %v3576, 4294901760
        %v3578 = vsub.f32 %v3576, %v3577
        %v3579 = vand.u32 %v3578, 4294901760
        %3580 = vmatmul.mubr.f32.gmra.mrb[0].mxu0 %v3579
        %v3581 = vpop.f32.mrb[0].mxu0
        %v3582 = vadd.f32 %v3475, %v3581
        %v3583 = vpop.f32.mrb[0].mxu0
        %v3584 = vadd.f32 %v3475, %v3583
        %3585 = vdwg.mxu0
        %v3586 = vand.u32 %v3448, 4294901760
        %v3587 = vsub.f32 %v3448, %v3586
        %v3588 = vand.u32 %v3587, 4294901760
        %v3589 = vsub.f32 %v3587, %v3588
        %v3590 = vand.u32 %v3589, 4294901760
        %3591 = vmatprep.subr.mxu0 %v3590
        %v3592 = vand.u32 %v3447, 4294901760
        %v3593 = vsub.f32 %v3447, %v3592
        %v3594 = vand.u32 %v3593, 4294901760
        %v3595 = vsub.f32 %v3593, %v3594
        %v3596 = vand.u32 %v3595, 4294901760
        %3597 = vmatpush1.msra.mxu0 %v3596
        %v3598 = vand.u32 %v3450, 4294901760
        %v3599 = vsub.f32 %v3450, %v3598
        %v3600 = vand.u32 %v3599, 4294901760
        %v3601 = vsub.f32 %v3599, %v3600
        %v3602 = vand.u32 %v3601, 4294901760
        %3603 = vmatprep.subr.mxu0 %v3602
        %v3604 = vand.u32 %v3449, 4294901760
        %v3605 = vsub.f32 %v3449, %v3604
        %v3606 = vand.u32 %v3605, 4294901760
        %v3607 = vsub.f32 %v3605, %v3606
        %v3608 = vand.u32 %v3607, 4294901760
        %3609 = vmatpush1.msra.mxu0 %v3608
        %v3610 = vand.u32 %v3452, 4294901760
        %v3611 = vsub.f32 %v3452, %v3610
        %v3612 = vand.u32 %v3611, 4294901760
        %v3613 = vsub.f32 %v3611, %v3612
        %v3614 = vand.u32 %v3613, 4294901760
        %3615 = vmatprep.subr.mxu0 %v3614
        %v3616 = vand.u32 %v3451, 4294901760
        %v3617 = vsub.f32 %v3451, %v3616
        %v3618 = vand.u32 %v3617, 4294901760
        %v3619 = vsub.f32 %v3617, %v3618
        %v3620 = vand.u32 %v3619, 4294901760
        %3621 = vmatpush1.msra.mxu0 %v3620
        %v3622 = vand.u32 %v3454, 4294901760
        %v3623 = vsub.f32 %v3454, %v3622
        %v3624 = vand.u32 %v3623, 4294901760
        %v3625 = vsub.f32 %v3623, %v3624
        %v3626 = vand.u32 %v3625, 4294901760
        %3627 = vmatprep.subr.mxu0 %v3626
        %v3628 = vand.u32 %v3453, 4294901760
        %v3629 = vsub.f32 %v3453, %v3628
        %v3630 = vand.u32 %v3629, 4294901760
        %v3631 = vsub.f32 %v3629, %v3630
        %v3632 = vand.u32 %v3631, 4294901760
        %3633 = vmatpush1.msra.mxu0 %v3632
        %v3634 = vand.u32 %v3456, 4294901760
        %v3635 = vsub.f32 %v3456, %v3634
        %v3636 = vand.u32 %v3635, 4294901760
        %v3637 = vsub.f32 %v3635, %v3636
        %v3638 = vand.u32 %v3637, 4294901760
        %3639 = vmatprep.subr.mxu0 %v3638
        %v3640 = vand.u32 %v3455, 4294901760
        %v3641 = vsub.f32 %v3455, %v3640
        %v3642 = vand.u32 %v3641, 4294901760
        %v3643 = vsub.f32 %v3641, %v3642
        %v3644 = vand.u32 %v3643, 4294901760
        %3645 = vmatpush1.msra.mxu0 %v3644
        %v3646 = vand.u32 %v3458, 4294901760
        %v3647 = vsub.f32 %v3458, %v3646
        %v3648 = vand.u32 %v3647, 4294901760
        %v3649 = vsub.f32 %v3647, %v3648
        %v3650 = vand.u32 %v3649, 4294901760
        %3651 = vmatprep.subr.mxu0 %v3650
        %v3652 = vand.u32 %v3457, 4294901760
        %v3653 = vsub.f32 %v3457, %v3652
        %v3654 = vand.u32 %v3653, 4294901760
        %v3655 = vsub.f32 %v3653, %v3654
        %v3656 = vand.u32 %v3655, 4294901760
        %3657 = vmatpush1.msra.mxu0 %v3656
        %v3658 = vand.u32 %v3460, 4294901760
        %v3659 = vsub.f32 %v3460, %v3658
        %v3660 = vand.u32 %v3659, 4294901760
        %v3661 = vsub.f32 %v3659, %v3660
        %v3662 = vand.u32 %v3661, 4294901760
        %3663 = vmatprep.subr.mxu0 %v3662
        %v3664 = vand.u32 %v3459, 4294901760
        %v3665 = vsub.f32 %v3459, %v3664
        %v3666 = vand.u32 %v3665, 4294901760
        %v3667 = vsub.f32 %v3665, %v3666
        %v3668 = vand.u32 %v3667, 4294901760
        %3669 = vmatpush1.msra.mxu0 %v3668
        %v3670 = vand.u32 %v3462, 4294901760
        %v3671 = vsub.f32 %v3462, %v3670
        %v3672 = vand.u32 %v3671, 4294901760
        %v3673 = vsub.f32 %v3671, %v3672
        %v3674 = vand.u32 %v3673, 4294901760
        %3675 = vmatprep.subr.mxu0 %v3674
        %v3676 = vand.u32 %v3461, 4294901760
        %v3677 = vsub.f32 %v3461, %v3676
        %v3678 = vand.u32 %v3677, 4294901760
        %v3679 = vsub.f32 %v3677, %v3678
        %v3680 = vand.u32 %v3679, 4294901760
        %3681 = vmatpush1.msra.mxu0 %v3680
        %3682 = vmatprep.subr.mxu0 0.0
        %3683 = vmatpush1.msra.mxu0 0.0
        %3684 = vmatprep.subr.mxu0 0.0
        %3685 = vmatpush1.msra.mxu0 0.0
        %3686 = vmatprep.subr.mxu0 0.0
        %3687 = vmatpush1.msra.mxu0 0.0
        %3688 = vmatprep.subr.mxu0 0.0
        %3689 = vmatpush1.msra.mxu0 0.0
        %3690 = vmatprep.subr.mxu0 0.0
        %3691 = vmatpush1.msra.mxu0 0.0
        %3692 = vmatprep.subr.mxu0 0.0
        %3693 = vmatpush1.msra.mxu0 0.0
        %3694 = vmatprep.subr.mxu0 0.0
        %3695 = vmatpush1.msra.mxu0 0.0
        %3696 = vmatprep.subr.mxu0 0.0
        %3697 = vmatpush1.msra.mxu0 0.0
        %3698 = vmatprep.subr.mxu0 0.0
        %3699 = vmatpush1.msra.mxu0 0.0
        %3700 = vmatprep.subr.mxu0 0.0
        %3701 = vmatpush1.msra.mxu0 0.0
        %3702 = vmatprep.subr.mxu0 0.0
        %3703 = vmatpush1.msra.mxu0 0.0
        %3704 = vmatprep.subr.mxu0 0.0
        %3705 = vmatpush1.msra.mxu0 0.0
        %3706 = vmatprep.subr.mxu0 0.0
        %3707 = vmatpush1.msra.mxu0 0.0
        %3708 = vmatprep.subr.mxu0 0.0
        %3709 = vmatpush1.msra.mxu0 0.0
        %3710 = vmatprep.subr.mxu0 0.0
        %3711 = vmatpush1.msra.mxu0 0.0
        %3712 = vmatprep.subr.mxu0 0.0
        %3713 = vmatpush1.msra.mxu0 0.0
        %3714 = vmatprep.subr.mxu0 0.0
        %3715 = vmatpush1.msra.mxu0 0.0
        %3716 = vmatprep.subr.mxu0 0.0
        %3717 = vmatpush1.msra.mxu0 0.0
        %3718 = vmatprep.subr.mxu0 0.0
        %3719 = vmatpush1.msra.mxu0 0.0
        %3720 = vmatprep.subr.mxu0 0.0
        %3721 = vmatpush1.msra.mxu0 0.0
        %3722 = vmatprep.subr.mxu0 0.0
        %3723 = vmatpush1.msra.mxu0 0.0
        %3724 = vmatprep.subr.mxu0 0.0
        %3725 = vmatpush1.msra.mxu0 0.0
        %3726 = vmatprep.subr.mxu0 0.0
        %3727 = vmatpush1.msra.mxu0 0.0
        %3728 = vmatprep.subr.mxu0 0.0
        %3729 = vmatpush1.msra.mxu0 0.0
        %3730 = vmatprep.mubr.f32.mxu0 0.0
        %v3731 = vand.u32 %v3478, 4294901760
        %3732 = vmatmul.mubr.f32.gmra.mrb[0].mxu0 %v3731
        %v3733 = vpop.f32.mrb[0].mxu0
        %v3734 = vadd.f32 %v3571, %v3733
        %v3735 = vpop.f32.mrb[0].mxu0
        %v3736 = vadd.f32 %v3573, %v3735
        %3737 = vmatprep.mubr.f32.mxu0 0.0
        %v3738 = vand.u32 %v3481, 4294901760
        %3739 = vmatmul.mubr.f32.gmra.mrb[0].mxu0 %v3738
        %v3740 = vpop.f32.mrb[0].mxu0
        %v3741 = vadd.f32 %v3582, %v3740
        %v3742 = vpop.f32.mrb[0].mxu0
        %v3743 = vadd.f32 %v3584, %v3742
        %3744 = vdwg.mxu0
        %v3745 = vand.u32 %v3448, 4294901760
        %v3746 = vsub.f32 %v3448, %v3745
        %3747 = vmatprep.subr.mxu0 %v3746
        %v3748 = vand.u32 %v3447, 4294901760
        %v3749 = vsub.f32 %v3447, %v3748
        %3750 = vmatpush1.msra.mxu0 %v3749
        %v3751 = vand.u32 %v3450, 4294901760
        %v3752 = vsub.f32 %v3450, %v3751
        %3753 = vmatprep.subr.mxu0 %v3752
        %v3754 = vand.u32 %v3449, 4294901760
        %v3755 = vsub.f32 %v3449, %v3754
        %3756 = vmatpush1.msra.mxu0 %v3755
        %v3757 = vand.u32 %v3452, 4294901760
        %v3758 = vsub.f32 %v3452, %v3757
        %3759 = vmatprep.subr.mxu0 %v3758
        %v3760 = vand.u32 %v3451, 4294901760
        %v3761 = vsub.f32 %v3451, %v3760
        %3762 = vmatpush1.msra.mxu0 %v3761
        %v3763 = vand.u32 %v3454, 4294901760
        %v3764 = vsub.f32 %v3454, %v3763
        %3765 = vmatprep.subr.mxu0 %v3764
        %v3766 = vand.u32 %v3453, 4294901760
        %v3767 = vsub.f32 %v3453, %v3766
        %3768 = vmatpush1.msra.mxu0 %v3767
        %v3769 = vand.u32 %v3456, 4294901760
        %v3770 = vsub.f32 %v3456, %v3769
        %3771 = vmatprep.subr.mxu0 %v3770
        %v3772 = vand.u32 %v3455, 4294901760
        %v3773 = vsub.f32 %v3455, %v3772
        %3774 = vmatpush1.msra.mxu0 %v3773
        %v3775 = vand.u32 %v3458, 4294901760
        %v3776 = vsub.f32 %v3458, %v3775
        %3777 = vmatprep.subr.mxu0 %v3776
        %v3778 = vand.u32 %v3457, 4294901760
        %v3779 = vsub.f32 %v3457, %v3778
        %3780 = vmatpush1.msra.mxu0 %v3779
        %v3781 = vand.u32 %v3460, 4294901760
        %v3782 = vsub.f32 %v3460, %v3781
        %3783 = vmatprep.subr.mxu0 %v3782
        %v3784 = vand.u32 %v3459, 4294901760
        %v3785 = vsub.f32 %v3459, %v3784
        %3786 = vmatpush1.msra.mxu0 %v3785
        %v3787 = vand.u32 %v3462, 4294901760
        %v3788 = vsub.f32 %v3462, %v3787
        %3789 = vmatprep.subr.mxu0 %v3788
        %v3790 = vand.u32 %v3461, 4294901760
        %v3791 = vsub.f32 %v3461, %v3790
        %3792 = vmatpush1.msra.mxu0 %v3791
        %3793 = vmatprep.subr.mxu0 0.0
        %3794 = vmatpush1.msra.mxu0 0.0
        %3795 = vmatprep.subr.mxu0 0.0
        %3796 = vmatpush1.msra.mxu0 0.0
        %3797 = vmatprep.subr.mxu0 0.0
        %3798 = vmatpush1.msra.mxu0 0.0
        %3799 = vmatprep.subr.mxu0 0.0
        %3800 = vmatpush1.msra.mxu0 0.0
        %3801 = vmatprep.subr.mxu0 0.0
        %3802 = vmatpush1.msra.mxu0 0.0
        %3803 = vmatprep.subr.mxu0 0.0
        %3804 = vmatpush1.msra.mxu0 0.0
        %3805 = vmatprep.subr.mxu0 0.0
        %3806 = vmatpush1.msra.mxu0 0.0
        %3807 = vmatprep.subr.mxu0 0.0
        %3808 = vmatpush1.msra.mxu0 0.0
        %3809 = vmatprep.subr.mxu0 0.0
        %3810 = vmatpush1.msra.mxu0 0.0
        %3811 = vmatprep.subr.mxu0 0.0
        %3812 = vmatpush1.msra.mxu0 0.0
        %3813 = vmatprep.subr.mxu0 0.0
        %3814 = vmatpush1.msra.mxu0 0.0
        %3815 = vmatprep.subr.mxu0 0.0
        %3816 = vmatpush1.msra.mxu0 0.0
        %3817 = vmatprep.subr.mxu0 0.0
        %3818 = vmatpush1.msra.mxu0 0.0
        %3819 = vmatprep.subr.mxu0 0.0
        %3820 = vmatpush1.msra.mxu0 0.0
        %3821 = vmatprep.subr.mxu0 0.0
        %3822 = vmatpush1.msra.mxu0 0.0
        %3823 = vmatprep.subr.mxu0 0.0
        %3824 = vmatpush1.msra.mxu0 0.0
        %3825 = vmatprep.subr.mxu0 0.0
        %3826 = vmatpush1.msra.mxu0 0.0
        %3827 = vmatprep.subr.mxu0 0.0
        %3828 = vmatpush1.msra.mxu0 0.0
        %3829 = vmatprep.subr.mxu0 0.0
        %3830 = vmatpush1.msra.mxu0 0.0
        %3831 = vmatprep.subr.mxu0 0.0
        %3832 = vmatpush1.msra.mxu0 0.0
        %3833 = vmatprep.subr.mxu0 0.0
        %3834 = vmatpush1.msra.mxu0 0.0
        %3835 = vmatprep.subr.mxu0 0.0
        %3836 = vmatpush1.msra.mxu0 0.0
        %3837 = vmatprep.subr.mxu0 0.0
        %3838 = vmatpush1.msra.mxu0 0.0
        %3839 = vmatprep.subr.mxu0 0.0
        %3840 = vmatpush1.msra.mxu0 0.0
        %3841 = vmatprep.mubr.f32.mxu0 0.0
        %v3842 = vand.u32 %v3478, 4294901760
        %v3843 = vsub.f32 %v3478, %v3842
        %3844 = vmatmul.mubr.f32.gmra.mrb[0].mxu0 %v3843
        %v3845 = vpop.f32.mrb[0].mxu0
        %v3846 = vadd.f32 %v3734, %v3845
        %v3847 = vpop.f32.mrb[0].mxu0
        %v3848 = vadd.f32 %v3736, %v3847
        %3849 = vmatprep.mubr.f32.mxu0 0.0
        %v3850 = vand.u32 %v3481, 4294901760
        %v3851 = vsub.f32 %v3481, %v3850
        %3852 = vmatmul.mubr.f32.gmra.mrb[0].mxu0 %v3851
        %v3853 = vpop.f32.mrb[0].mxu0
        %v3854 = vadd.f32 %v3741, %v3853
        %v3855 = vpop.f32.mrb[0].mxu0
        %v3856 = vadd.f32 %v3743, %v3855
        %3857 = vdwg.mxu0
        %v3858 = vand.u32 %v3448, 4294901760
        %3859 = vmatprep.subr.mxu0 %v3858
        %v3860 = vand.u32 %v3447, 4294901760
        %3861 = vmatpush1.msra.mxu0 %v3860
        %v3862 = vand.u32 %v3450, 4294901760
        %3863 = vmatprep.subr.mxu0 %v3862
        %v3864 = vand.u32 %v3449, 4294901760
        %3865 = vmatpush1.msra.mxu0 %v3864
        %v3866 = vand.u32 %v3452, 4294901760
        %3867 = vmatprep.subr.mxu0 %v3866
        %v3868 = vand.u32 %v3451, 4294901760
        %3869 = vmatpush1.msra.mxu0 %v3868
        %v3870 = vand.u32 %v3454, 4294901760
        %3871 = vmatprep.subr.mxu0 %v3870
        %v3872 = vand.u32 %v3453, 4294901760
        %3873 = vmatpush1.msra.mxu0 %v3872
        %v3874 = vand.u32 %v3456, 4294901760
        %3875 = vmatprep.subr.mxu0 %v3874
        %v3876 = vand.u32 %v3455, 4294901760
        %3877 = vmatpush1.msra.mxu0 %v3876
        %v3878 = vand.u32 %v3458, 4294901760
        %3879 = vmatprep.subr.mxu0 %v3878
        %v3880 = vand.u32 %v3457, 4294901760
        %3881 = vmatpush1.msra.mxu0 %v3880
        %v3882 = vand.u32 %v3460, 4294901760
        %3883 = vmatprep.subr.mxu0 %v3882
        %v3884 = vand.u32 %v3459, 4294901760
        %3885 = vmatpush1.msra.mxu0 %v3884
        %v3886 = vand.u32 %v3462, 4294901760
        %3887 = vmatprep.subr.mxu0 %v3886
        %v3888 = vand.u32 %v3461, 4294901760
        %3889 = vmatpush1.msra.mxu0 %v3888
        %3890 = vmatprep.subr.mxu0 0.0
        %3891 = vmatpush1.msra.mxu0 0.0
        %3892 = vmatprep.subr.mxu0 0.0
        %3893 = vmatpush1.msra.mxu0 0.0
        %3894 = vmatprep.subr.mxu0 0.0
        %3895 = vmatpush1.msra.mxu0 0.0
        %3896 = vmatprep.subr.mxu0 0.0
        %3897 = vmatpush1.msra.mxu0 0.0
        %3898 = vmatprep.subr.mxu0 0.0
        %3899 = vmatpush1.msra.mxu0 0.0
        %3900 = vmatprep.subr.mxu0 0.0
        %3901 = vmatpush1.msra.mxu0 0.0
        %3902 = vmatprep.subr.mxu0 0.0
        %3903 = vmatpush1.msra.mxu0 0.0
        %3904 = vmatprep.subr.mxu0 0.0
        %3905 = vmatpush1.msra.mxu0 0.0
        %3906 = vmatprep.subr.mxu0 0.0
        %3907 = vmatpush1.msra.mxu0 0.0
        %3908 = vmatprep.subr.mxu0 0.0
        %3909 = vmatpush1.msra.mxu0 0.0
        %3910 = vmatprep.subr.mxu0 0.0
        %3911 = vmatpush1.msra.mxu0 0.0
        %3912 = vmatprep.subr.mxu0 0.0
        %3913 = vmatpush1.msra.mxu0 0.0
        %3914 = vmatprep.subr.mxu0 0.0
        %3915 = vmatpush1.msra.mxu0 0.0
        %3916 = vmatprep.subr.mxu0 0.0
        %3917 = vmatpush1.msra.mxu0 0.0
        %3918 = vmatprep.subr.mxu0 0.0
        %3919 = vmatpush1.msra.mxu0 0.0
        %3920 = vmatprep.subr.mxu0 0.0
        %3921 = vmatpush1.msra.mxu0 0.0
        %3922 = vmatprep.subr.mxu0 0.0
        %3923 = vmatpush1.msra.mxu0 0.0
        %3924 = vmatprep.subr.mxu0 0.0
        %3925 = vmatpush1.msra.mxu0 0.0
        %3926 = vmatprep.subr.mxu0 0.0
        %3927 = vmatpush1.msra.mxu0 0.0
        %3928 = vmatprep.subr.mxu0 0.0
        %3929 = vmatpush1.msra.mxu0 0.0
        %3930 = vmatprep.subr.mxu0 0.0
        %3931 = vmatpush1.msra.mxu0 0.0
        %3932 = vmatprep.subr.mxu0 0.0
        %3933 = vmatpush1.msra.mxu0 0.0
        %3934 = vmatprep.subr.mxu0 0.0
        %3935 = vmatpush1.msra.mxu0 0.0
        %3936 = vmatprep.subr.mxu0 0.0
        %3937 = vmatpush1.msra.mxu0 0.0
        %3938 = vmatprep.mubr.f32.mxu0 0.0
        %v3939 = vand.u32 %v3478, 4294901760
        %v3940 = vsub.f32 %v3478, %v3939
        %v3941 = vand.u32 %v3940, 4294901760
        %3942 = vmatmul.mubr.f32.gmra.mrb[0].mxu0 %v3941
        %v3943 = vpop.f32.mrb[0].mxu0
        %v3944 = vadd.f32 %v3846, %v3943
        %v3945 = vpop.f32.mrb[0].mxu0
        %v3946 = vadd.f32 %v3848, %v3945
        %3947 = vmatprep.mubr.f32.mxu0 0.0
        %v3948 = vand.u32 %v3481, 4294901760
        %v3949 = vsub.f32 %v3481, %v3948
        %v3950 = vand.u32 %v3949, 4294901760
        %3951 = vmatmul.mubr.f32.gmra.mrb[0].mxu0 %v3950
        %v3952 = vpop.f32.mrb[0].mxu0
        %v3953 = vadd.f32 %v3854, %v3952
        %v3954 = vpop.f32.mrb[0].mxu0
        %v3955 = vadd.f32 %v3856, %v3954
        %3956 = vdwg.mxu0
        %v3957 = vand.u32 %v3448, 4294901760
        %v3958 = vsub.f32 %v3448, %v3957
        %v3959 = vand.u32 %v3958, 4294901760
        %3960 = vmatprep.subr.mxu0 %v3959
        %v3961 = vand.u32 %v3447, 4294901760
        %v3962 = vsub.f32 %v3447, %v3961
        %v3963 = vand.u32 %v3962, 4294901760
        %3964 = vmatpush1.msra.mxu0 %v3963
        %v3965 = vand.u32 %v3450, 4294901760
        %v3966 = vsub.f32 %v3450, %v3965
        %v3967 = vand.u32 %v3966, 4294901760
        %3968 = vmatprep.subr.mxu0 %v3967
        %v3969 = vand.u32 %v3449, 4294901760
        %v3970 = vsub.f32 %v3449, %v3969
        %v3971 = vand.u32 %v3970, 4294901760
        %3972 = vmatpush1.msra.mxu0 %v3971
        %v3973 = vand.u32 %v3452, 4294901760
        %v3974 = vsub.f32 %v3452, %v3973
        %v3975 = vand.u32 %v3974, 4294901760
        %3976 = vmatprep.subr.mxu0 %v3975
        %v3977 = vand.u32 %v3451, 4294901760
        %v3978 = vsub.f32 %v3451, %v3977
        %v3979 = vand.u32 %v3978, 4294901760
        %3980 = vmatpush1.msra.mxu0 %v3979
        %v3981 = vand.u32 %v3454, 4294901760
        %v3982 = vsub.f32 %v3454, %v3981
        %v3983 = vand.u32 %v3982, 4294901760
        %3984 = vmatprep.subr.mxu0 %v3983
        %v3985 = vand.u32 %v3453, 4294901760
        %v3986 = vsub.f32 %v3453, %v3985
        %v3987 = vand.u32 %v3986, 4294901760
        %3988 = vmatpush1.msra.mxu0 %v3987
        %v3989 = vand.u32 %v3456, 4294901760
        %v3990 = vsub.f32 %v3456, %v3989
        %v3991 = vand.u32 %v3990, 4294901760
        %3992 = vmatprep.subr.mxu0 %v3991
        %v3993 = vand.u32 %v3455, 4294901760
        %v3994 = vsub.f32 %v3455, %v3993
        %v3995 = vand.u32 %v3994, 4294901760
        %3996 = vmatpush1.msra.mxu0 %v3995
        %v3997 = vand.u32 %v3458, 4294901760
        %v3998 = vsub.f32 %v3458, %v3997
        %v3999 = vand.u32 %v3998, 4294901760
        %4000 = vmatprep.subr.mxu0 %v3999
        %v4001 = vand.u32 %v3457, 4294901760
        %v4002 = vsub.f32 %v3457, %v4001
        %v4003 = vand.u32 %v4002, 4294901760
        %4004 = vmatpush1.msra.mxu0 %v4003
        %v4005 = vand.u32 %v3460, 4294901760
        %v4006 = vsub.f32 %v3460, %v4005
        %v4007 = vand.u32 %v4006, 4294901760
        %4008 = vmatprep.subr.mxu0 %v4007
        %v4009 = vand.u32 %v3459, 4294901760
        %v4010 = vsub.f32 %v3459, %v4009
        %v4011 = vand.u32 %v4010, 4294901760
        %4012 = vmatpush1.msra.mxu0 %v4011
        %v4013 = vand.u32 %v3462, 4294901760
        %v4014 = vsub.f32 %v3462, %v4013
        %v4015 = vand.u32 %v4014, 4294901760
        %4016 = vmatprep.subr.mxu0 %v4015
        %v4017 = vand.u32 %v3461, 4294901760
        %v4018 = vsub.f32 %v3461, %v4017
        %v4019 = vand.u32 %v4018, 4294901760
        %4020 = vmatpush1.msra.mxu0 %v4019
        %4021 = vmatprep.subr.mxu0 0.0
        %4022 = vmatpush1.msra.mxu0 0.0
        %4023 = vmatprep.subr.mxu0 0.0
        %4024 = vmatpush1.msra.mxu0 0.0
        %4025 = vmatprep.subr.mxu0 0.0
        %4026 = vmatpush1.msra.mxu0 0.0
        %4027 = vmatprep.subr.mxu0 0.0
        %4028 = vmatpush1.msra.mxu0 0.0
        %4029 = vmatprep.subr.mxu0 0.0
        %4030 = vmatpush1.msra.mxu0 0.0
        %4031 = vmatprep.subr.mxu0 0.0
        %4032 = vmatpush1.msra.mxu0 0.0
        %4033 = vmatprep.subr.mxu0 0.0
        %4034 = vmatpush1.msra.mxu0 0.0
        %4035 = vmatprep.subr.mxu0 0.0
        %4036 = vmatpush1.msra.mxu0 0.0
        %4037 = vmatprep.subr.mxu0 0.0
        %4038 = vmatpush1.msra.mxu0 0.0
        %4039 = vmatprep.subr.mxu0 0.0
        %4040 = vmatpush1.msra.mxu0 0.0
        %4041 = vmatprep.subr.mxu0 0.0
        %4042 = vmatpush1.msra.mxu0 0.0
        %4043 = vmatprep.subr.mxu0 0.0
        %4044 = vmatpush1.msra.mxu0 0.0
        %4045 = vmatprep.subr.mxu0 0.0
        %4046 = vmatpush1.msra.mxu0 0.0
        %4047 = vmatprep.subr.mxu0 0.0
        %4048 = vmatpush1.msra.mxu0 0.0
        %4049 = vmatprep.subr.mxu0 0.0
        %4050 = vmatpush1.msra.mxu0 0.0
        %4051 = vmatprep.subr.mxu0 0.0
        %4052 = vmatpush1.msra.mxu0 0.0
        %4053 = vmatprep.subr.mxu0 0.0
        %4054 = vmatpush1.msra.mxu0 0.0
        %4055 = vmatprep.subr.mxu0 0.0
        %4056 = vmatpush1.msra.mxu0 0.0
        %4057 = vmatprep.subr.mxu0 0.0
        %4058 = vmatpush1.msra.mxu0 0.0
        %4059 = vmatprep.subr.mxu0 0.0
        %4060 = vmatpush1.msra.mxu0 0.0
        %4061 = vmatprep.subr.mxu0 0.0
        %4062 = vmatpush1.msra.mxu0 0.0
        %4063 = vmatprep.subr.mxu0 0.0
        %4064 = vmatpush1.msra.mxu0 0.0
        %4065 = vmatprep.subr.mxu0 0.0
        %4066 = vmatpush1.msra.mxu0 0.0
        %4067 = vmatprep.subr.mxu0 0.0
        %4068 = vmatpush1.msra.mxu0 0.0
        %4069 = vmatprep.mubr.f32.mxu0 0.0
        %v4070 = vand.u32 %v3478, 4294901760
        %4071 = vmatmul.mubr.f32.gmra.mrb[0].mxu0 %v4070
        %v4072 = vpop.f32.mrb[0].mxu0
        %v4073 = vadd.f32 %v3944, %v4072
        %v4074 = vpop.f32.mrb[0].mxu0
        %v4075 = vadd.f32 %v3946, %v4074
        %4076 = vmatprep.mubr.f32.mxu0 0.0
        %v4077 = vand.u32 %v3481, 4294901760
        %4078 = vmatmul.mubr.f32.gmra.mrb[0].mxu0 %v4077
        %v4079 = vpop.f32.mrb[0].mxu0
        %v4080 = vadd.f32 %v3953, %v4079
        %v4081 = vpop.f32.mrb[0].mxu0
        %v4082 = vadd.f32 %v3955, %v4081
        %4083 = vdwg.mxu0
        %v4084 = vand.u32 %v3448, 4294901760
        %4085 = vmatprep.subr.mxu0 %v4084
        %v4086 = vand.u32 %v3447, 4294901760
        %4087 = vmatpush1.msra.mxu0 %v4086
        %v4088 = vand.u32 %v3450, 4294901760
        %4089 = vmatprep.subr.mxu0 %v4088
        %v4090 = vand.u32 %v3449, 4294901760
        %4091 = vmatpush1.msra.mxu0 %v4090
        %v4092 = vand.u32 %v3452, 4294901760
        %4093 = vmatprep.subr.mxu0 %v4092
        %v4094 = vand.u32 %v3451, 4294901760
        %4095 = vmatpush1.msra.mxu0 %v4094
        %v4096 = vand.u32 %v3454, 4294901760
        %4097 = vmatprep.subr.mxu0 %v4096
        %v4098 = vand.u32 %v3453, 4294901760
        %4099 = vmatpush1.msra.mxu0 %v4098
        %v4100 = vand.u32 %v3456, 4294901760
        %4101 = vmatprep.subr.mxu0 %v4100
        %v4102 = vand.u32 %v3455, 4294901760
        %4103 = vmatpush1.msra.mxu0 %v4102
        %v4104 = vand.u32 %v3458, 4294901760
        %4105 = vmatprep.subr.mxu0 %v4104
        %v4106 = vand.u32 %v3457, 4294901760
        %4107 = vmatpush1.msra.mxu0 %v4106
        %v4108 = vand.u32 %v3460, 4294901760
        %4109 = vmatprep.subr.mxu0 %v4108
        %v4110 = vand.u32 %v3459, 4294901760
        %4111 = vmatpush1.msra.mxu0 %v4110
        %v4112 = vand.u32 %v3462, 4294901760
        %4113 = vmatprep.subr.mxu0 %v4112
        %v4114 = vand.u32 %v3461, 4294901760
        %4115 = vmatpush1.msra.mxu0 %v4114
        %4116 = vmatprep.subr.mxu0 0.0
        %4117 = vmatpush1.msra.mxu0 0.0
        %4118 = vmatprep.subr.mxu0 0.0
        %4119 = vmatpush1.msra.mxu0 0.0
        %4120 = vmatprep.subr.mxu0 0.0
        %4121 = vmatpush1.msra.mxu0 0.0
        %4122 = vmatprep.subr.mxu0 0.0
        %4123 = vmatpush1.msra.mxu0 0.0
        %4124 = vmatprep.subr.mxu0 0.0
        %4125 = vmatpush1.msra.mxu0 0.0
        %4126 = vmatprep.subr.mxu0 0.0
        %4127 = vmatpush1.msra.mxu0 0.0
        %4128 = vmatprep.subr.mxu0 0.0
        %4129 = vmatpush1.msra.mxu0 0.0
        %4130 = vmatprep.subr.mxu0 0.0
        %4131 = vmatpush1.msra.mxu0 0.0
        %4132 = vmatprep.subr.mxu0 0.0
        %4133 = vmatpush1.msra.mxu0 0.0
        %4134 = vmatprep.subr.mxu0 0.0
        %4135 = vmatpush1.msra.mxu0 0.0
        %4136 = vmatprep.subr.mxu0 0.0
        %4137 = vmatpush1.msra.mxu0 0.0
        %4138 = vmatprep.subr.mxu0 0.0
        %4139 = vmatpush1.msra.mxu0 0.0
        %4140 = vmatprep.subr.mxu0 0.0
        %4141 = vmatpush1.msra.mxu0 0.0
        %4142 = vmatprep.subr.mxu0 0.0
        %4143 = vmatpush1.msra.mxu0 0.0
        %4144 = vmatprep.subr.mxu0 0.0
        %4145 = vmatpush1.msra.mxu0 0.0
        %4146 = vmatprep.subr.mxu0 0.0
        %4147 = vmatpush1.msra.mxu0 0.0
        %4148 = vmatprep.subr.mxu0 0.0
        %4149 = vmatpush1.msra.mxu0 0.0
        %4150 = vmatprep.subr.mxu0 0.0
        %4151 = vmatpush1.msra.mxu0 0.0
        %4152 = vmatprep.subr.mxu0 0.0
        %4153 = vmatpush1.msra.mxu0 0.0
        %4154 = vmatprep.subr.mxu0 0.0
        %4155 = vmatpush1.msra.mxu0 0.0
        %4156 = vmatprep.subr.mxu0 0.0
        %4157 = vmatpush1.msra.mxu0 0.0
        %4158 = vmatprep.subr.mxu0 0.0
        %4159 = vmatpush1.msra.mxu0 0.0
        %4160 = vmatprep.subr.mxu0 0.0
        %4161 = vmatpush1.msra.mxu0 0.0
        %4162 = vmatprep.subr.mxu0 0.0
        %4163 = vmatpush1.msra.mxu0 0.0
        %4164 = vmatprep.mubr.f32.mxu0 0.0
        %v4165 = vand.u32 %v3478, 4294901760
        %4166 = vmatmul.mubr.f32.gmra.mrb[0].mxu0 %v4165
        %v4167 = vpop.f32.mrb[0].mxu0
        %v4168 = vadd.f32 %v4073, %v4167
        %v4169 = vpop.f32.mrb[0].mxu0
        %v4170 = vadd.f32 %v4075, %v4169
        %4171 = vmatprep.mubr.f32.mxu0 0.0
        %v4172 = vand.u32 %v3481, 4294901760
        %4173 = vmatmul.mubr.f32.gmra.mrb[0].mxu0 %v4172
        %v4174 = vpop.f32.mrb[0].mxu0
        %v4175 = vadd.f32 %v4080, %v4174
        %v4176 = vpop.f32.mrb[0].mxu0
        %v4177 = vadd.f32 %v4082, %v4176
        %4178 = vdwg.mxu0
        %4179 = vst [vmem:[%s352] sm:$0xff] %v4168
        %4180 = vst [vmem:[%s352 + $0x8] sm:$0xff] %v4170
        %4181 = vst [vmem:[%s352 + $0x10] sm:$0xff] %v4175
        %4182 = vst [vmem:[%s352 + $0x18] sm:$0xff] %v4177
        %s4183 = sand.u32 %s222, 1
        %s4184 = sand.u32 %s222, 1
        %s4185 = smul.addr %s4184, 32
        %s4186 = scalar_lea.vmem [#allocation3], %s4185
        // Predicated region
        $region80: #{translation_net_forward.1} parent=74 // pred_check
          %p4187 = pneg %p232
        $region81: #{translation_net_forward.1} parent=74 // pred_check_branch
          %4189 = sbr.rel (%p4187) target = $region83
        $region82: #{translation_net_forward.1} parent=74 // pred_region
          %s4190 = smul.u32 2, %s20
          %s4191 = smul.addr %s4190, 8
          %s4192 = scalar_lea.vmem %s9, %s4191
          // Predicated region
          $region84: #{translation_net_forward.1} parent=82 // pred_check
            _
          $region85: #{translation_net_forward.1} parent=82 // pred_check_branch
            %4194 = sbr.rel (0) target = $region87
          $region86: #{translation_net_forward.1} parent=82 // pred_region
            // Predicated region
            $region88: #{translation_net_forward.1} parent=86 // pred_check
              _
            $region89: #{translation_net_forward.1} parent=86 // pred_check_branch
              %4196 = sbr.rel (0) target = $region91
            $region90: #{translation_net_forward.1} parent=86 // pred_region
              loop: start=0, step=1, limit=1
              $region92: #{translation_net_forward.1} parent=90 // loop_pre_header
                _
              $region93: #{translation_net_forward.1} parent=90 // loop_header
                %s4198 = sphi 0, %s4202
                %p4199 = scmp.ge.s32.totalorder %s4198, 1
                %s4203 = sphi %s4186, %s4186
                %s4204 = sphi %s4192, %s4192
              $region94: #{translation_net_forward.1} parent=90 // loop_header_branch
                %4201 = sbr.rel (%p4199) target = $region98
              $region95: #{translation_net_forward.1} parent=90 // loop_body
                %v4205 = vld [vmem:[%s4203] sm:$0xff]
                %4206 = vst [vmem:[%s4204] sm:$0xff] %v4205
                %v4207 = vld [vmem:[%s4203 + $0x8] sm:$0xff]
                %4208 = vst [vmem:[%s4204 + $0x8] sm:$0xff] %v4207
                %v4209 = vld [vmem:[%s4203 + $0x10] sm:$0xff]
                %4210 = vst [vmem:[%s4204 + $0x20] sm:$0xff] %v4209
                %v4211 = vld [vmem:[%s4203 + $0x18] sm:$0xff]
                %4212 = vst [vmem:[%s4204 + $0x28] sm:$0xff] %v4211
              $region96: #{translation_net_forward.1} parent=90 // loop_footer
                %s4202 = sadd.s32 1, %s4198
              $region97: #{translation_net_forward.1} parent=90 // loop_footer_branch
                %4197 = sbr.rel target = $region93
              $region98: #{translation_net_forward.1} parent=90 // loop_exit
                _
            $region91: #{translation_net_forward.1} parent=86 // pred_fallthru
              _
            // Predicated region
            $region99: #{translation_net_forward.1} parent=86 // pred_check
              _
            $region100: #{translation_net_forward.1} parent=86 // pred_check_branch
              %4214 = sbr.rel target = $region102
            $region101: #{translation_net_forward.1} parent=86 // pred_region
              _
            $region102: #{translation_net_forward.1} parent=86 // pred_fallthru
              _
          $region87: #{translation_net_forward.1} parent=82 // pred_fallthru
            _
          %4215 = vnop
        $region83: #{translation_net_forward.1} parent=74 // pred_fallthru
          _
      $region75: #{translation_net_forward.1} parent=5 // pred_fallthru
        _
      %p4216 = scmp.le.s32.totalorder 2, %s15
      // Predicated region
      $region103: #{translation_net_forward.1} parent=5 // pred_check
        %p4217 = pneg %p4216
      $region104: #{translation_net_forward.1} parent=5 // pred_check_branch
        %4219 = sbr.rel (%p4217) target = $region106
      $region105: #{translation_net_forward.1} parent=5 // pred_region
        %s4220 = ssub.s32 %s15, 2
        // Predicated region
        $region107: #{translation_net_forward.1} parent=105 // pred_check
          %p4221 = pneg %p238
        $region108: #{translation_net_forward.1} parent=105 // pred_check_branch
          %4223 = sbr.rel (%p4221) target = $region110
        $region109: #{translation_net_forward.1} parent=105 // pred_region
          %s4224 = sand.u32 %s223, 1
          %s4225 = sand.u32 %s223, 1
          %s4226 = smul.addr %s4225, 32
          %s4227 = scalar_lea.vmem [#allocation3], %s4226
        $region110: #{translation_net_forward.1} parent=105 // pred_fallthru
          _
      $region106: #{translation_net_forward.1} parent=5 // pred_fallthru
        _
    $region6: #{translation_net_forward.1} parent=1 // loop_footer
      %s19 = sadd.s32 1, %s15
    $region7: #{translation_net_forward.1} parent=1 // loop_footer_branch
      %14 = sbr.rel target = $region3
    $region8: #{translation_net_forward.1} parent=1 // loop_exit
      _

</llo_original>
